<compile_context>
chip_gen: v7x
topology: tpu7x:2x2x1
jax: 0.10.0
libtpu: 0.0.40
codegen_flags: <defaults>
</compile_context>

<pallas_src>
import numpy as np
import jax
import jax.numpy as jnp
from jax import lax
from jax.experimental import pallas as pl
from jax.experimental.pallas import tpu as pltpu


# ------------------------------ fused Pallas kernel ------------------------------

def _basicnet_kernel(xcol_ref, w1_ref, w21_ref, w22_ref,
                     fc1w_ref, fc1b_ref, fc2w_ref, fc2b_ref,
                     out_ref, p1_scr, p2_scr):
    f32, bf16 = jnp.float32, jnp.bfloat16

    # ---- conv1: ONE MXU matmul, K = 7*7*4 = 196 (im2col packed into lanes) -----
    a1 = jnp.dot(xcol_ref[0], w1_ref[...], preferred_element_type=f32)   # (1664,16)

    # ---- maxpool 4x4, then ReLU (max/ReLU commute) ------------------------------
    # Host-side row order: block k = 4*ry + rx (104 rows each, 8-aligned, last 4
    # rows dummy zeros), row within block = 10*py + px.  A pool window is the same
    # row of all 16 blocks -> 15 aligned full-width maxes, no relayout.
    pooled = a1[0:100, :]
    for k in range(1, 16):
        pooled = jnp.maximum(pooled, a1[104 * k:104 * k + 100, :])
    pooled = jnp.maximum(pooled, 0.0)                                    # (100,16)

    # ---- zero-padded 12x12 grids (flat, row = 12*Y + X) in VMEM scratch ---------
    p1_scr[...] = jnp.zeros(p1_scr.shape, f32)
    p2_scr[...] = jnp.zeros(p2_scr.shape, f32)
    for y in range(10):                        # interior rows 13+12y .. 13+12y+9
        p1_scr[pl.ds(13 + 12 * y, 10), :] = pooled[10 * y:10 * y + 10, :]

    # ---- conv2_1 (3x3, pad 1): 9 taps folded into one K=144 matmul --------------
    lhs21 = jnp.concatenate(
        [p1_scr[pl.ds(12 * di + dj, 144), :] for di in range(3) for dj in range(3)],
        axis=1).astype(bf16)                                             # (144,144)
    acc2 = jnp.dot(lhs21, w21_ref[...], preferred_element_type=f32)      # (144,32)

    # ReLU + ONE shifted masked store into conv2_2's padded grid (border mask).
    row = lax.broadcasted_iota(jnp.int32, (144, 1), 0)
    interior = jnp.logical_and(row % 12 < 10, row < 120)
    mask = jnp.where(interior, 1.0, 0.0).astype(f32)
    p2_scr[pl.ds(13, 144), :] = jnp.maximum(acc2, 0.0) * mask

    # ---- conv2_2 (3x3, pad 1): one K=288 matmul ---------------------------------
    lhs22 = jnp.concatenate(
        [p2_scr[pl.ds(12 * di + dj, 144), :] for di in range(3) for dj in range(3)],
        axis=1).astype(bf16)                                             # (144,288)
    acc3 = jnp.dot(lhs22, w22_ref[...], preferred_element_type=f32)      # (144,32)

    # ---- maxpool 2x2 + flatten (lane-concat), ReLU after the pool ---------------
    pieces = []
    for ph in range(5):
        ym = jnp.maximum(acc3[24 * ph:24 * ph + 10, :],
                         acc3[24 * ph + 12:24 * ph + 22, :])             # (10,32)
        for pw in range(5):
            pieces.append(jnp.maximum(ym[2 * pw:2 * pw + 1, :],
                                      ym[2 * pw + 1:2 * pw + 2, :]))     # (1,32)
    feat = jnp.maximum(jnp.concatenate(pieces, axis=1), 0.0)             # (1,800)

    # ---- fused fc1 + ReLU + fc epilogue (weights resident in VMEM) --------------
    h = jnp.dot(feat.astype(bf16), fc1w_ref[...], preferred_element_type=f32)
    h = jnp.maximum(h + fc1b_ref[...], 0.0)                              # (1,84)
    y = jnp.sum(h * fc2w_ref[...], axis=1, keepdims=True) + fc2b_ref[...]
    out_ref[...] = y.reshape(1, 1, 1)


# ----------------------------------- JAX glue -------------------------------------

def _prep_input(x_nchw):
    """(B,4,124,124) -> (B,1664,196) bf16 im2col with conv1 taps in lanes and rows
    permuted so that each 4x4 pool window is the same row of 16 aligned 104-row
    blocks.  Lane index = i*28 + j*4 + c  (kernel tap (i,j), channel c)."""
    B = x_nchw.shape[0]
    taps = []
    for i in range(7):
        for j in range(7):
            taps.append(x_nchw[:, :, i:i + 118:3, j:j + 118:3])     # (B,4,40,40)
    p = jnp.stack(taps, axis=1).reshape(B, 7, 7, 4, 40, 40)
    p = jnp.transpose(p, (0, 4, 5, 1, 2, 3))                        # (B,oy,ox,i,j,c)
    p = p.reshape(B, 10, 4, 10, 4, 196)                             # (B,py,ry,px,rx,K)
    p = jnp.transpose(p, (0, 2, 4, 1, 3, 5))                        # (B,ry,rx,py,px,K)
    p = p.reshape(B, 16, 100, 196)
    p = jnp.pad(p, ((0, 0), (0, 0), (0, 4), (0, 0)))                # 104-row blocks
    return p.reshape(B, 1664, 196).astype(jnp.bfloat16)


def basicnet_forward(x_nchw, prep):
    B = x_nchw.shape[0]
    xcol = _prep_input(x_nchw)

    out = pl.pallas_call(
        _basicnet_kernel,
        out_shape=jax.ShapeDtypeStruct((B, 1, 1), jnp.float32),
        grid=(B,),   # TODO(synk): for large B, block several images per grid step
        in_specs=[
            pl.BlockSpec((1, 1664, 196), lambda b: (b, 0, 0)),
            pl.BlockSpec((196, 16), lambda b: (0, 0)),
            pl.BlockSpec((144, 32), lambda b: (0, 0)),
            pl.BlockSpec((288, 32), lambda b: (0, 0)),
            pl.BlockSpec((800, 84), lambda b: (0, 0)),
            pl.BlockSpec((1, 84), lambda b: (0, 0)),
            pl.BlockSpec((1, 84), lambda b: (0, 0)),
            pl.BlockSpec((1, 1), lambda b: (0, 0)),
        ],
        out_specs=pl.BlockSpec((1, 1, 1), lambda b: (b, 0, 0)),
        scratch_shapes=[
            pltpu.VMEM((176, 16), jnp.float32),   # zero-padded pooled1 grid (12x12)
            pltpu.VMEM((176, 32), jnp.float32),   # zero-padded conv2_1 out (12x12)
        ],
        compiler_params=pltpu.CompilerParams(dimension_semantics=("parallel",)),
    )(xcol, prep["w1"], prep["w21"], prep["w22"],
      prep["fc1_w"], prep["fc1_b"], prep["fc_w"], prep["fc_b"])
    return out.reshape(B, 1)


# -------------------- one-time weight repacking (outside jit) ---------------------

def prepare_params(params):
    def conv_taps_flat(w):                      # OIHW -> (kh*kw*in, out)
        w = np.asarray(w, np.float32)
        o, i, kh, kw = w.shape
        return np.transpose(w, (2, 3, 1, 0)).reshape(kh * kw * i, o)

    # fc1: permute columns from torch's (c,h,w) flatten to our (h,w,c) flatten.
    fc1_w = np.asarray(params["fc1_w"], np.float32)                      # (84,800)
    fc1_wp = fc1_w.reshape(84, 32, 5, 5).transpose(2, 3, 1, 0).reshape(800, 84)

    return {
        "w1":    jnp.asarray(conv_taps_flat(params["conv1_w"]), jnp.bfloat16),    # (196,16)
        "w21":   jnp.asarray(conv_taps_flat(params["conv2_1_w"]), jnp.bfloat16),  # (144,32)
        "w22":   jnp.asarray(conv_taps_flat(params["conv2_2_w"]), jnp.bfloat16),  # (288,32)
        "fc1_w": jnp.asarray(fc1_wp, jnp.bfloat16),                               # (800,84)
        "fc1_b": jnp.asarray(np.asarray(params["fc1_b"], np.float32).reshape(1, 84)),
        "fc_w":  jnp.asarray(np.asarray(params["fc_w"], np.float32).reshape(1, 84)),
        "fc_b":  jnp.asarray(np.asarray(params["fc_b"], np.float32).reshape(1, 1)),
    }


# --------------------------- pure-JAX reference (check) ---------------------------

def reference_forward(x, params):
    bf16, f32 = jnp.bfloat16, jnp.float32
    dn = ("NCHW", "OIHW", "NCHW")
    y = lax.conv_general_dilated(x.astype(bf16), params["conv1_w"].astype(bf16),
                                 window_strides=(3, 3), padding="VALID",
                                 dimension_numbers=dn, preferred_element_type=f32)
    y = jnp.maximum(y, 0.0)
    y = lax.reduce_window(y, -jnp.inf, lax.max, (1, 1, 4, 4), (1, 1, 4, 4), "VALID")
    y = lax.conv_general_dilated(y.astype(bf16), params["conv2_1_w"].astype(bf16),
                                 window_strides=(1, 1), padding=((1, 1), (1, 1)),
                                 dimension_numbers=dn, preferred_element_type=f32)
    y = jnp.maximum(y, 0.0)
    y = lax.conv_general_dilated(y.astype(bf16), params["conv2_2_w"].astype(bf16),
                                 window_strides=(1, 1), padding=((1, 1), (1, 1)),
                                 dimension_numbers=dn, preferred_element_type=f32)
    y = jnp.maximum(y, 0.0)
    y = lax.reduce_window(y, -jnp.inf, lax.max, (1, 1, 2, 2), (1, 1, 2, 2), "VALID")
    y = y.reshape(y.shape[0], -1)                                        # (B,800)
    h = jnp.dot(y.astype(bf16), params["fc1_w"].T.astype(bf16),
                preferred_element_type=f32) + params["fc1_b"][None, :]
    h = jnp.maximum(h, 0.0)
    return jnp.dot(h, params["fc_w"].T) + params["fc_b"][None, :]


# ------------------------------------- main ---------------------------------------

if __name__ == "__main__":
    key = jax.random.PRNGKey(0)
    kx, k1, k2, k3, k4, k5, k6, k7 = jax.random.split(key, 8)

    # Spatial size 124 is forced by fc1's in_features=800 (=> 5x5x32 after pool2).
    x = jax.random.normal(kx, (2, 4, 124, 124), jnp.float32)

    params = {
        "conv1_w":   jax.random.normal(k1, (16, 4, 7, 7), jnp.float32) * 0.05,
        "conv2_1_w": jax.random.normal(k2, (32, 16, 3, 3), jnp.float32) * 0.05,
        "conv2_2_w": jax.random.normal(k3, (32, 32, 3, 3), jnp.float32) * 0.05,
        "fc1_w":     jax.random.normal(k4, (84, 800), jnp.float32) * 0.03,
        "fc1_b":     jax.random.normal(k5, (84,), jnp.float32) * 0.01,
        "fc_w":      jax.random.normal(k6, (1, 84), jnp.float32) * 0.1,
        "fc_b":      jax.random.normal(k7, (1,), jnp.float32) * 0.01,
    }

    prep = prepare_params(params)          # weight repacking hoisted out of the jit
    fwd = jax.jit(basicnet_forward)
    out = jax.block_until_ready(fwd(x, prep))
    assert out.shape == (2, 1) and out.dtype == jnp.float32

    # Loose correctness check against a pure-JAX reference that uses the same
    # bf16-operand / f32-accumulate arithmetic (tolerance covers ordering noise).
    ref = reference_forward(x, params)
    err = float(jnp.max(jnp.abs(out - ref)))
    scale = max(1.0, float(jnp.max(jnp.abs(ref))))
    assert err <= 0.02 * scale, f"kernel/reference mismatch: max|diff|={err}"

    print("KERNEL_OK")
</pallas_src>

<mosaic_0001>
module attributes {stable_mosaic.version = 11 : i64} {
  func.func @_basicnet_kernel(%arg0: i32, %arg1: memref<1x1664x196xbf16, #tpu.memory_space<vmem>>, %arg2: memref<196x16xbf16, #tpu.memory_space<vmem>>, %arg3: memref<144x32xbf16, #tpu.memory_space<vmem>>, %arg4: memref<288x32xbf16, #tpu.memory_space<vmem>>, %arg5: memref<800x84xbf16, #tpu.memory_space<vmem>>, %arg6: memref<1x84xf32, #tpu.memory_space<vmem>>, %arg7: memref<1x84xf32, #tpu.memory_space<vmem>>, %arg8: memref<1x1xf32, #tpu.memory_space<vmem>>, %arg9: memref<1x1x1xf32, #tpu.memory_space<vmem>>, %arg10: memref<176x16xf32, #tpu.memory_space<vmem>>, %arg11: memref<176x32xf32, #tpu.memory_space<vmem>>) attributes {dimension_semantics = [#tpu.dimension_semantics<parallel>], iteration_bounds = array<i64: 2>, scalar_prefetch = 0 : i64, scratch_operands = 2 : i64, tpu.core_type = #tpu.core_type<tc>, window_params = [{transform_indices = @transform_0, window_bounds = array<i64: 1, 1664, 196>}, {pipeline_mode = #tpu.pipeline_mode<synchronous>, transform_indices = @transform_1, window_bounds = array<i64: 196, 16>}, {pipeline_mode = #tpu.pipeline_mode<synchronous>, transform_indices = @transform_2, window_bounds = array<i64: 144, 32>}, {pipeline_mode = #tpu.pipeline_mode<synchronous>, transform_indices = @transform_3, window_bounds = array<i64: 288, 32>}, {pipeline_mode = #tpu.pipeline_mode<synchronous>, transform_indices = @transform_4, window_bounds = array<i64: 800, 84>}, {pipeline_mode = #tpu.pipeline_mode<synchronous>, transform_indices = @transform_5, window_bounds = array<i64: 1, 84>}, {pipeline_mode = #tpu.pipeline_mode<synchronous>, transform_indices = @transform_6, window_bounds = array<i64: 1, 84>}, {pipeline_mode = #tpu.pipeline_mode<synchronous>, transform_indices = @transform_7, window_bounds = array<i64: 1, 1>}, {transform_indices = @transform_8, window_bounds = array<i64: 1, 1, 1>}]} {
    %c0 = arith.constant 0 : index
    %c0_0 = arith.constant 0 : index
    %c0_1 = arith.constant 0 : index
    %0 = vector.load %arg1[%c0, %c0_0, %c0_1] : memref<1x1664x196xbf16, #tpu.memory_space<vmem>>, vector<1x1664x196xbf16>
    %1 = vector.shape_cast %0 : vector<1x1664x196xbf16> to vector<1664x196xbf16>
    %c0_2 = arith.constant 0 : index
    %c0_3 = arith.constant 0 : index
    %2 = vector.load %arg2[%c0_2, %c0_3] : memref<196x16xbf16, #tpu.memory_space<vmem>>, vector<196x16xbf16>
    %cst = arith.constant dense<0.000000e+00> : vector<1664x16xf32>
    %3 = tpu.matmul %1, %2, %cst {dimension_numbers = #tpu.dot_dimension_numbers<[1], [0], [0], [1], [0, 0, 1, 1], [], []>} : vector<1664x196xbf16>, vector<196x16xbf16>, vector<1664x16xf32> -> vector<1664x16xf32>
    %4 = vector.extract_strided_slice %3 {offsets = [0, 0], sizes = [100, 16], strides = [1, 1]} : vector<1664x16xf32> to vector<100x16xf32>
    %5 = vector.extract_strided_slice %3 {offsets = [104, 0], sizes = [100, 16], strides = [1, 1]} : vector<1664x16xf32> to vector<100x16xf32>
    %6 = arith.maximumf %4, %5 : vector<100x16xf32>
    %7 = vector.extract_strided_slice %3 {offsets = [208, 0], sizes = [100, 16], strides = [1, 1]} : vector<1664x16xf32> to vector<100x16xf32>
    %8 = arith.maximumf %6, %7 : vector<100x16xf32>
    %9 = vector.extract_strided_slice %3 {offsets = [312, 0], sizes = [100, 16], strides = [1, 1]} : vector<1664x16xf32> to vector<100x16xf32>
    %10 = arith.maximumf %8, %9 : vector<100x16xf32>
    %11 = vector.extract_strided_slice %3 {offsets = [416, 0], sizes = [100, 16], strides = [1, 1]} : vector<1664x16xf32> to vector<100x16xf32>
    %12 = arith.maximumf %10, %11 : vector<100x16xf32>
    %13 = vector.extract_strided_slice %3 {offsets = [520, 0], sizes = [100, 16], strides = [1, 1]} : vector<1664x16xf32> to vector<100x16xf32>
    %14 = arith.maximumf %12, %13 : vector<100x16xf32>
    %15 = vector.extract_strided_slice %3 {offsets = [624, 0], sizes = [100, 16], strides = [1, 1]} : vector<1664x16xf32> to vector<100x16xf32>
    %16 = arith.maximumf %14, %15 : vector<100x16xf32>
    %17 = vector.extract_strided_slice %3 {offsets = [728, 0], sizes = [100, 16], strides = [1, 1]} : vector<1664x16xf32> to vector<100x16xf32>
    %18 = arith.maximumf %16, %17 : vector<100x16xf32>
    %19 = vector.extract_strided_slice %3 {offsets = [832, 0], sizes = [100, 16], strides = [1, 1]} : vector<1664x16xf32> to vector<100x16xf32>
    %20 = arith.maximumf %18, %19 : vector<100x16xf32>
    %21 = vector.extract_strided_slice %3 {offsets = [936, 0], sizes = [100, 16], strides = [1, 1]} : vector<1664x16xf32> to vector<100x16xf32>
    %22 = arith.maximumf %20, %21 : vector<100x16xf32>
    %23 = vector.extract_strided_slice %3 {offsets = [1040, 0], sizes = [100, 16], strides = [1, 1]} : vector<1664x16xf32> to vector<100x16xf32>
    %24 = arith.maximumf %22, %23 : vector<100x16xf32>
    %25 = vector.extract_strided_slice %3 {offsets = [1144, 0], sizes = [100, 16], strides = [1, 1]} : vector<1664x16xf32> to vector<100x16xf32>
    %26 = arith.maximumf %24, %25 : vector<100x16xf32>
    %27 = vector.extract_strided_slice %3 {offsets = [1248, 0], sizes = [100, 16], strides = [1, 1]} : vector<1664x16xf32> to vector<100x16xf32>
    %28 = arith.maximumf %26, %27 : vector<100x16xf32>
    %29 = vector.extract_strided_slice %3 {offsets = [1352, 0], sizes = [100, 16], strides = [1, 1]} : vector<1664x16xf32> to vector<100x16xf32>
    %30 = arith.maximumf %28, %29 : vector<100x16xf32>
    %31 = vector.extract_strided_slice %3 {offsets = [1456, 0], sizes = [100, 16], strides = [1, 1]} : vector<1664x16xf32> to vector<100x16xf32>
    %32 = arith.maximumf %30, %31 : vector<100x16xf32>
    %33 = vector.extract_strided_slice %3 {offsets = [1560, 0], sizes = [100, 16], strides = [1, 1]} : vector<1664x16xf32> to vector<100x16xf32>
    %34 = arith.maximumf %32, %33 : vector<100x16xf32>
    %cst_4 = arith.constant 0.000000e+00 : f32
    %35 = vector.broadcast %cst_4 : f32 to vector<100x16xf32>
    %36 = arith.maximumf %34, %35 : vector<100x16xf32>
    %cst_5 = arith.constant 0.000000e+00 : f32
    %37 = vector.broadcast %cst_5 : f32 to vector<176x16xf32>
    %c0_6 = arith.constant 0 : index
    %c0_7 = arith.constant 0 : index
    %38 = vector.load %arg10[%c0_6, %c0_7] : memref<176x16xf32, #tpu.memory_space<vmem>>, vector<176x16xf32>
    tpu.vector_store %arg10[%c0_6, %c0_7], %37 {strides = array<i32>} : memref<176x16xf32, #tpu.memory_space<vmem>>, vector<176x16xf32>,
    %cst_8 = arith.constant 0.000000e+00 : f32
    %39 = vector.broadcast %cst_8 : f32 to vector<176x32xf32>
    %c0_9 = arith.constant 0 : index
    %c0_10 = arith.constant 0 : index
    %40 = vector.load %arg11[%c0_9, %c0_10] : memref<176x32xf32, #tpu.memory_space<vmem>>, vector<176x32xf32>
    tpu.vector_store %arg11[%c0_9, %c0_10], %39 {strides = array<i32>} : memref<176x32xf32, #tpu.memory_space<vmem>>, vector<176x32xf32>,
    %41 = vector.extract_strided_slice %36 {offsets = [0, 0], sizes = [10, 16], strides = [1, 1]} : vector<100x16xf32> to vector<10x16xf32>
    %c13 = arith.constant 13 : index
    %c0_11 = arith.constant 0 : index
    %42 = vector.load %arg10[%c13, %c0_11] : memref<176x16xf32, #tpu.memory_space<vmem>>, vector<10x16xf32>
    tpu.vector_store %arg10[%c13, %c0_11], %41 {strides = array<i32>} : memref<176x16xf32, #tpu.memory_space<vmem>>, vector<10x16xf32>,
    %43 = vector.extract_strided_slice %36 {offsets = [10, 0], sizes = [10, 16], strides = [1, 1]} : vector<100x16xf32> to vector<10x16xf32>
    %c25 = arith.constant 25 : index
    %c0_12 = arith.constant 0 : index
    %44 = vector.load %arg10[%c25, %c0_12] : memref<176x16xf32, #tpu.memory_space<vmem>>, vector<10x16xf32>
    tpu.vector_store %arg10[%c25, %c0_12], %43 {strides = array<i32>} : memref<176x16xf32, #tpu.memory_space<vmem>>, vector<10x16xf32>,
    %45 = vector.extract_strided_slice %36 {offsets = [20, 0], sizes = [10, 16], strides = [1, 1]} : vector<100x16xf32> to vector<10x16xf32>
    %c37 = arith.constant 37 : index
    %c0_13 = arith.constant 0 : index
    %46 = vector.load %arg10[%c37, %c0_13] : memref<176x16xf32, #tpu.memory_space<vmem>>, vector<10x16xf32>
    tpu.vector_store %arg10[%c37, %c0_13], %45 {strides = array<i32>} : memref<176x16xf32, #tpu.memory_space<vmem>>, vector<10x16xf32>,
    %47 = vector.extract_strided_slice %36 {offsets = [30, 0], sizes = [10, 16], strides = [1, 1]} : vector<100x16xf32> to vector<10x16xf32>
    %c49 = arith.constant 49 : index
    %c0_14 = arith.constant 0 : index
    %48 = vector.load %arg10[%c49, %c0_14] : memref<176x16xf32, #tpu.memory_space<vmem>>, vector<10x16xf32>
    tpu.vector_store %arg10[%c49, %c0_14], %47 {strides = array<i32>} : memref<176x16xf32, #tpu.memory_space<vmem>>, vector<10x16xf32>,
    %49 = vector.extract_strided_slice %36 {offsets = [40, 0], sizes = [10, 16], strides = [1, 1]} : vector<100x16xf32> to vector<10x16xf32>
    %c61 = arith.constant 61 : index
    %c0_15 = arith.constant 0 : index
    %50 = vector.load %arg10[%c61, %c0_15] : memref<176x16xf32, #tpu.memory_space<vmem>>, vector<10x16xf32>
    tpu.vector_store %arg10[%c61, %c0_15], %49 {strides = array<i32>} : memref<176x16xf32, #tpu.memory_space<vmem>>, vector<10x16xf32>,
    %51 = vector.extract_strided_slice %36 {offsets = [50, 0], sizes = [10, 16], strides = [1, 1]} : vector<100x16xf32> to vector<10x16xf32>
    %c73 = arith.constant 73 : index
    %c0_16 = arith.constant 0 : index
    %52 = vector.load %arg10[%c73, %c0_16] : memref<176x16xf32, #tpu.memory_space<vmem>>, vector<10x16xf32>
    tpu.vector_store %arg10[%c73, %c0_16], %51 {strides = array<i32>} : memref<176x16xf32, #tpu.memory_space<vmem>>, vector<10x16xf32>,
    %53 = vector.extract_strided_slice %36 {offsets = [60, 0], sizes = [10, 16], strides = [1, 1]} : vector<100x16xf32> to vector<10x16xf32>
    %c85 = arith.constant 85 : index
    %c0_17 = arith.constant 0 : index
    %54 = vector.load %arg10[%c85, %c0_17] : memref<176x16xf32, #tpu.memory_space<vmem>>, vector<10x16xf32>
    tpu.vector_store %arg10[%c85, %c0_17], %53 {strides = array<i32>} : memref<176x16xf32, #tpu.memory_space<vmem>>, vector<10x16xf32>,
    %55 = vector.extract_strided_slice %36 {offsets = [70, 0], sizes = [10, 16], strides = [1, 1]} : vector<100x16xf32> to vector<10x16xf32>
    %c97 = arith.constant 97 : index
    %c0_18 = arith.constant 0 : index
    %56 = vector.load %arg10[%c97, %c0_18] : memref<176x16xf32, #tpu.memory_space<vmem>>, vector<10x16xf32>
    tpu.vector_store %arg10[%c97, %c0_18], %55 {strides = array<i32>} : memref<176x16xf32, #tpu.memory_space<vmem>>, vector<10x16xf32>,
    %57 = vector.extract_strided_slice %36 {offsets = [80, 0], sizes = [10, 16], strides = [1, 1]} : vector<100x16xf32> to vector<10x16xf32>
    %c109 = arith.constant 109 : index
    %c0_19 = arith.constant 0 : index
    %58 = vector.load %arg10[%c109, %c0_19] : memref<176x16xf32, #tpu.memory_space<vmem>>, vector<10x16xf32>
    tpu.vector_store %arg10[%c109, %c0_19], %57 {strides = array<i32>} : memref<176x16xf32, #tpu.memory_space<vmem>>, vector<10x16xf32>,
    %59 = vector.extract_strided_slice %36 {offsets = [90, 0], sizes = [10, 16], strides = [1, 1]} : vector<100x16xf32> to vector<10x16xf32>
    %c121 = arith.constant 121 : index
    %c0_20 = arith.constant 0 : index
    %60 = vector.load %arg10[%c121, %c0_20] : memref<176x16xf32, #tpu.memory_space<vmem>>, vector<10x16xf32>
    tpu.vector_store %arg10[%c121, %c0_20], %59 {strides = array<i32>} : memref<176x16xf32, #tpu.memory_space<vmem>>, vector<10x16xf32>,
    %c0_21 = arith.constant 0 : index
    %c0_22 = arith.constant 0 : index
    %61 = vector.load %arg10[%c0_21, %c0_22] : memref<176x16xf32, #tpu.memory_space<vmem>>, vector<144x16xf32>
    %c1 = arith.constant 1 : index
    %c0_23 = arith.constant 0 : index
    %62 = vector.load %arg10[%c1, %c0_23] : memref<176x16xf32, #tpu.memory_space<vmem>>, vector<144x16xf32>
    %c2 = arith.constant 2 : index
    %c0_24 = arith.constant 0 : index
    %63 = vector.load %arg10[%c2, %c0_24] : memref<176x16xf32, #tpu.memory_space<vmem>>, vector<144x16xf32>
    %c12 = arith.constant 12 : index
    %c0_25 = arith.constant 0 : index
    %64 = vector.load %arg10[%c12, %c0_25] : memref<176x16xf32, #tpu.memory_space<vmem>>, vector<144x16xf32>
    %c13_26 = arith.constant 13 : index
    %c0_27 = arith.constant 0 : index
    %65 = vector.load %arg10[%c13_26, %c0_27] : memref<176x16xf32, #tpu.memory_space<vmem>>, vector<144x16xf32>
    %c14 = arith.constant 14 : index
    %c0_28 = arith.constant 0 : index
    %66 = vector.load %arg10[%c14, %c0_28] : memref<176x16xf32, #tpu.memory_space<vmem>>, vector<144x16xf32>
    %c24 = arith.constant 24 : index
    %c0_29 = arith.constant 0 : index
    %67 = vector.load %arg10[%c24, %c0_29] : memref<176x16xf32, #tpu.memory_space<vmem>>, vector<144x16xf32>
    %c25_30 = arith.constant 25 : index
    %c0_31 = arith.constant 0 : index
    %68 = vector.load %arg10[%c25_30, %c0_31] : memref<176x16xf32, #tpu.memory_space<vmem>>, vector<144x16xf32>
    %c26 = arith.constant 26 : index
    %c0_32 = arith.constant 0 : index
    %69 = vector.load %arg10[%c26, %c0_32] : memref<176x16xf32, #tpu.memory_space<vmem>>, vector<144x16xf32>
    %70 = tpu.concatenate %61, %62, %63, %64, %65, %66, %67, %68, %69 in 1 : vector<144x16xf32>, vector<144x16xf32>, vector<144x16xf32>, vector<144x16xf32>, vector<144x16xf32>, vector<144x16xf32>, vector<144x16xf32>, vector<144x16xf32>, vector<144x16xf32> -> vector<144x144xf32>
    %71 = arith.truncf %70 : vector<144x144xf32> to vector<144x144xbf16>
    %c0_33 = arith.constant 0 : index
    %c0_34 = arith.constant 0 : index
    %72 = vector.load %arg3[%c0_33, %c0_34] : memref<144x32xbf16, #tpu.memory_space<vmem>>, vector<144x32xbf16>
    %cst_35 = arith.constant dense<0.000000e+00> : vector<144x32xf32>
    %73 = tpu.matmul %71, %72, %cst_35 {dimension_numbers = #tpu.dot_dimension_numbers<[1], [0], [0], [1], [0, 0, 1, 1], [], []>} : vector<144x144xbf16>, vector<144x32xbf16>, vector<144x32xf32> -> vector<144x32xf32>
    %74 = tpu.iota {dimensions = array<i32: 0>} : vector<144x1xi32>
    %c12_i32 = arith.constant 12 : i32
    %c0_i32 = arith.constant 0 : i32
    %75 = arith.cmpi eq, %c12_i32, %c0_i32 : i32
    %c1_i32 = arith.constant 1 : i32
    %76 = arith.select %75, %c1_i32, %c12_i32 : i32
    %77 = vector.broadcast %76 : i32 to vector<144x1xi32>
    %78 = arith.remsi %74, %77 : vector<144x1xi32>
    %c0_i32_36 = arith.constant 0 : i32
    %79 = vector.broadcast %c0_i32_36 : i32 to vector<144x1xi32>
    %80 = arith.cmpi ne, %78, %79 : vector<144x1xi32>
    %c0_i32_37 = arith.constant 0 : i32
    %81 = vector.broadcast %c0_i32_37 : i32 to vector<144x1xi32>
    %82 = arith.cmpi slt, %78, %81 : vector<144x1xi32>
    %c0_i32_38 = arith.constant 0 : i32
    %83 = arith.cmpi slt, %76, %c0_i32_38 : i32
    %84 = vector.broadcast %83 : i1 to vector<144x1xi1>
    %85 = vector.broadcast %84 : vector<144x1xi1> to vector<144x1xi1>
    %86 = arith.xori %82, %85 : vector<144x1xi1>
    %87 = arith.andi %86, %80 : vector<144x1xi1>
    %88 = vector.broadcast %76 : i32 to vector<144x1xi32>
    %89 = arith.addi %78, %88 : vector<144x1xi32>
    %90 = arith.select %87, %89, %78 : vector<144x1xi1>, vector<144x1xi32>
    %c10_i32 = arith.constant 10 : i32
    %91 = vector.broadcast %c10_i32 : i32 to vector<144x1xi32>
    %92 = arith.cmpi slt, %90, %91 : vector<144x1xi32>
    %c120_i32 = arith.constant 120 : i32
    %93 = vector.broadcast %c120_i32 : i32 to vector<144x1xi32>
    %94 = arith.cmpi slt, %74, %93 : vector<144x1xi32>
    %95 = arith.andi %92, %94 : vector<144x1xi1>
    %cst_39 = arith.constant 1.000000e+00 : f32
    %cst_40 = arith.constant 0.000000e+00 : f32
    %96 = vector.broadcast %cst_39 : f32 to vector<144x1xf32>
    %97 = vector.broadcast %cst_40 : f32 to vector<144x1xf32>
    %98 = arith.select %95, %96, %97 : vector<144x1xi1>, vector<144x1xf32>
    %cst_41 = arith.constant 0.000000e+00 : f32
    %99 = vector.broadcast %cst_41 : f32 to vector<144x32xf32>
    %100 = arith.maximumf %73, %99 : vector<144x32xf32>
    %101 = vector.broadcast %98 : vector<144x1xf32> to vector<144x32xf32>
    %102 = arith.mulf %100, %101 : vector<144x32xf32>
    %c13_42 = arith.constant 13 : index
    %c0_43 = arith.constant 0 : index
    %103 = vector.load %arg11[%c13_42, %c0_43] : memref<176x32xf32, #tpu.memory_space<vmem>>, vector<144x32xf32>
    tpu.vector_store %arg11[%c13_42, %c0_43], %102 {strides = array<i32>} : memref<176x32xf32, #tpu.memory_space<vmem>>, vector<144x32xf32>,
    %c0_44 = arith.constant 0 : index
    %c0_45 = arith.constant 0 : index
    %104 = vector.load %arg11[%c0_44, %c0_45] : memref<176x32xf32, #tpu.memory_space<vmem>>, vector<144x32xf32>
    %c1_46 = arith.constant 1 : index
    %c0_47 = arith.constant 0 : index
    %105 = vector.load %arg11[%c1_46, %c0_47] : memref<176x32xf32, #tpu.memory_space<vmem>>, vector<144x32xf32>
    %c2_48 = arith.constant 2 : index
    %c0_49 = arith.constant 0 : index
    %106 = vector.load %arg11[%c2_48, %c0_49] : memref<176x32xf32, #tpu.memory_space<vmem>>, vector<144x32xf32>
    %c12_50 = arith.constant 12 : index
    %c0_51 = arith.constant 0 : index
    %107 = vector.load %arg11[%c12_50, %c0_51] : memref<176x32xf32, #tpu.memory_space<vmem>>, vector<144x32xf32>
    %c13_52 = arith.constant 13 : index
    %c0_53 = arith.constant 0 : index
    %108 = vector.load %arg11[%c13_52, %c0_53] : memref<176x32xf32, #tpu.memory_space<vmem>>, vector<144x32xf32>
    %c14_54 = arith.constant 14 : index
    %c0_55 = arith.constant 0 : index
    %109 = vector.load %arg11[%c14_54, %c0_55] : memref<176x32xf32, #tpu.memory_space<vmem>>, vector<144x32xf32>
    %c24_56 = arith.constant 24 : index
    %c0_57 = arith.constant 0 : index
    %110 = vector.load %arg11[%c24_56, %c0_57] : memref<176x32xf32, #tpu.memory_space<vmem>>, vector<144x32xf32>
    %c25_58 = arith.constant 25 : index
    %c0_59 = arith.constant 0 : index
    %111 = vector.load %arg11[%c25_58, %c0_59] : memref<176x32xf32, #tpu.memory_space<vmem>>, vector<144x32xf32>
    %c26_60 = arith.constant 26 : index
    %c0_61 = arith.constant 0 : index
    %112 = vector.load %arg11[%c26_60, %c0_61] : memref<176x32xf32, #tpu.memory_space<vmem>>, vector<144x32xf32>
    %113 = tpu.concatenate %104, %105, %106, %107, %108, %109, %110, %111, %112 in 1 : vector<144x32xf32>, vector<144x32xf32>, vector<144x32xf32>, vector<144x32xf32>, vector<144x32xf32>, vector<144x32xf32>, vector<144x32xf32>, vector<144x32xf32>, vector<144x32xf32> -> vector<144x288xf32>
    %114 = arith.truncf %113 : vector<144x288xf32> to vector<144x288xbf16>
    %c0_62 = arith.constant 0 : index
    %c0_63 = arith.constant 0 : index
    %115 = vector.load %arg4[%c0_62, %c0_63] : memref<288x32xbf16, #tpu.memory_space<vmem>>, vector<288x32xbf16>
    %cst_64 = arith.constant dense<0.000000e+00> : vector<144x32xf32>
    %116 = tpu.matmul %114, %115, %cst_64 {dimension_numbers = #tpu.dot_dimension_numbers<[1], [0], [0], [1], [0, 0, 1, 1], [], []>} : vector<144x288xbf16>, vector<288x32xbf16>, vector<144x32xf32> -> vector<144x32xf32>
    %117 = vector.extract_strided_slice %116 {offsets = [0, 0], sizes = [10, 32], strides = [1, 1]} : vector<144x32xf32> to vector<10x32xf32>
    %118 = vector.extract_strided_slice %116 {offsets = [12, 0], sizes = [10, 32], strides = [1, 1]} : vector<144x32xf32> to vector<10x32xf32>
    %119 = arith.maximumf %117, %118 : vector<10x32xf32>
    %120 = vector.extract_strided_slice %119 {offsets = [0, 0], sizes = [1, 32], strides = [1, 1]} : vector<10x32xf32> to vector<1x32xf32>
    %121 = vector.extract_strided_slice %119 {offsets = [1, 0], sizes = [1, 32], strides = [1, 1]} : vector<10x32xf32> to vector<1x32xf32>
    %122 = arith.maximumf %120, %121 : vector<1x32xf32>
    %123 = vector.extract_strided_slice %119 {offsets = [2, 0], sizes = [1, 32], strides = [1, 1]} : vector<10x32xf32> to vector<1x32xf32>
    %124 = vector.extract_strided_slice %119 {offsets = [3, 0], sizes = [1, 32], strides = [1, 1]} : vector<10x32xf32> to vector<1x32xf32>
    %125 = arith.maximumf %123, %124 : vector<1x32xf32>
    %126 = vector.extract_strided_slice %119 {offsets = [4, 0], sizes = [1, 32], strides = [1, 1]} : vector<10x32xf32> to vector<1x32xf32>
    %127 = vector.extract_strided_slice %119 {offsets = [5, 0], sizes = [1, 32], strides = [1, 1]} : vector<10x32xf32> to vector<1x32xf32>
    %128 = arith.maximumf %126, %127 : vector<1x32xf32>
    %129 = vector.extract_strided_slice %119 {offsets = [6, 0], sizes = [1, 32], strides = [1, 1]} : vector<10x32xf32> to vector<1x32xf32>
    %130 = vector.extract_strided_slice %119 {offsets = [7, 0], sizes = [1, 32], strides = [1, 1]} : vector<10x32xf32> to vector<1x32xf32>
    %131 = arith.maximumf %129, %130 : vector<1x32xf32>
    %132 = vector.extract_strided_slice %119 {offsets = [8, 0], sizes = [1, 32], strides = [1, 1]} : vector<10x32xf32> to vector<1x32xf32>
    %133 = vector.extract_strided_slice %119 {offsets = [9, 0], sizes = [1, 32], strides = [1, 1]} : vector<10x32xf32> to vector<1x32xf32>
    %134 = arith.maximumf %132, %133 : vector<1x32xf32>
    %135 = vector.extract_strided_slice %116 {offsets = [24, 0], sizes = [10, 32], strides = [1, 1]} : vector<144x32xf32> to vector<10x32xf32>
    %136 = vector.extract_strided_slice %116 {offsets = [36, 0], sizes = [10, 32], strides = [1, 1]} : vector<144x32xf32> to vector<10x32xf32>
    %137 = arith.maximumf %135, %136 : vector<10x32xf32>
    %138 = vector.extract_strided_slice %137 {offsets = [0, 0], sizes = [1, 32], strides = [1, 1]} : vector<10x32xf32> to vector<1x32xf32>
    %139 = vector.extract_strided_slice %137 {offsets = [1, 0], sizes = [1, 32], strides = [1, 1]} : vector<10x32xf32> to vector<1x32xf32>
    %140 = arith.maximumf %138, %139 : vector<1x32xf32>
    %141 = vector.extract_strided_slice %137 {offsets = [2, 0], sizes = [1, 32], strides = [1, 1]} : vector<10x32xf32> to vector<1x32xf32>
    %142 = vector.extract_strided_slice %137 {offsets = [3, 0], sizes = [1, 32], strides = [1, 1]} : vector<10x32xf32> to vector<1x32xf32>
    %143 = arith.maximumf %141, %142 : vector<1x32xf32>
    %144 = vector.extract_strided_slice %137 {offsets = [4, 0], sizes = [1, 32], strides = [1, 1]} : vector<10x32xf32> to vector<1x32xf32>
    %145 = vector.extract_strided_slice %137 {offsets = [5, 0], sizes = [1, 32], strides = [1, 1]} : vector<10x32xf32> to vector<1x32xf32>
    %146 = arith.maximumf %144, %145 : vector<1x32xf32>
    %147 = vector.extract_strided_slice %137 {offsets = [6, 0], sizes = [1, 32], strides = [1, 1]} : vector<10x32xf32> to vector<1x32xf32>
    %148 = vector.extract_strided_slice %137 {offsets = [7, 0], sizes = [1, 32], strides = [1, 1]} : vector<10x32xf32> to vector<1x32xf32>
    %149 = arith.maximumf %147, %148 : vector<1x32xf32>
    %150 = vector.extract_strided_slice %137 {offsets = [8, 0], sizes = [1, 32], strides = [1, 1]} : vector<10x32xf32> to vector<1x32xf32>
    %151 = vector.extract_strided_slice %137 {offsets = [9, 0], sizes = [1, 32], strides = [1, 1]} : vector<10x32xf32> to vector<1x32xf32>
    %152 = arith.maximumf %150, %151 : vector<1x32xf32>
    %153 = vector.extract_strided_slice %116 {offsets = [48, 0], sizes = [10, 32], strides = [1, 1]} : vector<144x32xf32> to vector<10x32xf32>
    %154 = vector.extract_strided_slice %116 {offsets = [60, 0], sizes = [10, 32], strides = [1, 1]} : vector<144x32xf32> to vector<10x32xf32>
    %155 = arith.maximumf %153, %154 : vector<10x32xf32>
    %156 = vector.extract_strided_slice %155 {offsets = [0, 0], sizes = [1, 32], strides = [1, 1]} : vector<10x32xf32> to vector<1x32xf32>
    %157 = vector.extract_strided_slice %155 {offsets = [1, 0], sizes = [1, 32], strides = [1, 1]} : vector<10x32xf32> to vector<1x32xf32>
    %158 = arith.maximumf %156, %157 : vector<1x32xf32>
    %159 = vector.extract_strided_slice %155 {offsets = [2, 0], sizes = [1, 32], strides = [1, 1]} : vector<10x32xf32> to vector<1x32xf32>
    %160 = vector.extract_strided_slice %155 {offsets = [3, 0], sizes = [1, 32], strides = [1, 1]} : vector<10x32xf32> to vector<1x32xf32>
    %161 = arith.maximumf %159, %160 : vector<1x32xf32>
    %162 = vector.extract_strided_slice %155 {offsets = [4, 0], sizes = [1, 32], strides = [1, 1]} : vector<10x32xf32> to vector<1x32xf32>
    %163 = vector.extract_strided_slice %155 {offsets = [5, 0], sizes = [1, 32], strides = [1, 1]} : vector<10x32xf32> to vector<1x32xf32>
    %164 = arith.maximumf %162, %163 : vector<1x32xf32>
    %165 = vector.extract_strided_slice %155 {offsets = [6, 0], sizes = [1, 32], strides = [1, 1]} : vector<10x32xf32> to vector<1x32xf32>
    %166 = vector.extract_strided_slice %155 {offsets = [7, 0], sizes = [1, 32], strides = [1, 1]} : vector<10x32xf32> to vector<1x32xf32>
    %167 = arith.maximumf %165, %166 : vector<1x32xf32>
    %168 = vector.extract_strided_slice %155 {offsets = [8, 0], sizes = [1, 32], strides = [1, 1]} : vector<10x32xf32> to vector<1x32xf32>
    %169 = vector.extract_strided_slice %155 {offsets = [9, 0], sizes = [1, 32], strides = [1, 1]} : vector<10x32xf32> to vector<1x32xf32>
    %170 = arith.maximumf %168, %169 : vector<1x32xf32>
    %171 = vector.extract_strided_slice %116 {offsets = [72, 0], sizes = [10, 32], strides = [1, 1]} : vector<144x32xf32> to vector<10x32xf32>
    %172 = vector.extract_strided_slice %116 {offsets = [84, 0], sizes = [10, 32], strides = [1, 1]} : vector<144x32xf32> to vector<10x32xf32>
    %173 = arith.maximumf %171, %172 : vector<10x32xf32>
    %174 = vector.extract_strided_slice %173 {offsets = [0, 0], sizes = [1, 32], strides = [1, 1]} : vector<10x32xf32> to vector<1x32xf32>
    %175 = vector.extract_strided_slice %173 {offsets = [1, 0], sizes = [1, 32], strides = [1, 1]} : vector<10x32xf32> to vector<1x32xf32>
    %176 = arith.maximumf %174, %175 : vector<1x32xf32>
    %177 = vector.extract_strided_slice %173 {offsets = [2, 0], sizes = [1, 32], strides = [1, 1]} : vector<10x32xf32> to vector<1x32xf32>
    %178 = vector.extract_strided_slice %173 {offsets = [3, 0], sizes = [1, 32], strides = [1, 1]} : vector<10x32xf32> to vector<1x32xf32>
    %179 = arith.maximumf %177, %178 : vector<1x32xf32>
    %180 = vector.extract_strided_slice %173 {offsets = [4, 0], sizes = [1, 32], strides = [1, 1]} : vector<10x32xf32> to vector<1x32xf32>
    %181 = vector.extract_strided_slice %173 {offsets = [5, 0], sizes = [1, 32], strides = [1, 1]} : vector<10x32xf32> to vector<1x32xf32>
    %182 = arith.maximumf %180, %181 : vector<1x32xf32>
    %183 = vector.extract_strided_slice %173 {offsets = [6, 0], sizes = [1, 32], strides = [1, 1]} : vector<10x32xf32> to vector<1x32xf32>
    %184 = vector.extract_strided_slice %173 {offsets = [7, 0], sizes = [1, 32], strides = [1, 1]} : vector<10x32xf32> to vector<1x32xf32>
    %185 = arith.maximumf %183, %184 : vector<1x32xf32>
    %186 = vector.extract_strided_slice %173 {offsets = [8, 0], sizes = [1, 32], strides = [1, 1]} : vector<10x32xf32> to vector<1x32xf32>
    %187 = vector.extract_strided_slice %173 {offsets = [9, 0], sizes = [1, 32], strides = [1, 1]} : vector<10x32xf32> to vector<1x32xf32>
    %188 = arith.maximumf %186, %187 : vector<1x32xf32>
    %189 = vector.extract_strided_slice %116 {offsets = [96, 0], sizes = [10, 32], strides = [1, 1]} : vector<144x32xf32> to vector<10x32xf32>
    %190 = vector.extract_strided_slice %116 {offsets = [108, 0], sizes = [10, 32], strides = [1, 1]} : vector<144x32xf32> to vector<10x32xf32>
    %191 = arith.maximumf %189, %190 : vector<10x32xf32>
    %192 = vector.extract_strided_slice %191 {offsets = [0, 0], sizes = [1, 32], strides = [1, 1]} : vector<10x32xf32> to vector<1x32xf32>
    %193 = vector.extract_strided_slice %191 {offsets = [1, 0], sizes = [1, 32], strides = [1, 1]} : vector<10x32xf32> to vector<1x32xf32>
    %194 = arith.maximumf %192, %193 : vector<1x32xf32>
    %195 = vector.extract_strided_slice %191 {offsets = [2, 0], sizes = [1, 32], strides = [1, 1]} : vector<10x32xf32> to vector<1x32xf32>
    %196 = vector.extract_strided_slice %191 {offsets = [3, 0], sizes = [1, 32], strides = [1, 1]} : vector<10x32xf32> to vector<1x32xf32>
    %197 = arith.maximumf %195, %196 : vector<1x32xf32>
    %198 = vector.extract_strided_slice %191 {offsets = [4, 0], sizes = [1, 32], strides = [1, 1]} : vector<10x32xf32> to vector<1x32xf32>
    %199 = vector.extract_strided_slice %191 {offsets = [5, 0], sizes = [1, 32], strides = [1, 1]} : vector<10x32xf32> to vector<1x32xf32>
    %200 = arith.maximumf %198, %199 : vector<1x32xf32>
    %201 = vector.extract_strided_slice %191 {offsets = [6, 0], sizes = [1, 32], strides = [1, 1]} : vector<10x32xf32> to vector<1x32xf32>
    %202 = vector.extract_strided_slice %191 {offsets = [7, 0], sizes = [1, 32], strides = [1, 1]} : vector<10x32xf32> to vector<1x32xf32>
    %203 = arith.maximumf %201, %202 : vector<1x32xf32>
    %204 = vector.extract_strided_slice %191 {offsets = [8, 0], sizes = [1, 32], strides = [1, 1]} : vector<10x32xf32> to vector<1x32xf32>
    %205 = vector.extract_strided_slice %191 {offsets = [9, 0], sizes = [1, 32], strides = [1, 1]} : vector<10x32xf32> to vector<1x32xf32>
    %206 = arith.maximumf %204, %205 : vector<1x32xf32>
    %207 = tpu.concatenate %122, %125, %128, %131, %134, %140, %143, %146, %149, %152, %158, %161, %164, %167, %170, %176 in 1 : vector<1x32xf32>, vector<1x32xf32>, vector<1x32xf32>, vector<1x32xf32>, vector<1x32xf32>, vector<1x32xf32>, vector<1x32xf32>, vector<1x32xf32>, vector<1x32xf32>, vector<1x32xf32>, vector<1x32xf32>, vector<1x32xf32>, vector<1x32xf32>, vector<1x32xf32>, vector<1x32xf32>, vector<1x32xf32> -> vector<1x512xf32>
    %208 = tpu.concatenate %179, %182, %185, %188, %194, %197, %200, %203, %206 in 1 : vector<1x32xf32>, vector<1x32xf32>, vector<1x32xf32>, vector<1x32xf32>, vector<1x32xf32>, vector<1x32xf32>, vector<1x32xf32>, vector<1x32xf32>, vector<1x32xf32> -> vector<1x288xf32>
    %209 = tpu.concatenate %207, %208 in 1 : vector<1x512xf32>, vector<1x288xf32> -> vector<1x800xf32>
    %cst_65 = arith.constant 0.000000e+00 : f32
    %210 = vector.broadcast %cst_65 : f32 to vector<1x800xf32>
    %211 = arith.maximumf %209, %210 : vector<1x800xf32>
    %212 = arith.truncf %211 : vector<1x800xf32> to vector<1x800xbf16>
    %c0_66 = arith.constant 0 : index
    %c0_67 = arith.constant 0 : index
    %213 = vector.load %arg5[%c0_66, %c0_67] : memref<800x84xbf16, #tpu.memory_space<vmem>>, vector<800x84xbf16>
    %cst_68 = arith.constant dense<0.000000e+00> : vector<1x84xf32>
    %214 = tpu.matmul %212, %213, %cst_68 {dimension_numbers = #tpu.dot_dimension_numbers<[1], [0], [0], [1], [0, 0, 1, 1], [], []>} : vector<1x800xbf16>, vector<800x84xbf16>, vector<1x84xf32> -> vector<1x84xf32>
    %c0_69 = arith.constant 0 : index
    %c0_70 = arith.constant 0 : index
    %215 = vector.load %arg6[%c0_69, %c0_70] : memref<1x84xf32, #tpu.memory_space<vmem>>, vector<1x84xf32>
    %216 = arith.addf %214, %215 : vector<1x84xf32>
    %cst_71 = arith.constant 0.000000e+00 : f32
    %217 = vector.broadcast %cst_71 : f32 to vector<1x84xf32>
    %218 = arith.maximumf %216, %217 : vector<1x84xf32>
    %c0_72 = arith.constant 0 : index
    %c0_73 = arith.constant 0 : index
    %219 = vector.load %arg7[%c0_72, %c0_73] : memref<1x84xf32, #tpu.memory_space<vmem>>, vector<1x84xf32>
    %220 = arith.mulf %218, %219 : vector<1x84xf32>
    %cst_74 = arith.constant dense<0.000000e+00> : vector<1xf32>
    %221 = vector.multi_reduction <add>, %220, %cst_74 [1] : vector<1x84xf32> to vector<1xf32>
    %222 = vector.shape_cast %221 : vector<1xf32> to vector<1x1xf32>
    %c0_75 = arith.constant 0 : index
    %c0_76 = arith.constant 0 : index
    %223 = vector.load %arg8[%c0_75, %c0_76] : memref<1x1xf32, #tpu.memory_space<vmem>>, vector<1x1xf32>
    %224 = arith.addf %222, %223 : vector<1x1xf32>
    %225 = vector.shape_cast %224 : vector<1x1xf32> to vector<1x1x1xf32>
    %c0_77 = arith.constant 0 : index
    %c0_78 = arith.constant 0 : index
    %c0_79 = arith.constant 0 : index
    %226 = vector.load %arg9[%c0_77, %c0_78, %c0_79] : memref<1x1x1xf32, #tpu.memory_space<vmem>>, vector<1x1x1xf32>
    tpu.vector_store %arg9[%c0_77, %c0_78, %c0_79], %225 {strides = array<i32>} : memref<1x1x1xf32, #tpu.memory_space<vmem>>, vector<1x1x1xf32>,
    return
  }
  func.func @transform_0(%arg0: i32) -> (i32, i32, i32) {
    %c0_i32 = arith.constant 0 : i32
    %c0_i32_0 = arith.constant 0 : i32
    %c0_i32_1 = arith.constant 0 : i32
    return %arg0, %c0_i32, %c0_i32_0 : i32, i32, i32
  }
  func.func @transform_1(%arg0: i32) -> (i32, i32) {
    %c0_i32 = arith.constant 0 : i32
    %c0_i32_0 = arith.constant 0 : i32
    %c0_i32_1 = arith.constant 0 : i32
    return %c0_i32, %c0_i32_0 : i32, i32
  }
  func.func @transform_2(%arg0: i32) -> (i32, i32) {
    %c0_i32 = arith.constant 0 : i32
    %c0_i32_0 = arith.constant 0 : i32
    %c0_i32_1 = arith.constant 0 : i32
    return %c0_i32, %c0_i32_0 : i32, i32
  }
  func.func @transform_3(%arg0: i32) -> (i32, i32) {
    %c0_i32 = arith.constant 0 : i32
    %c0_i32_0 = arith.constant 0 : i32
    %c0_i32_1 = arith.constant 0 : i32
    return %c0_i32, %c0_i32_0 : i32, i32
  }
  func.func @transform_4(%arg0: i32) -> (i32, i32) {
    %c0_i32 = arith.constant 0 : i32
    %c0_i32_0 = arith.constant 0 : i32
    %c0_i32_1 = arith.constant 0 : i32
    return %c0_i32, %c0_i32_0 : i32, i32
  }
  func.func @transform_5(%arg0: i32) -> (i32, i32) {
    %c0_i32 = arith.constant 0 : i32
    %c0_i32_0 = arith.constant 0 : i32
    %c0_i32_1 = arith.constant 0 : i32
    return %c0_i32, %c0_i32_0 : i32, i32
  }
  func.func @transform_6(%arg0: i32) -> (i32, i32) {
    %c0_i32 = arith.constant 0 : i32
    %c0_i32_0 = arith.constant 0 : i32
    %c0_i32_1 = arith.constant 0 : i32
    return %c0_i32, %c0_i32_0 : i32, i32
  }
  func.func @transform_7(%arg0: i32) -> (i32, i32) {
    %c0_i32 = arith.constant 0 : i32
    %c0_i32_0 = arith.constant 0 : i32
    %c0_i32_1 = arith.constant 0 : i32
    return %c0_i32, %c0_i32_0 : i32, i32
  }
  func.func @transform_8(%arg0: i32) -> (i32, i32, i32) {
    %c0_i32 = arith.constant 0 : i32
    %c0_i32_0 = arith.constant 0 : i32
    %c0_i32_1 = arith.constant 0 : i32
    return %arg0, %c0_i32, %c0_i32_0 : i32, i32, i32
  }
}

</mosaic_0001>

<llo_original>
// kernel: basicnet_forward.1
$region0: #{basicnet_forward.1}
  #allocation0 [shape = 'u32[]', space=smem, size = 0x4, offset = 0x4, fixed_abs, tag = 'smem constant byte address 0x4 - core index']
  #allocation1 [shape = 'u32[144,128]{1,0:T(1,128)}', space=vmem, size = 0x12000, scoped, tag = 'internal scratch']
  #allocation2 [shape = 'f32[176,16]{1,0:T(8,128)}', space=vmem, size = 0x16000, scoped, tag = 'scratch operand']
  #allocation3 [shape = 'f32[176,32]{1,0:T(8,128)}', space=vmem, size = 0x16000, scoped, tag = 'scratch operand']
  #allocation4 [shape = 'f32[1,1]{1,0:T(1,128)S(1)}', space=vmem, size = 0x200, scoped, tag = 'scoped memory for basicnet_forward.1']
  %s0 = inlined_call_operand.vmem [shape: bf16[2,1664,196], index: 0, kind: input, shape index: {}]
  %s1 = inlined_call_operand.vmem [shape: bf16[196,16], index: 1, kind: input, shape index: {}]
  %s2 = inlined_call_operand.vmem [shape: bf16[144,32], index: 2, kind: input, shape index: {}]
  %s3 = inlined_call_operand.vmem [shape: bf16[288,32], index: 3, kind: input, shape index: {}]
  %s4 = inlined_call_operand.vmem [shape: bf16[800,84], index: 4, kind: input, shape index: {}]
  %s5 = inlined_call_operand.vmem [shape: f32[1,84], index: 5, kind: input, shape index: {}]
  %s6 = inlined_call_operand.vmem [shape: f32[1,84], index: 6, kind: input, shape index: {}]
  %s7 = inlined_call_operand.<no memory space> [shape: f32[1,1], index: 7, kind: input, shape index: {}]
  %s8 = inlined_call_operand.vmem [shape: f32[2,1,1], index: 8, kind: output, shape index: {}]
  %s9 = sld [smem:[#allocation0]]
  $region65: #{basicnet_forward.1} parent=0
    _
  %s11 = ssub.s32 1, %s9
  %s12 = scalar_select 0, %s11, %s9
  %v13 = vstv %s7
  %14 = vst [vmem:[#allocation4] sm:$0x1] %v13
  loop: start=0, step=1, limit=4
  $region2: #{basicnet_forward.1} parent=0 // loop_pre_header
    _
  $region3: #{basicnet_forward.1} parent=0 // loop_header
    %s16 = sphi 0, %s20
    %p17 = scmp.ge.s32.totalorder %s16, 4
    %s26 = sphi 0, %s28
    %s29 = sphi 0, %s26
    %s30 = sphi 0, %s29
    %s46 = sphi 0, %s30
    %s50 = sphi 0, %s50
    %s52 = sphi 0, %s50
    %s53 = sphi 0, %s52
    %s67 = sphi 0, %s53
    %s71 = sphi 0, %s71
    %s73 = sphi 0, %s71
    %s74 = sphi 0, %s73
    %s88 = sphi 0, %s74
    %s92 = sphi 0, %s92
    %s94 = sphi 0, %s92
    %s95 = sphi 0, %s94
    %s109 = sphi 0, %s95
    %s113 = sphi 0, %s113
    %s115 = sphi 0, %s113
    %s116 = sphi 0, %s115
    %s130 = sphi 0, %s116
    %s134 = sphi 0, %s134
    %s136 = sphi 0, %s134
    %s137 = sphi 0, %s136
    %s151 = sphi 0, %s137
    %s155 = sphi 0, %s155
    %s157 = sphi 0, %s155
    %s158 = sphi 0, %s157
    %s172 = sphi 0, %s158
    %s176 = sphi 0, %s176
    %s178 = sphi 0, %s176
    %s179 = sphi 0, %s178
    %s193 = sphi 0, %s179
    %s199 = sphi 0, %s201
    %s202 = sphi 0, %s199
    %s203 = sphi 0, %s202
    %s219 = sphi 0, %s203
  $region4: #{basicnet_forward.1} parent=0 // loop_header_branch
    %19 = sbr.rel (%p17) target = $region8
  $region5: #{basicnet_forward.1} parent=0 // loop_body
    %s21 = ssub.s32 %s16, 1
    %s22 = ssub.s32 %s16, 2
    %s23 = sadd.s32 %s16, 1
    %s24 = ssub.s32 %s16, %s23
    %p25 = scmp.eq.s32.totalorder %s24, 0
    %s27 = sadd.s32 %s26, 1
    %s28 = scalar_select %p25, %s26, %s27
    %p31 = pneg %p25
    %p32 = scmp.eq.s32.totalorder %s16, 1
    %p33 = por %p31, %p32
    %p34 = scmp.ne.s32.totalorder %s26, %s29
    %p35 = scmp.eq.s32.totalorder %s16, 0
    %p36 = por %p34, %p35
    %p37 = scmp.ne.s32.totalorder %s26, %s29
    %p38 = scmp.eq.s32.totalorder %s21, 1
    %p39 = por %p37, %p38
    %p40 = scmp.ne.s32.totalorder %s29, %s30
    %p41 = scmp.eq.s32.totalorder %s21, 0
    %p42 = por %p40, %p41
    %p43 = scmp.ne.s32.totalorder %s29, %s30
    %p44 = scmp.eq.s32.totalorder %s22, 1
    %p45 = por %p43, %p44
    %p47 = scmp.ne.s32.totalorder %s30, %s46
    %p48 = scmp.eq.s32.totalorder %s22, 0
    %p49 = por %p47, %p48
    %s51 = sadd.s32 %s50, 1
    %p54 = scmp.eq.s32.totalorder %s16, 1
    %p55 = scmp.ne.s32.totalorder %s50, %s52
    %p56 = scmp.eq.s32.totalorder %s16, 0
    %p57 = por %p55, %p56
    %p58 = scmp.ne.s32.totalorder %s50, %s52
    %p59 = scmp.eq.s32.totalorder %s21, 1
    %p60 = por %p58, %p59
    %p61 = scmp.ne.s32.totalorder %s52, %s53
    %p62 = scmp.eq.s32.totalorder %s21, 0
    %p63 = por %p61, %p62
    %p64 = scmp.ne.s32.totalorder %s52, %s53
    %p65 = scmp.eq.s32.totalorder %s22, 1
    %p66 = por %p64, %p65
    %p68 = scmp.ne.s32.totalorder %s53, %s67
    %p69 = scmp.eq.s32.totalorder %s22, 0
    %p70 = por %p68, %p69
    %s72 = sadd.s32 %s71, 1
    %p75 = scmp.eq.s32.totalorder %s16, 1
    %p76 = scmp.ne.s32.totalorder %s71, %s73
    %p77 = scmp.eq.s32.totalorder %s16, 0
    %p78 = por %p76, %p77
    %p79 = scmp.ne.s32.totalorder %s71, %s73
    %p80 = scmp.eq.s32.totalorder %s21, 1
    %p81 = por %p79, %p80
    %p82 = scmp.ne.s32.totalorder %s73, %s74
    %p83 = scmp.eq.s32.totalorder %s21, 0
    %p84 = por %p82, %p83
    %p85 = scmp.ne.s32.totalorder %s73, %s74
    %p86 = scmp.eq.s32.totalorder %s22, 1
    %p87 = por %p85, %p86
    %p89 = scmp.ne.s32.totalorder %s74, %s88
    %p90 = scmp.eq.s32.totalorder %s22, 0
    %p91 = por %p89, %p90
    %s93 = sadd.s32 %s92, 1
    %p96 = scmp.eq.s32.totalorder %s16, 1
    %p97 = scmp.ne.s32.totalorder %s92, %s94
    %p98 = scmp.eq.s32.totalorder %s16, 0
    %p99 = por %p97, %p98
    %p100 = scmp.ne.s32.totalorder %s92, %s94
    %p101 = scmp.eq.s32.totalorder %s21, 1
    %p102 = por %p100, %p101
    %p103 = scmp.ne.s32.totalorder %s94, %s95
    %p104 = scmp.eq.s32.totalorder %s21, 0
    %p105 = por %p103, %p104
    %p106 = scmp.ne.s32.totalorder %s94, %s95
    %p107 = scmp.eq.s32.totalorder %s22, 1
    %p108 = por %p106, %p107
    %p110 = scmp.ne.s32.totalorder %s95, %s109
    %p111 = scmp.eq.s32.totalorder %s22, 0
    %p112 = por %p110, %p111
    %s114 = sadd.s32 %s113, 1
    %p117 = scmp.eq.s32.totalorder %s16, 1
    %p118 = scmp.ne.s32.totalorder %s113, %s115
    %p119 = scmp.eq.s32.totalorder %s16, 0
    %p120 = por %p118, %p119
    %p121 = scmp.ne.s32.totalorder %s113, %s115
    %p122 = scmp.eq.s32.totalorder %s21, 1
    %p123 = por %p121, %p122
    %p124 = scmp.ne.s32.totalorder %s115, %s116
    %p125 = scmp.eq.s32.totalorder %s21, 0
    %p126 = por %p124, %p125
    %p127 = scmp.ne.s32.totalorder %s115, %s116
    %p128 = scmp.eq.s32.totalorder %s22, 1
    %p129 = por %p127, %p128
    %p131 = scmp.ne.s32.totalorder %s116, %s130
    %p132 = scmp.eq.s32.totalorder %s22, 0
    %p133 = por %p131, %p132
    %s135 = sadd.s32 %s134, 1
    %p138 = scmp.eq.s32.totalorder %s16, 1
    %p139 = scmp.ne.s32.totalorder %s134, %s136
    %p140 = scmp.eq.s32.totalorder %s16, 0
    %p141 = por %p139, %p140
    %p142 = scmp.ne.s32.totalorder %s134, %s136
    %p143 = scmp.eq.s32.totalorder %s21, 1
    %p144 = por %p142, %p143
    %p145 = scmp.ne.s32.totalorder %s136, %s137
    %p146 = scmp.eq.s32.totalorder %s21, 0
    %p147 = por %p145, %p146
    %p148 = scmp.ne.s32.totalorder %s136, %s137
    %p149 = scmp.eq.s32.totalorder %s22, 1
    %p150 = por %p148, %p149
    %p152 = scmp.ne.s32.totalorder %s137, %s151
    %p153 = scmp.eq.s32.totalorder %s22, 0
    %p154 = por %p152, %p153
    %s156 = sadd.s32 %s155, 1
    %p159 = scmp.eq.s32.totalorder %s16, 1
    %p160 = scmp.ne.s32.totalorder %s155, %s157
    %p161 = scmp.eq.s32.totalorder %s16, 0
    %p162 = por %p160, %p161
    %p163 = scmp.ne.s32.totalorder %s155, %s157
    %p164 = scmp.eq.s32.totalorder %s21, 1
    %p165 = por %p163, %p164
    %p166 = scmp.ne.s32.totalorder %s157, %s158
    %p167 = scmp.eq.s32.totalorder %s21, 0
    %p168 = por %p166, %p167
    %p169 = scmp.ne.s32.totalorder %s157, %s158
    %p170 = scmp.eq.s32.totalorder %s22, 1
    %p171 = por %p169, %p170
    %p173 = scmp.ne.s32.totalorder %s158, %s172
    %p174 = scmp.eq.s32.totalorder %s22, 0
    %p175 = por %p173, %p174
    %s177 = sadd.s32 %s176, 1
    %p180 = scmp.eq.s32.totalorder %s16, 1
    %p181 = scmp.ne.s32.totalorder %s176, %s178
    %p182 = scmp.eq.s32.totalorder %s16, 0
    %p183 = por %p181, %p182
    %p184 = scmp.ne.s32.totalorder %s176, %s178
    %p185 = scmp.eq.s32.totalorder %s21, 1
    %p186 = por %p184, %p185
    %p187 = scmp.ne.s32.totalorder %s178, %s179
    %p188 = scmp.eq.s32.totalorder %s21, 0
    %p189 = por %p187, %p188
    %p190 = scmp.ne.s32.totalorder %s178, %s179
    %p191 = scmp.eq.s32.totalorder %s22, 1
    %p192 = por %p190, %p191
    %p194 = scmp.ne.s32.totalorder %s179, %s193
    %p195 = scmp.eq.s32.totalorder %s22, 0
    %p196 = por %p194, %p195
    %s197 = ssub.s32 %s16, %s23
    %p198 = scmp.eq.s32.totalorder %s197, 0
    %s200 = sadd.s32 %s199, 1
    %s201 = scalar_select %p198, %s199, %s200
    %p204 = pneg %p198
    %p205 = scmp.eq.s32.totalorder %s16, 1
    %p206 = por %p204, %p205
    %p207 = scmp.ne.s32.totalorder %s199, %s202
    %p208 = scmp.eq.s32.totalorder %s16, 0
    %p209 = por %p207, %p208
    %p210 = scmp.ne.s32.totalorder %s199, %s202
    %p211 = scmp.eq.s32.totalorder %s21, 1
    %p212 = por %p210, %p211
    %p213 = scmp.ne.s32.totalorder %s202, %s203
    %p214 = scmp.eq.s32.totalorder %s21, 0
    %p215 = por %p213, %p214
    %p216 = scmp.ne.s32.totalorder %s202, %s203
    %p217 = scmp.eq.s32.totalorder %s22, 1
    %p218 = por %p216, %p217
    %p220 = scmp.ne.s32.totalorder %s203, %s219
    %p221 = scmp.eq.s32.totalorder %s22, 0
    %p222 = por %p220, %p221
    %p223 = scmp.le.s32.totalorder 1, %s16
    %p224 = scmp.lt.s32.totalorder %s16, 3
    %p225 = pnand %p223, %p224
    %p226 = pneg %p225
    // Predicated region
    $region9: #{basicnet_forward.1} parent=5 // pred_check
      _
    $region10: #{basicnet_forward.1} parent=5 // pred_check_branch
      %228 = sbr.rel (%p225) target = $region12
    $region11: #{basicnet_forward.1} parent=5 // pred_region
      %s229 = ssub.s32 %s16, 1
      // Predicated region
      $region13: #{basicnet_forward.1} parent=11 // pred_check
        %p230 = pneg %p63
      $region14: #{basicnet_forward.1} parent=11 // pred_check_branch
        %232 = sbr.rel (%p230) target = $region16
      $region15: #{basicnet_forward.1} parent=11 // pred_region
        _
      $region16: #{basicnet_forward.1} parent=11 // pred_fallthru
        _
      // Predicated region
      $region17: #{basicnet_forward.1} parent=11 // pred_check
        %p233 = pneg %p84
      $region18: #{basicnet_forward.1} parent=11 // pred_check_branch
        %235 = sbr.rel (%p233) target = $region20
      $region19: #{basicnet_forward.1} parent=11 // pred_region
        _
      $region20: #{basicnet_forward.1} parent=11 // pred_fallthru
        _
      // Predicated region
      $region21: #{basicnet_forward.1} parent=11 // pred_check
        %p236 = pneg %p105
      $region22: #{basicnet_forward.1} parent=11 // pred_check_branch
        %238 = sbr.rel (%p236) target = $region24
      $region23: #{basicnet_forward.1} parent=11 // pred_region
        _
      $region24: #{basicnet_forward.1} parent=11 // pred_fallthru
        _
      // Predicated region
      $region25: #{basicnet_forward.1} parent=11 // pred_check
        %p239 = pneg %p126
      $region26: #{basicnet_forward.1} parent=11 // pred_check_branch
        %241 = sbr.rel (%p239) target = $region28
      $region27: #{basicnet_forward.1} parent=11 // pred_region
        _
      $region28: #{basicnet_forward.1} parent=11 // pred_fallthru
        _
      // Predicated region
      $region29: #{basicnet_forward.1} parent=11 // pred_check
        %p242 = pneg %p147
      $region30: #{basicnet_forward.1} parent=11 // pred_check_branch
        %244 = sbr.rel (%p242) target = $region32
      $region31: #{basicnet_forward.1} parent=11 // pred_region
        _
      $region32: #{basicnet_forward.1} parent=11 // pred_fallthru
        _
      // Predicated region
      $region33: #{basicnet_forward.1} parent=11 // pred_check
        %p245 = pneg %p168
      $region34: #{basicnet_forward.1} parent=11 // pred_check_branch
        %247 = sbr.rel (%p245) target = $region36
      $region35: #{basicnet_forward.1} parent=11 // pred_region
        _
      $region36: #{basicnet_forward.1} parent=11 // pred_fallthru
        _
      // Predicated region
      $region37: #{basicnet_forward.1} parent=11 // pred_check
        %p248 = pneg %p189
      $region38: #{basicnet_forward.1} parent=11 // pred_check_branch
        %250 = sbr.rel (%p248) target = $region40
      $region39: #{basicnet_forward.1} parent=11 // pred_region
        _
      $region40: #{basicnet_forward.1} parent=11 // pred_fallthru
        _
    $region12: #{basicnet_forward.1} parent=5 // pred_fallthru
      _
    %p251 = scmp.lt.s32.totalorder %s16, 2
    // Predicated region
    $region41: #{basicnet_forward.1} parent=5 // pred_check
      %p252 = pneg %p251
    $region42: #{basicnet_forward.1} parent=5 // pred_check_branch
      %254 = sbr.rel (%p252) target = $region44
    $region43: #{basicnet_forward.1} parent=5 // pred_region
      // Predicated region
      $region45: #{basicnet_forward.1} parent=43 // pred_check
        %p255 = pneg %p36
      $region46: #{basicnet_forward.1} parent=43 // pred_check_branch
        %257 = sbr.rel (%p255) target = $region48
      $region47: #{basicnet_forward.1} parent=43 // pred_region
        %p258 = scmp.lt.s32.totalorder %s16, 1
        %s259 = scalar_select %p258, %s16, 1
        %s260 = smul.addr %s259, 416
        %s261 = smul.addr %s260, 4
        %s262 = scalar_lea.vmem %s0, %s261
      $region48: #{basicnet_forward.1} parent=43 // pred_fallthru
        _
    $region44: #{basicnet_forward.1} parent=5 // pred_fallthru
      _
    %p263 = scmp.le.s32.totalorder 1, %s16
    %p264 = scmp.lt.s32.totalorder %s16, 3
    %p265 = pnand %p263, %p264
    %p266 = pneg %p265
    // Predicated region
    $region49: #{basicnet_forward.1} parent=5 // pred_check
      _
    $region50: #{basicnet_forward.1} parent=5 // pred_check_branch
      %268 = sbr.rel (%p265) target = $region52
    $region51: #{basicnet_forward.1} parent=5 // pred_region
      %s269 = ssub.s32 %s16, 1
      %p270 = scmp.lt.s32.totalorder %s21, 1
      %s271 = scalar_select %p270, %s21, 1
      %s272 = smul.addr %s271, 416
      %s273 = smul.addr %s272, 4
      %s274 = scalar_lea.vmem %s0, %s273
      %p275 = pneg %p42
      %p276 = pneg %p39
      %p277 = pneg %p63
      %p278 = pneg %p60
      %p279 = pneg %p84
      %p280 = pneg %p81
      %p281 = pneg %p105
      %p282 = pneg %p102
      %p283 = pneg %p126
      %p284 = pneg %p123
      %p285 = pneg %p147
      %p286 = pneg %p144
      %p287 = pneg %p168
      %p288 = pneg %p165
      %p289 = pneg %p189
      %p290 = pneg %p186
      %p291 = pneg %p215
      %p292 = pneg %p212
      %p293 = scmp.lt.s32.totalorder %s21, 1
      %s294 = scalar_select %p293, %s21, 1
      %s295 = scalar_lea.vmem %s8, %s294
      %p296 = scmp.lt.s32.totalorder %s21, 1
      %s297 = scalar_select %p296, %s21, 1
      %s298 = smul.addr %s297, 416
      %s299 = smul.addr %s298, 4
      %s300 = scalar_lea.vmem %s0, %s299
      %p301 = scmp.lt.s32.totalorder %s21, 1
      %s302 = scalar_select %p301, %s21, 1
      %s303 = scalar_lea.vmem %s8, %s302
      %v305 = vld [vmem:[%s300] sm:$0xff]
      %v306 = vld [vmem:[%s300 + $0x8] sm:$0xff]
      %v307 = vld [vmem:[%s300 + $0x10] sm:$0xff]
      %v308 = vld [vmem:[%s300 + $0x18] sm:$0xff]
      %v309 = vld [vmem:[%s300 + $0x20] sm:$0xff]
      %v310 = vld [vmem:[%s300 + $0x28] sm:$0xff]
      %v311 = vld [vmem:[%s300 + $0x30] sm:$0xff]
      %v312 = vld [vmem:[%s300 + $0x38] sm:$0xff]
      %v313 = vld [vmem:[%s300 + $0x40] sm:$0xff]
      %v314 = vld [vmem:[%s300 + $0x48] sm:$0xff]
      %v315 = vld [vmem:[%s300 + $0x50] sm:$0xff]
      %v316 = vld [vmem:[%s300 + $0x58] sm:$0xff]
      %v317 = vld [vmem:[%s300 + $0x60] sm:$0xff]
      %v318 = vld [vmem:[%s300 + $0x68] sm:$0xff]
      %v319 = vld [vmem:[%s300 + $0x70] sm:$0xff]
      %v320 = vld [vmem:[%s300 + $0x78] sm:$0xff]
      %v321 = vld [vmem:[%s300 + $0x80] sm:$0xff]
      %v322 = vld [vmem:[%s300 + $0x88] sm:$0xff]
      %v323 = vld [vmem:[%s300 + $0x90] sm:$0xff]
      %v324 = vld [vmem:[%s300 + $0x98] sm:$0xff]
      %v325 = vld [vmem:[%s300 + $0xa0] sm:$0xff]
      %v326 = vld [vmem:[%s300 + $0xa8] sm:$0xff]
      %v327 = vld [vmem:[%s300 + $0xb0] sm:$0xff]
      %v328 = vld [vmem:[%s300 + $0xb8] sm:$0xff]
      %v329 = vld [vmem:[%s300 + $0xc0] sm:$0xff]
      %v330 = vld [vmem:[%s300 + $0xc8] sm:$0xff]
      %v331 = vld [vmem:[%s300 + $0xd0] sm:$0xff]
      %v332 = vld [vmem:[%s300 + $0xd8] sm:$0xff]
      %v333 = vld [vmem:[%s300 + $0xe0] sm:$0xff]
      %v334 = vld [vmem:[%s300 + $0xe8] sm:$0xff]
      %v335 = vld [vmem:[%s300 + $0xf0] sm:$0xff]
      %v336 = vld [vmem:[%s300 + $0xf8] sm:$0xff]
      %v337 = vld [vmem:[%s300 + $0x100] sm:$0xff]
      %v338 = vld [vmem:[%s300 + $0x108] sm:$0xff]
      %v339 = vld [vmem:[%s300 + $0x110] sm:$0xff]
      %v340 = vld [vmem:[%s300 + $0x118] sm:$0xff]
      %v341 = vld [vmem:[%s300 + $0x120] sm:$0xff]
      %v342 = vld [vmem:[%s300 + $0x128] sm:$0xff]
      %v343 = vld [vmem:[%s300 + $0x130] sm:$0xff]
      %v344 = vld [vmem:[%s300 + $0x138] sm:$0xff]
      %v345 = vld [vmem:[%s300 + $0x140] sm:$0xff]
      %v346 = vld [vmem:[%s300 + $0x148] sm:$0xff]
      %v347 = vld [vmem:[%s300 + $0x150] sm:$0xff]
      %v348 = vld [vmem:[%s300 + $0x158] sm:$0xff]
      %v349 = vld [vmem:[%s300 + $0x160] sm:$0xff]
      %v350 = vld [vmem:[%s300 + $0x168] sm:$0xff]
      %v351 = vld [vmem:[%s300 + $0x170] sm:$0xff]
      %v352 = vld [vmem:[%s300 + $0x178] sm:$0xff]
      %v353 = vld [vmem:[%s300 + $0x180] sm:$0xff]
      %v354 = vld [vmem:[%s300 + $0x188] sm:$0xff]
      %v355 = vld [vmem:[%s300 + $0x190] sm:$0xff]
      %v356 = vld [vmem:[%s300 + $0x198] sm:$0xff]
      %v357 = vld [vmem:[%s300 + $0x1a0] sm:$0xff]
      %v358 = vld [vmem:[%s300 + $0x1a8] sm:$0xff]
      %v359 = vld [vmem:[%s300 + $0x1b0] sm:$0xff]
      %v360 = vld [vmem:[%s300 + $0x1b8] sm:$0xff]
      %v361 = vld [vmem:[%s300 + $0x1c0] sm:$0xff]
      %v362 = vld [vmem:[%s300 + $0x1c8] sm:$0xff]
      %v363 = vld [vmem:[%s300 + $0x1d0] sm:$0xff]
      %v364 = vld [vmem:[%s300 + $0x1d8] sm:$0xff]
      %v365 = vld [vmem:[%s300 + $0x1e0] sm:$0xff]
      %v366 = vld [vmem:[%s300 + $0x1e8] sm:$0xff]
      %v367 = vld [vmem:[%s300 + $0x1f0] sm:$0xff]
      %v368 = vld [vmem:[%s300 + $0x1f8] sm:$0xff]
      %v369 = vld [vmem:[%s300 + $0x200] sm:$0xff]
      %v370 = vld [vmem:[%s300 + $0x208] sm:$0xff]
      %v371 = vld [vmem:[%s300 + $0x210] sm:$0xff]
      %v372 = vld [vmem:[%s300 + $0x218] sm:$0xff]
      %v373 = vld [vmem:[%s300 + $0x220] sm:$0xff]
      %v374 = vld [vmem:[%s300 + $0x228] sm:$0xff]
      %v375 = vld [vmem:[%s300 + $0x230] sm:$0xff]
      %v376 = vld [vmem:[%s300 + $0x238] sm:$0xff]
      %v377 = vld [vmem:[%s300 + $0x240] sm:$0xff]
      %v378 = vld [vmem:[%s300 + $0x248] sm:$0xff]
      %v379 = vld [vmem:[%s300 + $0x250] sm:$0xff]
      %v380 = vld [vmem:[%s300 + $0x258] sm:$0xff]
      %v381 = vld [vmem:[%s300 + $0x260] sm:$0xff]
      %v382 = vld [vmem:[%s300 + $0x268] sm:$0xff]
      %v383 = vld [vmem:[%s300 + $0x270] sm:$0xff]
      %v384 = vld [vmem:[%s300 + $0x278] sm:$0xff]
      %v385 = vld [vmem:[%s300 + $0x280] sm:$0xff]
      %v386 = vld [vmem:[%s300 + $0x288] sm:$0xff]
      %v387 = vld [vmem:[%s300 + $0x290] sm:$0xff]
      %v388 = vld [vmem:[%s300 + $0x298] sm:$0xff]
      %v389 = vld [vmem:[%s300 + $0x2a0] sm:$0xff]
      %v390 = vld [vmem:[%s300 + $0x2a8] sm:$0xff]
      %v391 = vld [vmem:[%s300 + $0x2b0] sm:$0xff]
      %v392 = vld [vmem:[%s300 + $0x2b8] sm:$0xff]
      %v393 = vld [vmem:[%s300 + $0x2c0] sm:$0xff]
      %v394 = vld [vmem:[%s300 + $0x2c8] sm:$0xff]
      %v395 = vld [vmem:[%s300 + $0x2d0] sm:$0xff]
      %v396 = vld [vmem:[%s300 + $0x2d8] sm:$0xff]
      %v397 = vld [vmem:[%s300 + $0x2e0] sm:$0xff]
      %v398 = vld [vmem:[%s300 + $0x2e8] sm:$0xff]
      %v399 = vld [vmem:[%s300 + $0x2f0] sm:$0xff]
      %v400 = vld [vmem:[%s300 + $0x2f8] sm:$0xff]
      %v401 = vld [vmem:[%s300 + $0x300] sm:$0xff]
      %v402 = vld [vmem:[%s300 + $0x308] sm:$0xff]
      %v403 = vld [vmem:[%s300 + $0x310] sm:$0xff]
      %v404 = vld [vmem:[%s300 + $0x318] sm:$0xff]
      %v405 = vld [vmem:[%s300 + $0x320] sm:$0xff]
      %v406 = vld [vmem:[%s300 + $0x328] sm:$0xff]
      %v407 = vld [vmem:[%s300 + $0x330] sm:$0xff]
      %v408 = vld [vmem:[%s300 + $0x338] sm:$0xff]
      %v409 = vld [vmem:[%s300 + $0x340] sm:$0xff]
      %v410 = vld [vmem:[%s300 + $0x348] sm:$0xff]
      %v411 = vld [vmem:[%s300 + $0x350] sm:$0xff]
      %v412 = vld [vmem:[%s300 + $0x358] sm:$0xff]
      %v413 = vld [vmem:[%s300 + $0x360] sm:$0xff]
      %v414 = vld [vmem:[%s300 + $0x368] sm:$0xff]
      %v415 = vld [vmem:[%s300 + $0x370] sm:$0xff]
      %v416 = vld [vmem:[%s300 + $0x378] sm:$0xff]
      %v417 = vld [vmem:[%s300 + $0x380] sm:$0xff]
      %v418 = vld [vmem:[%s300 + $0x388] sm:$0xff]
      %v419 = vld [vmem:[%s300 + $0x390] sm:$0xff]
      %v420 = vld [vmem:[%s300 + $0x398] sm:$0xff]
      %v421 = vld [vmem:[%s300 + $0x3a0] sm:$0xff]
      %v422 = vld [vmem:[%s300 + $0x3a8] sm:$0xff]
      %v423 = vld [vmem:[%s300 + $0x3b0] sm:$0xff]
      %v424 = vld [vmem:[%s300 + $0x3b8] sm:$0xff]
      %v425 = vld [vmem:[%s300 + $0x3c0] sm:$0xff]
      %v426 = vld [vmem:[%s300 + $0x3c8] sm:$0xff]
      %v427 = vld [vmem:[%s300 + $0x3d0] sm:$0xff]
      %v428 = vld [vmem:[%s300 + $0x3d8] sm:$0xff]
      %v429 = vld [vmem:[%s300 + $0x3e0] sm:$0xff]
      %v430 = vld [vmem:[%s300 + $0x3e8] sm:$0xff]
      %v431 = vld [vmem:[%s300 + $0x3f0] sm:$0xff]
      %v432 = vld [vmem:[%s300 + $0x3f8] sm:$0xff]
      %v433 = vld [vmem:[%s300 + $0x400] sm:$0xff]
      %v434 = vld [vmem:[%s300 + $0x408] sm:$0xff]
      %v435 = vld [vmem:[%s300 + $0x410] sm:$0xff]
      %v436 = vld [vmem:[%s300 + $0x418] sm:$0xff]
      %v437 = vld [vmem:[%s300 + $0x420] sm:$0xff]
      %v438 = vld [vmem:[%s300 + $0x428] sm:$0xff]
      %v439 = vld [vmem:[%s300 + $0x430] sm:$0xff]
      %v440 = vld [vmem:[%s300 + $0x438] sm:$0xff]
      %v441 = vld [vmem:[%s300 + $0x440] sm:$0xff]
      %v442 = vld [vmem:[%s300 + $0x448] sm:$0xff]
      %v443 = vld [vmem:[%s300 + $0x450] sm:$0xff]
      %v444 = vld [vmem:[%s300 + $0x458] sm:$0xff]
      %v445 = vld [vmem:[%s300 + $0x460] sm:$0xff]
      %v446 = vld [vmem:[%s300 + $0x468] sm:$0xff]
      %v447 = vld [vmem:[%s300 + $0x470] sm:$0xff]
      %v448 = vld [vmem:[%s300 + $0x478] sm:$0xff]
      %v449 = vld [vmem:[%s300 + $0x480] sm:$0xff]
      %v450 = vld [vmem:[%s300 + $0x488] sm:$0xff]
      %v451 = vld [vmem:[%s300 + $0x490] sm:$0xff]
      %v452 = vld [vmem:[%s300 + $0x498] sm:$0xff]
      %v453 = vld [vmem:[%s300 + $0x4a0] sm:$0xff]
      %v454 = vld [vmem:[%s300 + $0x4a8] sm:$0xff]
      %v455 = vld [vmem:[%s300 + $0x4b0] sm:$0xff]
      %v456 = vld [vmem:[%s300 + $0x4b8] sm:$0xff]
      %v457 = vld [vmem:[%s300 + $0x4c0] sm:$0xff]
      %v458 = vld [vmem:[%s300 + $0x4c8] sm:$0xff]
      %v459 = vld [vmem:[%s300 + $0x4d0] sm:$0xff]
      %v460 = vld [vmem:[%s300 + $0x4d8] sm:$0xff]
      %v461 = vld [vmem:[%s300 + $0x4e0] sm:$0xff]
      %v462 = vld [vmem:[%s300 + $0x4e8] sm:$0xff]
      %v463 = vld [vmem:[%s300 + $0x4f0] sm:$0xff]
      %v464 = vld [vmem:[%s300 + $0x4f8] sm:$0xff]
      %v465 = vld [vmem:[%s300 + $0x500] sm:$0xff]
      %v466 = vld [vmem:[%s300 + $0x508] sm:$0xff]
      %v467 = vld [vmem:[%s300 + $0x510] sm:$0xff]
      %v468 = vld [vmem:[%s300 + $0x518] sm:$0xff]
      %v469 = vld [vmem:[%s300 + $0x520] sm:$0xff]
      %v470 = vld [vmem:[%s300 + $0x528] sm:$0xff]
      %v471 = vld [vmem:[%s300 + $0x530] sm:$0xff]
      %v472 = vld [vmem:[%s300 + $0x538] sm:$0xff]
      %v473 = vld [vmem:[%s300 + $0x540] sm:$0xff]
      %v474 = vld [vmem:[%s300 + $0x548] sm:$0xff]
      %v475 = vld [vmem:[%s300 + $0x550] sm:$0xff]
      %v476 = vld [vmem:[%s300 + $0x558] sm:$0xff]
      %v477 = vld [vmem:[%s300 + $0x560] sm:$0xff]
      %v478 = vld [vmem:[%s300 + $0x568] sm:$0xff]
      %v479 = vld [vmem:[%s300 + $0x570] sm:$0xff]
      %v480 = vld [vmem:[%s300 + $0x578] sm:$0xff]
      %v481 = vld [vmem:[%s300 + $0x580] sm:$0xff]
      %v482 = vld [vmem:[%s300 + $0x588] sm:$0xff]
      %v483 = vld [vmem:[%s300 + $0x590] sm:$0xff]
      %v484 = vld [vmem:[%s300 + $0x598] sm:$0xff]
      %v485 = vld [vmem:[%s300 + $0x5a0] sm:$0xff]
      %v486 = vld [vmem:[%s300 + $0x5a8] sm:$0xff]
      %v487 = vld [vmem:[%s300 + $0x5b0] sm:$0xff]
      %v488 = vld [vmem:[%s300 + $0x5b8] sm:$0xff]
      %v489 = vld [vmem:[%s300 + $0x5c0] sm:$0xff]
      %v490 = vld [vmem:[%s300 + $0x5c8] sm:$0xff]
      %v491 = vld [vmem:[%s300 + $0x5d0] sm:$0xff]
      %v492 = vld [vmem:[%s300 + $0x5d8] sm:$0xff]
      %v493 = vld [vmem:[%s300 + $0x5e0] sm:$0xff]
      %v494 = vld [vmem:[%s300 + $0x5e8] sm:$0xff]
      %v495 = vld [vmem:[%s300 + $0x5f0] sm:$0xff]
      %v496 = vld [vmem:[%s300 + $0x5f8] sm:$0xff]
      %v497 = vld [vmem:[%s300 + $0x600] sm:$0xff]
      %v498 = vld [vmem:[%s300 + $0x608] sm:$0xff]
      %v499 = vld [vmem:[%s300 + $0x610] sm:$0xff]
      %v500 = vld [vmem:[%s300 + $0x618] sm:$0xff]
      %v501 = vld [vmem:[%s300 + $0x620] sm:$0xff]
      %v502 = vld [vmem:[%s300 + $0x628] sm:$0xff]
      %v503 = vld [vmem:[%s300 + $0x630] sm:$0xff]
      %v504 = vld [vmem:[%s300 + $0x638] sm:$0xff]
      %v505 = vld [vmem:[%s300 + $0x640] sm:$0xff]
      %v506 = vld [vmem:[%s300 + $0x648] sm:$0xff]
      %v507 = vld [vmem:[%s300 + $0x650] sm:$0xff]
      %v508 = vld [vmem:[%s300 + $0x658] sm:$0xff]
      %v509 = vld [vmem:[%s300 + $0x660] sm:$0xff]
      %v510 = vld [vmem:[%s300 + $0x668] sm:$0xff]
      %v511 = vld [vmem:[%s300 + $0x670] sm:$0xff]
      %v512 = vld [vmem:[%s300 + $0x678] sm:$0xff]
      %v513 = vld [vmem:[%s1] sm:$0xf]
      %v514 = vld [vmem:[%s1 + $0x4] sm:$0xf]
      %v515 = vld [vmem:[%s1 + $0x8] sm:$0xf]
      %v516 = vld [vmem:[%s1 + $0xc] sm:$0xf]
      %v517 = vld [vmem:[%s1 + $0x10] sm:$0xf]
      %v518 = vld [vmem:[%s1 + $0x14] sm:$0xf]
      %v519 = vld [vmem:[%s1 + $0x18] sm:$0xf]
      %v520 = vld [vmem:[%s1 + $0x1c] sm:$0xf]
      %v521 = vld [vmem:[%s1 + $0x20] sm:$0xf]
      %v522 = vld [vmem:[%s1 + $0x24] sm:$0xf]
      %v523 = vld [vmem:[%s1 + $0x28] sm:$0xf]
      %v524 = vld [vmem:[%s1 + $0x2c] sm:$0xf]
      %v525 = vld [vmem:[%s1 + $0x30] sm:$0xf]
      %v526 = vld [vmem:[%s1 + $0x34] sm:$0xf]
      %v527 = vld [vmem:[%s1 + $0x38] sm:$0xf]
      %v528 = vld [vmem:[%s1 + $0x3c] sm:$0xf]
      %v529 = vld [vmem:[%s1 + $0x40] sm:$0xf]
      %v530 = vld [vmem:[%s1 + $0x44] sm:$0xf]
      %v531 = vld [vmem:[%s1 + $0x48] sm:$0xf]
      %v532 = vld [vmem:[%s1 + $0x4c] sm:$0xf]
      %v533 = vld [vmem:[%s1 + $0x50] sm:$0xf]
      %v534 = vld [vmem:[%s1 + $0x54] sm:$0xf]
      %v535 = vld [vmem:[%s1 + $0x58] sm:$0xf]
      %v536 = vld [vmem:[%s1 + $0x5c] sm:$0xf]
      %v537 = vld [vmem:[%s1 + $0x60] sm:$0x3]
      %v746 = vunpack.c.l.b16 %v305
      %v747 = vunpack.c.h.b16 %v305
      %v748 = vunpack.c.l.b16 %v306
      %v749 = vunpack.c.h.b16 %v306
      %v750 = vunpack.c.l.b16 %v307
      %v751 = vunpack.c.h.b16 %v307
      %v752 = vunpack.c.l.b16 %v308
      %v753 = vunpack.c.h.b16 %v308
      %v754 = vunpack.c.l.b16 %v309
      %v755 = vunpack.c.h.b16 %v309
      %v756 = vunpack.c.l.b16 %v310
      %v757 = vunpack.c.h.b16 %v310
      %v758 = vunpack.c.l.b16 %v311
      %v759 = vunpack.c.h.b16 %v311
      %v760 = vunpack.c.l.b16 %v312
      %v761 = vunpack.c.h.b16 %v312
      %v762 = vunpack.c.l.b16 %v313
      %v763 = vunpack.c.h.b16 %v313
      %v764 = vunpack.c.l.b16 %v314
      %v765 = vunpack.c.h.b16 %v314
      %v766 = vunpack.c.l.b16 %v315
      %v767 = vunpack.c.h.b16 %v315
      %v768 = vunpack.c.l.b16 %v316
      %v769 = vunpack.c.h.b16 %v316
      %v770 = vunpack.c.l.b16 %v317
      %v771 = vunpack.c.h.b16 %v317
      %v772 = vunpack.c.l.b16 %v318
      %v773 = vunpack.c.h.b16 %v318
      %v774 = vunpack.c.l.b16 %v319
      %v775 = vunpack.c.h.b16 %v319
      %v776 = vunpack.c.l.b16 %v320
      %v777 = vunpack.c.h.b16 %v320
      %v778 = vunpack.c.l.b16 %v321
      %v779 = vunpack.c.h.b16 %v321
      %v780 = vunpack.c.l.b16 %v322
      %v781 = vunpack.c.h.b16 %v322
      %v782 = vunpack.c.l.b16 %v323
      %v783 = vunpack.c.h.b16 %v323
      %v784 = vunpack.c.l.b16 %v324
      %v785 = vunpack.c.h.b16 %v324
      %v786 = vunpack.c.l.b16 %v325
      %v787 = vunpack.c.h.b16 %v325
      %v788 = vunpack.c.l.b16 %v326
      %v789 = vunpack.c.h.b16 %v326
      %v790 = vunpack.c.l.b16 %v327
      %v791 = vunpack.c.h.b16 %v327
      %v792 = vunpack.c.l.b16 %v328
      %v793 = vunpack.c.h.b16 %v328
      %v794 = vunpack.c.l.b16 %v329
      %v795 = vunpack.c.h.b16 %v329
      %v796 = vunpack.c.l.b16 %v330
      %v797 = vunpack.c.h.b16 %v330
      %v798 = vunpack.c.l.b16 %v331
      %v799 = vunpack.c.h.b16 %v331
      %v800 = vunpack.c.l.b16 %v332
      %v801 = vunpack.c.h.b16 %v332
      %v802 = vunpack.c.l.b16 %v333
      %v803 = vunpack.c.h.b16 %v333
      %v804 = vunpack.c.l.b16 %v334
      %v805 = vunpack.c.h.b16 %v334
      %v806 = vunpack.c.l.b16 %v335
      %v807 = vunpack.c.h.b16 %v335
      %v808 = vunpack.c.l.b16 %v336
      %v809 = vunpack.c.h.b16 %v336
      %v810 = vunpack.c.l.b16 %v337
      %v811 = vunpack.c.h.b16 %v337
      %v812 = vunpack.c.l.b16 %v338
      %v813 = vunpack.c.h.b16 %v338
      %v814 = vunpack.c.l.b16 %v339
      %v815 = vunpack.c.h.b16 %v339
      %v816 = vunpack.c.l.b16 %v340
      %v817 = vunpack.c.h.b16 %v340
      %v818 = vunpack.c.l.b16 %v341
      %v819 = vunpack.c.h.b16 %v341
      %v820 = vunpack.c.l.b16 %v342
      %v821 = vunpack.c.h.b16 %v342
      %v822 = vunpack.c.l.b16 %v343
      %v823 = vunpack.c.h.b16 %v343
      %v824 = vunpack.c.l.b16 %v344
      %v825 = vunpack.c.h.b16 %v344
      %v826 = vunpack.c.l.b16 %v345
      %v827 = vunpack.c.h.b16 %v345
      %v828 = vunpack.c.l.b16 %v346
      %v829 = vunpack.c.h.b16 %v346
      %v830 = vunpack.c.l.b16 %v347
      %v831 = vunpack.c.h.b16 %v347
      %v832 = vunpack.c.l.b16 %v348
      %v833 = vunpack.c.h.b16 %v348
      %v834 = vunpack.c.l.b16 %v349
      %v835 = vunpack.c.h.b16 %v349
      %v836 = vunpack.c.l.b16 %v350
      %v837 = vunpack.c.h.b16 %v350
      %v838 = vunpack.c.l.b16 %v351
      %v839 = vunpack.c.h.b16 %v351
      %v840 = vunpack.c.l.b16 %v352
      %v841 = vunpack.c.h.b16 %v352
      %v842 = vunpack.c.l.b16 %v353
      %v843 = vunpack.c.h.b16 %v353
      %v844 = vunpack.c.l.b16 %v354
      %v845 = vunpack.c.h.b16 %v354
      %v846 = vunpack.c.l.b16 %v355
      %v847 = vunpack.c.h.b16 %v355
      %v848 = vunpack.c.l.b16 %v356
      %v849 = vunpack.c.h.b16 %v356
      %v850 = vunpack.c.l.b16 %v357
      %v851 = vunpack.c.h.b16 %v357
      %v852 = vunpack.c.l.b16 %v358
      %v853 = vunpack.c.h.b16 %v358
      %v854 = vunpack.c.l.b16 %v359
      %v855 = vunpack.c.h.b16 %v359
      %v856 = vunpack.c.l.b16 %v360
      %v857 = vunpack.c.h.b16 %v360
      %v858 = vunpack.c.l.b16 %v361
      %v859 = vunpack.c.h.b16 %v361
      %v860 = vunpack.c.l.b16 %v362
      %v861 = vunpack.c.h.b16 %v362
      %v862 = vunpack.c.l.b16 %v363
      %v863 = vunpack.c.h.b16 %v363
      %v864 = vunpack.c.l.b16 %v364
      %v865 = vunpack.c.h.b16 %v364
      %v866 = vunpack.c.l.b16 %v365
      %v867 = vunpack.c.h.b16 %v365
      %v868 = vunpack.c.l.b16 %v366
      %v869 = vunpack.c.h.b16 %v366
      %v870 = vunpack.c.l.b16 %v367
      %v871 = vunpack.c.h.b16 %v367
      %v872 = vunpack.c.l.b16 %v368
      %v873 = vunpack.c.h.b16 %v368
      %v874 = vunpack.c.l.b16 %v369
      %v875 = vunpack.c.h.b16 %v369
      %v876 = vunpack.c.l.b16 %v370
      %v877 = vunpack.c.h.b16 %v370
      %v878 = vunpack.c.l.b16 %v371
      %v879 = vunpack.c.h.b16 %v371
      %v880 = vunpack.c.l.b16 %v372
      %v881 = vunpack.c.h.b16 %v372
      %v882 = vunpack.c.l.b16 %v373
      %v883 = vunpack.c.h.b16 %v373
      %v884 = vunpack.c.l.b16 %v374
      %v885 = vunpack.c.h.b16 %v374
      %v886 = vunpack.c.l.b16 %v375
      %v887 = vunpack.c.h.b16 %v375
      %v888 = vunpack.c.l.b16 %v376
      %v889 = vunpack.c.h.b16 %v376
      %v890 = vunpack.c.l.b16 %v377
      %v891 = vunpack.c.h.b16 %v377
      %v892 = vunpack.c.l.b16 %v378
      %v893 = vunpack.c.h.b16 %v378
      %v894 = vunpack.c.l.b16 %v379
      %v895 = vunpack.c.h.b16 %v379
      %v896 = vunpack.c.l.b16 %v380
      %v897 = vunpack.c.h.b16 %v380
      %v898 = vunpack.c.l.b16 %v381
      %v899 = vunpack.c.h.b16 %v381
      %v900 = vunpack.c.l.b16 %v382
      %v901 = vunpack.c.h.b16 %v382
      %v902 = vunpack.c.l.b16 %v383
      %v903 = vunpack.c.h.b16 %v383
      %v904 = vunpack.c.l.b16 %v384
      %v905 = vunpack.c.h.b16 %v384
      %v906 = vunpack.c.l.b16 %v385
      %v907 = vunpack.c.h.b16 %v385
      %v908 = vunpack.c.l.b16 %v386
      %v909 = vunpack.c.h.b16 %v386
      %v910 = vunpack.c.l.b16 %v387
      %v911 = vunpack.c.h.b16 %v387
      %v912 = vunpack.c.l.b16 %v388
      %v913 = vunpack.c.h.b16 %v388
      %v914 = vunpack.c.l.b16 %v389
      %v915 = vunpack.c.h.b16 %v389
      %v916 = vunpack.c.l.b16 %v390
      %v917 = vunpack.c.h.b16 %v390
      %v918 = vunpack.c.l.b16 %v391
      %v919 = vunpack.c.h.b16 %v391
      %v920 = vunpack.c.l.b16 %v392
      %v921 = vunpack.c.h.b16 %v392
      %v922 = vunpack.c.l.b16 %v393
      %v923 = vunpack.c.h.b16 %v393
      %v924 = vunpack.c.l.b16 %v394
      %v925 = vunpack.c.h.b16 %v394
      %v926 = vunpack.c.l.b16 %v395
      %v927 = vunpack.c.h.b16 %v395
      %v928 = vunpack.c.l.b16 %v396
      %v929 = vunpack.c.h.b16 %v396
      %v930 = vunpack.c.l.b16 %v397
      %v931 = vunpack.c.h.b16 %v397
      %v932 = vunpack.c.l.b16 %v398
      %v933 = vunpack.c.h.b16 %v398
      %v934 = vunpack.c.l.b16 %v399
      %v935 = vunpack.c.h.b16 %v399
      %v936 = vunpack.c.l.b16 %v400
      %v937 = vunpack.c.h.b16 %v400
      %v938 = vunpack.c.l.b16 %v401
      %v939 = vunpack.c.h.b16 %v401
      %v940 = vunpack.c.l.b16 %v402
      %v941 = vunpack.c.h.b16 %v402
      %v942 = vunpack.c.l.b16 %v403
      %v943 = vunpack.c.h.b16 %v403
      %v944 = vunpack.c.l.b16 %v404
      %v945 = vunpack.c.h.b16 %v404
      %v946 = vunpack.c.l.b16 %v405
      %v947 = vunpack.c.h.b16 %v405
      %v948 = vunpack.c.l.b16 %v406
      %v949 = vunpack.c.h.b16 %v406
      %v950 = vunpack.c.l.b16 %v407
      %v951 = vunpack.c.h.b16 %v407
      %v952 = vunpack.c.l.b16 %v408
      %v953 = vunpack.c.h.b16 %v408
      %v954 = vunpack.c.l.b16 %v409
      %v955 = vunpack.c.h.b16 %v409
      %v956 = vunpack.c.l.b16 %v410
      %v957 = vunpack.c.h.b16 %v410
      %v958 = vunpack.c.l.b16 %v411
      %v959 = vunpack.c.h.b16 %v411
      %v960 = vunpack.c.l.b16 %v412
      %v961 = vunpack.c.h.b16 %v412
      %v962 = vunpack.c.l.b16 %v413
      %v963 = vunpack.c.h.b16 %v413
      %v964 = vunpack.c.l.b16 %v414
      %v965 = vunpack.c.h.b16 %v414
      %v966 = vunpack.c.l.b16 %v415
      %v967 = vunpack.c.h.b16 %v415
      %v968 = vunpack.c.l.b16 %v416
      %v969 = vunpack.c.h.b16 %v416
      %v970 = vunpack.c.l.b16 %v417
      %v971 = vunpack.c.h.b16 %v417
      %v972 = vunpack.c.l.b16 %v418
      %v973 = vunpack.c.h.b16 %v418
      %v974 = vunpack.c.l.b16 %v419
      %v975 = vunpack.c.h.b16 %v419
      %v976 = vunpack.c.l.b16 %v420
      %v977 = vunpack.c.h.b16 %v420
      %v978 = vunpack.c.l.b16 %v421
      %v979 = vunpack.c.h.b16 %v421
      %v980 = vunpack.c.l.b16 %v422
      %v981 = vunpack.c.h.b16 %v422
      %v982 = vunpack.c.l.b16 %v423
      %v983 = vunpack.c.h.b16 %v423
      %v984 = vunpack.c.l.b16 %v424
      %v985 = vunpack.c.h.b16 %v424
      %v986 = vunpack.c.l.b16 %v425
      %v987 = vunpack.c.h.b16 %v425
      %v988 = vunpack.c.l.b16 %v426
      %v989 = vunpack.c.h.b16 %v426
      %v990 = vunpack.c.l.b16 %v427
      %v991 = vunpack.c.h.b16 %v427
      %v992 = vunpack.c.l.b16 %v428
      %v993 = vunpack.c.h.b16 %v428
      %v994 = vunpack.c.l.b16 %v429
      %v995 = vunpack.c.h.b16 %v429
      %v996 = vunpack.c.l.b16 %v430
      %v997 = vunpack.c.h.b16 %v430
      %v998 = vunpack.c.l.b16 %v431
      %v999 = vunpack.c.h.b16 %v431
      %v1000 = vunpack.c.l.b16 %v432
      %v1001 = vunpack.c.h.b16 %v432
      %v1002 = vunpack.c.l.b16 %v433
      %v1003 = vunpack.c.h.b16 %v433
      %v1004 = vunpack.c.l.b16 %v434
      %v1005 = vunpack.c.h.b16 %v434
      %v1006 = vunpack.c.l.b16 %v435
      %v1007 = vunpack.c.h.b16 %v435
      %v1008 = vunpack.c.l.b16 %v436
      %v1009 = vunpack.c.h.b16 %v436
      %v1010 = vunpack.c.l.b16 %v437
      %v1011 = vunpack.c.h.b16 %v437
      %v1012 = vunpack.c.l.b16 %v438
      %v1013 = vunpack.c.h.b16 %v438
      %v1014 = vunpack.c.l.b16 %v439
      %v1015 = vunpack.c.h.b16 %v439
      %v1016 = vunpack.c.l.b16 %v440
      %v1017 = vunpack.c.h.b16 %v440
      %v1018 = vunpack.c.l.b16 %v441
      %v1019 = vunpack.c.h.b16 %v441
      %v1020 = vunpack.c.l.b16 %v442
      %v1021 = vunpack.c.h.b16 %v442
      %v1022 = vunpack.c.l.b16 %v443
      %v1023 = vunpack.c.h.b16 %v443
      %v1024 = vunpack.c.l.b16 %v444
      %v1025 = vunpack.c.h.b16 %v444
      %v1026 = vunpack.c.l.b16 %v445
      %v1027 = vunpack.c.h.b16 %v445
      %v1028 = vunpack.c.l.b16 %v446
      %v1029 = vunpack.c.h.b16 %v446
      %v1030 = vunpack.c.l.b16 %v447
      %v1031 = vunpack.c.h.b16 %v447
      %v1032 = vunpack.c.l.b16 %v448
      %v1033 = vunpack.c.h.b16 %v448
      %v1034 = vunpack.c.l.b16 %v449
      %v1035 = vunpack.c.h.b16 %v449
      %v1036 = vunpack.c.l.b16 %v450
      %v1037 = vunpack.c.h.b16 %v450
      %v1038 = vunpack.c.l.b16 %v451
      %v1039 = vunpack.c.h.b16 %v451
      %v1040 = vunpack.c.l.b16 %v452
      %v1041 = vunpack.c.h.b16 %v452
      %v1042 = vunpack.c.l.b16 %v453
      %v1043 = vunpack.c.h.b16 %v453
      %v1044 = vunpack.c.l.b16 %v454
      %v1045 = vunpack.c.h.b16 %v454
      %v1046 = vunpack.c.l.b16 %v455
      %v1047 = vunpack.c.h.b16 %v455
      %v1048 = vunpack.c.l.b16 %v456
      %v1049 = vunpack.c.h.b16 %v456
      %v1050 = vunpack.c.l.b16 %v457
      %v1051 = vunpack.c.h.b16 %v457
      %v1052 = vunpack.c.l.b16 %v458
      %v1053 = vunpack.c.h.b16 %v458
      %v1054 = vunpack.c.l.b16 %v459
      %v1055 = vunpack.c.h.b16 %v459
      %v1056 = vunpack.c.l.b16 %v460
      %v1057 = vunpack.c.h.b16 %v460
      %v1058 = vunpack.c.l.b16 %v461
      %v1059 = vunpack.c.h.b16 %v461
      %v1060 = vunpack.c.l.b16 %v462
      %v1061 = vunpack.c.h.b16 %v462
      %v1062 = vunpack.c.l.b16 %v463
      %v1063 = vunpack.c.h.b16 %v463
      %v1064 = vunpack.c.l.b16 %v464
      %v1065 = vunpack.c.h.b16 %v464
      %v1066 = vunpack.c.l.b16 %v465
      %v1067 = vunpack.c.h.b16 %v465
      %v1068 = vunpack.c.l.b16 %v466
      %v1069 = vunpack.c.h.b16 %v466
      %v1070 = vunpack.c.l.b16 %v467
      %v1071 = vunpack.c.h.b16 %v467
      %v1072 = vunpack.c.l.b16 %v468
      %v1073 = vunpack.c.h.b16 %v468
      %v1074 = vunpack.c.l.b16 %v469
      %v1075 = vunpack.c.h.b16 %v469
      %v1076 = vunpack.c.l.b16 %v470
      %v1077 = vunpack.c.h.b16 %v470
      %v1078 = vunpack.c.l.b16 %v471
      %v1079 = vunpack.c.h.b16 %v471
      %v1080 = vunpack.c.l.b16 %v472
      %v1081 = vunpack.c.h.b16 %v472
      %v1082 = vunpack.c.l.b16 %v473
      %v1083 = vunpack.c.h.b16 %v473
      %v1084 = vunpack.c.l.b16 %v474
      %v1085 = vunpack.c.h.b16 %v474
      %v1086 = vunpack.c.l.b16 %v475
      %v1087 = vunpack.c.h.b16 %v475
      %v1088 = vunpack.c.l.b16 %v476
      %v1089 = vunpack.c.h.b16 %v476
      %v1090 = vunpack.c.l.b16 %v477
      %v1091 = vunpack.c.h.b16 %v477
      %v1092 = vunpack.c.l.b16 %v478
      %v1093 = vunpack.c.h.b16 %v478
      %v1094 = vunpack.c.l.b16 %v479
      %v1095 = vunpack.c.h.b16 %v479
      %v1096 = vunpack.c.l.b16 %v480
      %v1097 = vunpack.c.h.b16 %v480
      %v1098 = vunpack.c.l.b16 %v481
      %v1099 = vunpack.c.h.b16 %v481
      %v1100 = vunpack.c.l.b16 %v482
      %v1101 = vunpack.c.h.b16 %v482
      %v1102 = vunpack.c.l.b16 %v483
      %v1103 = vunpack.c.h.b16 %v483
      %v1104 = vunpack.c.l.b16 %v484
      %v1105 = vunpack.c.h.b16 %v484
      %v1106 = vunpack.c.l.b16 %v485
      %v1107 = vunpack.c.h.b16 %v485
      %v1108 = vunpack.c.l.b16 %v486
      %v1109 = vunpack.c.h.b16 %v486
      %v1110 = vunpack.c.l.b16 %v487
      %v1111 = vunpack.c.h.b16 %v487
      %v1112 = vunpack.c.l.b16 %v488
      %v1113 = vunpack.c.h.b16 %v488
      %v1114 = vunpack.c.l.b16 %v489
      %v1115 = vunpack.c.h.b16 %v489
      %v1116 = vunpack.c.l.b16 %v490
      %v1117 = vunpack.c.h.b16 %v490
      %v1118 = vunpack.c.l.b16 %v491
      %v1119 = vunpack.c.h.b16 %v491
      %v1120 = vunpack.c.l.b16 %v492
      %v1121 = vunpack.c.h.b16 %v492
      %v1122 = vunpack.c.l.b16 %v493
      %v1123 = vunpack.c.h.b16 %v493
      %v1124 = vunpack.c.l.b16 %v494
      %v1125 = vunpack.c.h.b16 %v494
      %v1126 = vunpack.c.l.b16 %v495
      %v1127 = vunpack.c.h.b16 %v495
      %v1128 = vunpack.c.l.b16 %v496
      %v1129 = vunpack.c.h.b16 %v496
      %v1130 = vunpack.c.l.b16 %v497
      %v1131 = vunpack.c.h.b16 %v497
      %v1132 = vunpack.c.l.b16 %v498
      %v1133 = vunpack.c.h.b16 %v498
      %v1134 = vunpack.c.l.b16 %v499
      %v1135 = vunpack.c.h.b16 %v499
      %v1136 = vunpack.c.l.b16 %v500
      %v1137 = vunpack.c.h.b16 %v500
      %v1138 = vunpack.c.l.b16 %v501
      %v1139 = vunpack.c.h.b16 %v501
      %v1140 = vunpack.c.l.b16 %v502
      %v1141 = vunpack.c.h.b16 %v502
      %v1142 = vunpack.c.l.b16 %v503
      %v1143 = vunpack.c.h.b16 %v503
      %v1144 = vunpack.c.l.b16 %v504
      %v1145 = vunpack.c.h.b16 %v504
      %v1146 = vunpack.c.l.b16 %v505
      %v1147 = vunpack.c.h.b16 %v505
      %v1148 = vunpack.c.l.b16 %v506
      %v1149 = vunpack.c.h.b16 %v506
      %v1150 = vunpack.c.l.b16 %v507
      %v1151 = vunpack.c.h.b16 %v507
      %v1152 = vunpack.c.l.b16 %v508
      %v1153 = vunpack.c.h.b16 %v508
      %v1154 = vunpack.c.l.b16 %v509
      %v1155 = vunpack.c.h.b16 %v509
      %v1156 = vunpack.c.l.b16 %v510
      %v1157 = vunpack.c.h.b16 %v510
      %v1158 = vunpack.c.l.b16 %v511
      %v1159 = vunpack.c.h.b16 %v511
      %v1160 = vunpack.c.l.b16 %v512
      %v1161 = vunpack.c.h.b16 %v512
      %v1162 = vpack.c.b16 %v748, %v746
      %v1163 = vpack.c.b16 %v749, %v747
      %v1164 = vpack.c.b16 %v752, %v750
      %v1165 = vpack.c.b16 %v753, %v751
      %v1166 = vpack.c.b16 %v756, %v754
      %v1167 = vpack.c.b16 %v757, %v755
      %v1168 = vpack.c.b16 %v760, %v758
      %v1169 = vpack.c.b16 %v761, %v759
      %v1170 = vpack.c.b16 %v764, %v762
      %v1171 = vpack.c.b16 %v765, %v763
      %v1172 = vpack.c.b16 %v768, %v766
      %v1173 = vpack.c.b16 %v769, %v767
      %v1174 = vpack.c.b16 %v772, %v770
      %v1175 = vpack.c.b16 %v773, %v771
      %v1176 = vpack.c.b16 %v776, %v774
      %v1177 = vpack.c.b16 %v777, %v775
      %v1178 = vpack.c.b16 %v780, %v778
      %v1179 = vpack.c.b16 %v781, %v779
      %v1180 = vpack.c.b16 %v784, %v782
      %v1181 = vpack.c.b16 %v785, %v783
      %v1182 = vpack.c.b16 %v788, %v786
      %v1183 = vpack.c.b16 %v789, %v787
      %v1184 = vpack.c.b16 %v792, %v790
      %v1185 = vpack.c.b16 %v793, %v791
      %v1186 = vpack.c.b16 %v796, %v794
      %v1187 = vpack.c.b16 %v797, %v795
      %v1188 = vpack.c.b16 %v800, %v798
      %v1189 = vpack.c.b16 %v801, %v799
      %v1190 = vpack.c.b16 %v804, %v802
      %v1191 = vpack.c.b16 %v805, %v803
      %v1192 = vpack.c.b16 %v808, %v806
      %v1193 = vpack.c.b16 %v809, %v807
      %v1194 = vpack.c.b16 %v812, %v810
      %v1195 = vpack.c.b16 %v813, %v811
      %v1196 = vpack.c.b16 %v816, %v814
      %v1197 = vpack.c.b16 %v817, %v815
      %v1198 = vpack.c.b16 %v820, %v818
      %v1199 = vpack.c.b16 %v821, %v819
      %v1200 = vpack.c.b16 %v824, %v822
      %v1201 = vpack.c.b16 %v825, %v823
      %v1202 = vpack.c.b16 %v828, %v826
      %v1203 = vpack.c.b16 %v829, %v827
      %v1204 = vpack.c.b16 %v832, %v830
      %v1205 = vpack.c.b16 %v833, %v831
      %v1206 = vpack.c.b16 %v836, %v834
      %v1207 = vpack.c.b16 %v837, %v835
      %v1208 = vpack.c.b16 %v840, %v838
      %v1209 = vpack.c.b16 %v841, %v839
      %v1210 = vpack.c.b16 %v844, %v842
      %v1211 = vpack.c.b16 %v845, %v843
      %v1212 = vpack.c.b16 %v848, %v846
      %v1213 = vpack.c.b16 %v849, %v847
      %v1214 = vpack.c.b16 %v852, %v850
      %v1215 = vpack.c.b16 %v853, %v851
      %v1216 = vpack.c.b16 %v856, %v854
      %v1217 = vpack.c.b16 %v857, %v855
      %v1218 = vpack.c.b16 %v860, %v858
      %v1219 = vpack.c.b16 %v861, %v859
      %v1220 = vpack.c.b16 %v864, %v862
      %v1221 = vpack.c.b16 %v865, %v863
      %v1222 = vpack.c.b16 %v868, %v866
      %v1223 = vpack.c.b16 %v869, %v867
      %v1224 = vpack.c.b16 %v872, %v870
      %v1225 = vpack.c.b16 %v873, %v871
      %v1226 = vpack.c.b16 %v876, %v874
      %v1227 = vpack.c.b16 %v877, %v875
      %v1228 = vpack.c.b16 %v880, %v878
      %v1229 = vpack.c.b16 %v881, %v879
      %v1230 = vpack.c.b16 %v884, %v882
      %v1231 = vpack.c.b16 %v885, %v883
      %v1232 = vpack.c.b16 %v888, %v886
      %v1233 = vpack.c.b16 %v889, %v887
      %v1234 = vpack.c.b16 %v892, %v890
      %v1235 = vpack.c.b16 %v893, %v891
      %v1236 = vpack.c.b16 %v896, %v894
      %v1237 = vpack.c.b16 %v897, %v895
      %v1238 = vpack.c.b16 %v900, %v898
      %v1239 = vpack.c.b16 %v901, %v899
      %v1240 = vpack.c.b16 %v904, %v902
      %v1241 = vpack.c.b16 %v905, %v903
      %v1242 = vpack.c.b16 %v908, %v906
      %v1243 = vpack.c.b16 %v909, %v907
      %v1244 = vpack.c.b16 %v912, %v910
      %v1245 = vpack.c.b16 %v913, %v911
      %v1246 = vpack.c.b16 %v916, %v914
      %v1247 = vpack.c.b16 %v917, %v915
      %v1248 = vpack.c.b16 %v920, %v918
      %v1249 = vpack.c.b16 %v921, %v919
      %v1250 = vpack.c.b16 %v924, %v922
      %v1251 = vpack.c.b16 %v925, %v923
      %v1252 = vpack.c.b16 %v928, %v926
      %v1253 = vpack.c.b16 %v929, %v927
      %v1254 = vpack.c.b16 %v932, %v930
      %v1255 = vpack.c.b16 %v933, %v931
      %v1256 = vpack.c.b16 %v936, %v934
      %v1257 = vpack.c.b16 %v937, %v935
      %v1258 = vpack.c.b16 %v940, %v938
      %v1259 = vpack.c.b16 %v941, %v939
      %v1260 = vpack.c.b16 %v944, %v942
      %v1261 = vpack.c.b16 %v945, %v943
      %v1262 = vpack.c.b16 %v948, %v946
      %v1263 = vpack.c.b16 %v949, %v947
      %v1264 = vpack.c.b16 %v952, %v950
      %v1265 = vpack.c.b16 %v953, %v951
      %v1266 = vpack.c.b16 %v956, %v954
      %v1267 = vpack.c.b16 %v957, %v955
      %v1268 = vpack.c.b16 %v960, %v958
      %v1269 = vpack.c.b16 %v961, %v959
      %v1270 = vpack.c.b16 %v964, %v962
      %v1271 = vpack.c.b16 %v965, %v963
      %v1272 = vpack.c.b16 %v968, %v966
      %v1273 = vpack.c.b16 %v969, %v967
      %v1274 = vpack.c.b16 %v972, %v970
      %v1275 = vpack.c.b16 %v973, %v971
      %v1276 = vpack.c.b16 %v976, %v974
      %v1277 = vpack.c.b16 %v977, %v975
      %v1278 = vpack.c.b16 %v980, %v978
      %v1279 = vpack.c.b16 %v981, %v979
      %v1280 = vpack.c.b16 %v984, %v982
      %v1281 = vpack.c.b16 %v985, %v983
      %v1282 = vpack.c.b16 %v988, %v986
      %v1283 = vpack.c.b16 %v989, %v987
      %v1284 = vpack.c.b16 %v992, %v990
      %v1285 = vpack.c.b16 %v993, %v991
      %v1286 = vpack.c.b16 %v996, %v994
      %v1287 = vpack.c.b16 %v997, %v995
      %v1288 = vpack.c.b16 %v1000, %v998
      %v1289 = vpack.c.b16 %v1001, %v999
      %v1290 = vpack.c.b16 %v1004, %v1002
      %v1291 = vpack.c.b16 %v1005, %v1003
      %v1292 = vpack.c.b16 %v1008, %v1006
      %v1293 = vpack.c.b16 %v1009, %v1007
      %v1294 = vpack.c.b16 %v1012, %v1010
      %v1295 = vpack.c.b16 %v1013, %v1011
      %v1296 = vpack.c.b16 %v1016, %v1014
      %v1297 = vpack.c.b16 %v1017, %v1015
      %v1298 = vpack.c.b16 %v1020, %v1018
      %v1299 = vpack.c.b16 %v1021, %v1019
      %v1300 = vpack.c.b16 %v1024, %v1022
      %v1301 = vpack.c.b16 %v1025, %v1023
      %v1302 = vpack.c.b16 %v1028, %v1026
      %v1303 = vpack.c.b16 %v1029, %v1027
      %v1304 = vpack.c.b16 %v1032, %v1030
      %v1305 = vpack.c.b16 %v1033, %v1031
      %v1306 = vpack.c.b16 %v1036, %v1034
      %v1307 = vpack.c.b16 %v1037, %v1035
      %v1308 = vpack.c.b16 %v1040, %v1038
      %v1309 = vpack.c.b16 %v1041, %v1039
      %v1310 = vpack.c.b16 %v1044, %v1042
      %v1311 = vpack.c.b16 %v1045, %v1043
      %v1312 = vpack.c.b16 %v1048, %v1046
      %v1313 = vpack.c.b16 %v1049, %v1047
      %v1314 = vpack.c.b16 %v1052, %v1050
      %v1315 = vpack.c.b16 %v1053, %v1051
      %v1316 = vpack.c.b16 %v1056, %v1054
      %v1317 = vpack.c.b16 %v1057, %v1055
      %v1318 = vpack.c.b16 %v1060, %v1058
      %v1319 = vpack.c.b16 %v1061, %v1059
      %v1320 = vpack.c.b16 %v1064, %v1062
      %v1321 = vpack.c.b16 %v1065, %v1063
      %v1322 = vpack.c.b16 %v1068, %v1066
      %v1323 = vpack.c.b16 %v1069, %v1067
      %v1324 = vpack.c.b16 %v1072, %v1070
      %v1325 = vpack.c.b16 %v1073, %v1071
      %v1326 = vpack.c.b16 %v1076, %v1074
      %v1327 = vpack.c.b16 %v1077, %v1075
      %v1328 = vpack.c.b16 %v1080, %v1078
      %v1329 = vpack.c.b16 %v1081, %v1079
      %v1330 = vpack.c.b16 %v1084, %v1082
      %v1331 = vpack.c.b16 %v1085, %v1083
      %v1332 = vpack.c.b16 %v1088, %v1086
      %v1333 = vpack.c.b16 %v1089, %v1087
      %v1334 = vpack.c.b16 %v1092, %v1090
      %v1335 = vpack.c.b16 %v1093, %v1091
      %v1336 = vpack.c.b16 %v1096, %v1094
      %v1337 = vpack.c.b16 %v1097, %v1095
      %v1338 = vpack.c.b16 %v1100, %v1098
      %v1339 = vpack.c.b16 %v1101, %v1099
      %v1340 = vpack.c.b16 %v1104, %v1102
      %v1341 = vpack.c.b16 %v1105, %v1103
      %v1342 = vpack.c.b16 %v1108, %v1106
      %v1343 = vpack.c.b16 %v1109, %v1107
      %v1344 = vpack.c.b16 %v1112, %v1110
      %v1345 = vpack.c.b16 %v1113, %v1111
      %v1346 = vpack.c.b16 %v1116, %v1114
      %v1347 = vpack.c.b16 %v1117, %v1115
      %v1348 = vpack.c.b16 %v1120, %v1118
      %v1349 = vpack.c.b16 %v1121, %v1119
      %v1350 = vpack.c.b16 %v1124, %v1122
      %v1351 = vpack.c.b16 %v1125, %v1123
      %v1352 = vpack.c.b16 %v1128, %v1126
      %v1353 = vpack.c.b16 %v1129, %v1127
      %v1354 = vpack.c.b16 %v1132, %v1130
      %v1355 = vpack.c.b16 %v1133, %v1131
      %v1356 = vpack.c.b16 %v1136, %v1134
      %v1357 = vpack.c.b16 %v1137, %v1135
      %v1358 = vpack.c.b16 %v1140, %v1138
      %v1359 = vpack.c.b16 %v1141, %v1139
      %v1360 = vpack.c.b16 %v1144, %v1142
      %v1361 = vpack.c.b16 %v1145, %v1143
      %v1362 = vpack.c.b16 %v1148, %v1146
      %v1363 = vpack.c.b16 %v1149, %v1147
      %v1364 = vpack.c.b16 %v1152, %v1150
      %v1365 = vpack.c.b16 %v1153, %v1151
      %v1366 = vpack.c.b16 %v1156, %v1154
      %v1367 = vpack.c.b16 %v1157, %v1155
      %v1368 = vpack.c.b16 %v1160, %v1158
      %v1369 = vpack.c.b16 %v1161, %v1159
      %v1499 = vunpack.c.l.b16 %v513
      %v1500 = vunpack.c.l.b16 %v514
      %v1501 = vunpack.c.l.b16 %v515
      %v1502 = vunpack.c.l.b16 %v516
      %v1503 = vunpack.c.l.b16 %v517
      %v1504 = vunpack.c.l.b16 %v518
      %v1505 = vunpack.c.l.b16 %v519
      %v1506 = vunpack.c.l.b16 %v520
      %v1507 = vunpack.c.l.b16 %v521
      %v1508 = vunpack.c.l.b16 %v522
      %v1509 = vunpack.c.l.b16 %v523
      %v1510 = vunpack.c.l.b16 %v524
      %v1511 = vunpack.c.l.b16 %v525
      %v1512 = vunpack.c.l.b16 %v526
      %v1513 = vunpack.c.l.b16 %v527
      %v1514 = vunpack.c.l.b16 %v528
      %v1515 = vunpack.c.l.b16 %v529
      %v1516 = vunpack.c.l.b16 %v530
      %v1517 = vunpack.c.l.b16 %v531
      %v1518 = vunpack.c.l.b16 %v532
      %v1519 = vunpack.c.l.b16 %v533
      %v1520 = vunpack.c.l.b16 %v534
      %v1521 = vunpack.c.l.b16 %v535
      %v1522 = vunpack.c.l.b16 %v536
      %v1523 = vunpack.c.l.b16 %v537
      %v1524 = vpack.c.b16 %v1500, %v1499
      %v1525 = vpack.c.b16 %v1502, %v1501
      %v1526 = vpack.c.b16 %v1504, %v1503
      %v1527 = vpack.c.b16 %v1506, %v1505
      %v1528 = vpack.c.b16 %v1508, %v1507
      %v1529 = vpack.c.b16 %v1510, %v1509
      %v1530 = vpack.c.b16 %v1512, %v1511
      %v1531 = vpack.c.b16 %v1514, %v1513
      %v1532 = vpack.c.b16 %v1516, %v1515
      %v1533 = vpack.c.b16 %v1518, %v1517
      %v1534 = vpack.c.b16 %v1520, %v1519
      %v1535 = vpack.c.b16 %v1522, %v1521
      %v1536 = vpack.c.b16 %v1523, %v1523
      %vm1549 = vcmask 556032
      %v1551 = vsel %vm1549, %v1163, 0
      %v1554 = vsel %vm1549, %v1165, 0
      %v1557 = vsel %vm1549, %v1167, 0
      %v1560 = vsel %vm1549, %v1169, 0
      %v1563 = vsel %vm1549, %v1171, 0
      %v1566 = vsel %vm1549, %v1173, 0
      %v1569 = vsel %vm1549, %v1175, 0
      %v1572 = vsel %vm1549, %v1177, 0
      %v1575 = vsel %vm1549, %v1179, 0
      %v1578 = vsel %vm1549, %v1181, 0
      %v1581 = vsel %vm1549, %v1183, 0
      %v1584 = vsel %vm1549, %v1185, 0
      %v1587 = vsel %vm1549, %v1187, 0
      %v1590 = vsel %vm1549, %v1189, 0
      %v1593 = vsel %vm1549, %v1191, 0
      %v1596 = vsel %vm1549, %v1193, 0
      %v1599 = vsel %vm1549, %v1195, 0
      %v1602 = vsel %vm1549, %v1197, 0
      %v1605 = vsel %vm1549, %v1199, 0
      %v1608 = vsel %vm1549, %v1201, 0
      %v1611 = vsel %vm1549, %v1203, 0
      %v1614 = vsel %vm1549, %v1205, 0
      %v1617 = vsel %vm1549, %v1207, 0
      %v1620 = vsel %vm1549, %v1209, 0
      %v1623 = vsel %vm1549, %v1211, 0
      %v1626 = vsel %vm1549, %v1213, 0
      %v1629 = vsel %vm1549, %v1215, 0
      %v1632 = vsel %vm1549, %v1217, 0
      %v1635 = vsel %vm1549, %v1219, 0
      %v1638 = vsel %vm1549, %v1221, 0
      %v1641 = vsel %vm1549, %v1223, 0
      %v1644 = vsel %vm1549, %v1225, 0
      %v1647 = vsel %vm1549, %v1227, 0
      %v1650 = vsel %vm1549, %v1229, 0
      %v1653 = vsel %vm1549, %v1231, 0
      %v1656 = vsel %vm1549, %v1233, 0
      %v1659 = vsel %vm1549, %v1235, 0
      %v1662 = vsel %vm1549, %v1237, 0
      %v1665 = vsel %vm1549, %v1239, 0
      %v1668 = vsel %vm1549, %v1241, 0
      %v1671 = vsel %vm1549, %v1243, 0
      %v1674 = vsel %vm1549, %v1245, 0
      %v1677 = vsel %vm1549, %v1247, 0
      %v1680 = vsel %vm1549, %v1249, 0
      %v1683 = vsel %vm1549, %v1251, 0
      %v1686 = vsel %vm1549, %v1253, 0
      %v1689 = vsel %vm1549, %v1255, 0
      %v1692 = vsel %vm1549, %v1257, 0
      %v1695 = vsel %vm1549, %v1259, 0
      %v1698 = vsel %vm1549, %v1261, 0
      %v1701 = vsel %vm1549, %v1263, 0
      %v1704 = vsel %vm1549, %v1265, 0
      %v1707 = vsel %vm1549, %v1267, 0
      %v1710 = vsel %vm1549, %v1269, 0
      %v1713 = vsel %vm1549, %v1271, 0
      %v1716 = vsel %vm1549, %v1273, 0
      %v1719 = vsel %vm1549, %v1275, 0
      %v1722 = vsel %vm1549, %v1277, 0
      %v1725 = vsel %vm1549, %v1279, 0
      %v1728 = vsel %vm1549, %v1281, 0
      %v1731 = vsel %vm1549, %v1283, 0
      %v1734 = vsel %vm1549, %v1285, 0
      %v1737 = vsel %vm1549, %v1287, 0
      %v1740 = vsel %vm1549, %v1289, 0
      %v1743 = vsel %vm1549, %v1291, 0
      %v1746 = vsel %vm1549, %v1293, 0
      %v1749 = vsel %vm1549, %v1295, 0
      %v1752 = vsel %vm1549, %v1297, 0
      %v1755 = vsel %vm1549, %v1299, 0
      %v1758 = vsel %vm1549, %v1301, 0
      %v1761 = vsel %vm1549, %v1303, 0
      %v1764 = vsel %vm1549, %v1305, 0
      %v1767 = vsel %vm1549, %v1307, 0
      %v1770 = vsel %vm1549, %v1309, 0
      %v1773 = vsel %vm1549, %v1311, 0
      %v1776 = vsel %vm1549, %v1313, 0
      %v1779 = vsel %vm1549, %v1315, 0
      %v1782 = vsel %vm1549, %v1317, 0
      %v1785 = vsel %vm1549, %v1319, 0
      %v1788 = vsel %vm1549, %v1321, 0
      %v1791 = vsel %vm1549, %v1323, 0
      %v1794 = vsel %vm1549, %v1325, 0
      %v1797 = vsel %vm1549, %v1327, 0
      %v1800 = vsel %vm1549, %v1329, 0
      %v1803 = vsel %vm1549, %v1331, 0
      %v1806 = vsel %vm1549, %v1333, 0
      %v1809 = vsel %vm1549, %v1335, 0
      %v1812 = vsel %vm1549, %v1337, 0
      %v1815 = vsel %vm1549, %v1339, 0
      %v1818 = vsel %vm1549, %v1341, 0
      %v1821 = vsel %vm1549, %v1343, 0
      %v1824 = vsel %vm1549, %v1345, 0
      %v1827 = vsel %vm1549, %v1347, 0
      %v1830 = vsel %vm1549, %v1349, 0
      %v1833 = vsel %vm1549, %v1351, 0
      %v1836 = vsel %vm1549, %v1353, 0
      %v1839 = vsel %vm1549, %v1355, 0
      %v1842 = vsel %vm1549, %v1357, 0
      %v1845 = vsel %vm1549, %v1359, 0
      %v1848 = vsel %vm1549, %v1361, 0
      %v1851 = vsel %vm1549, %v1363, 0
      %v1854 = vsel %vm1549, %v1365, 0
      %v1857 = vsel %vm1549, %v1367, 0
      %v1860 = vsel %vm1549, %v1369, 0
      %vm1862 = vcmask 1041408
      %v1864 = vsel %vm1862, %v1536, 0
      %1866 = vmatprep.subr.bf16.mxu0 0
      %1867 = vmatpush1.bf16.msra.mxu0 %v1524
      %1868 = vmatprep.subr.bf16.mxu0 0
      %1869 = vmatpush1.bf16.msra.mxu0 %v1525
      %1870 = vmatprep.subr.bf16.mxu0 0
      %1871 = vmatpush1.bf16.msra.mxu0 %v1526
      %1872 = vmatprep.subr.bf16.mxu0 0
      %1873 = vmatpush1.bf16.msra.mxu0 %v1527
      %1874 = vmatprep.subr.bf16.mxu0 0
      %1875 = vmatpush1.bf16.msra.mxu0 %v1528
      %1876 = vmatprep.subr.bf16.mxu0 0
      %1877 = vmatpush1.bf16.msra.mxu0 %v1529
      %1878 = vmatprep.subr.bf16.mxu0 0
      %1879 = vmatpush1.bf16.msra.mxu0 %v1530
      %1880 = vmatprep.subr.bf16.mxu0 0
      %1881 = vmatpush1.bf16.msra.mxu0 %v1531
      %1882 = vmatprep.subr.bf16.mxu0 0
      %1883 = vmatpush1.bf16.msra.mxu0 %v1532
      %1884 = vmatprep.subr.bf16.mxu0 0
      %1885 = vmatpush1.bf16.msra.mxu0 %v1533
      %1886 = vmatprep.subr.bf16.mxu0 0
      %1887 = vmatpush1.bf16.msra.mxu0 %v1534
      %1888 = vmatprep.subr.bf16.mxu0 0
      %1889 = vmatpush1.bf16.msra.mxu0 %v1535
      %1890 = vmatprep.subr.bf16.mxu0 0
      %1891 = vmatpush1.bf16.msra.mxu0 %v1864
      %1892 = vmatprep.subr.bf16.mxu0 0
      %1893 = vmatpush1.bf16.msra.mxu0 0
      %1894 = vmatprep.subr.bf16.mxu0 0
      %1895 = vmatpush1.bf16.msra.mxu0 0
      %1896 = vmatprep.subr.bf16.mxu0 0
      %1897 = vmatpush1.bf16.msra.mxu0 0
      %1898 = vmatprep.mubr.bf16.mxu0 %v1551
      %1899 = vmatmul.mubr.bf16.gmra.mrb[0].mxu0 %v1162
      %v1900 = vpop.f32.mrb[0].mxu0
      %v1901 = vadd.f32 0.0, %v1900
      %v1902 = vpop.f32.mrb[0].mxu0
      %v1903 = vpop.f32.mrb[0].mxu0
      %v1904 = vadd.f32 0.0, %v1903
      %v1905 = vpop.f32.mrb[0].mxu0
      %1906 = vmatprep.mubr.bf16.mxu0 %v1554
      %1907 = vmatmul.mubr.bf16.gmra.mrb[0].mxu0 %v1164
      %v1908 = vpop.f32.mrb[0].mxu0
      %v1909 = vadd.f32 0.0, %v1908
      %v1910 = vpop.f32.mrb[0].mxu0
      %v1911 = vpop.f32.mrb[0].mxu0
      %v1912 = vadd.f32 0.0, %v1911
      %v1913 = vpop.f32.mrb[0].mxu0
      %1914 = vmatprep.mubr.bf16.mxu0 %v1557
      %1915 = vmatmul.mubr.bf16.gmra.mrb[0].mxu0 %v1166
      %v1916 = vpop.f32.mrb[0].mxu0
      %v1917 = vadd.f32 0.0, %v1916
      %v1918 = vpop.f32.mrb[0].mxu0
      %v1919 = vpop.f32.mrb[0].mxu0
      %v1920 = vadd.f32 0.0, %v1919
      %v1921 = vpop.f32.mrb[0].mxu0
      %1922 = vmatprep.mubr.bf16.mxu0 %v1560
      %1923 = vmatmul.mubr.bf16.gmra.mrb[0].mxu0 %v1168
      %v1924 = vpop.f32.mrb[0].mxu0
      %v1925 = vadd.f32 0.0, %v1924
      %v1926 = vpop.f32.mrb[0].mxu0
      %v1927 = vpop.f32.mrb[0].mxu0
      %v1928 = vadd.f32 0.0, %v1927
      %v1929 = vpop.f32.mrb[0].mxu0
      %1930 = vmatprep.mubr.bf16.mxu0 %v1563
      %1931 = vmatmul.mubr.bf16.gmra.mrb[0].mxu0 %v1170
      %v1932 = vpop.f32.mrb[0].mxu0
      %v1933 = vadd.f32 0.0, %v1932
      %v1934 = vpop.f32.mrb[0].mxu0
      %v1935 = vpop.f32.mrb[0].mxu0
      %v1936 = vadd.f32 0.0, %v1935
      %v1937 = vpop.f32.mrb[0].mxu0
      %1938 = vmatprep.mubr.bf16.mxu0 %v1566
      %1939 = vmatmul.mubr.bf16.gmra.mrb[0].mxu0 %v1172
      %v1940 = vpop.f32.mrb[0].mxu0
      %v1941 = vadd.f32 0.0, %v1940
      %v1942 = vpop.f32.mrb[0].mxu0
      %v1943 = vpop.f32.mrb[0].mxu0
      %v1944 = vadd.f32 0.0, %v1943
      %v1945 = vpop.f32.mrb[0].mxu0
      %1946 = vmatprep.mubr.bf16.mxu0 %v1569
      %1947 = vmatmul.mubr.bf16.gmra.mrb[0].mxu0 %v1174
      %v1948 = vpop.f32.mrb[0].mxu0
      %v1949 = vadd.f32 0.0, %v1948
      %v1950 = vpop.f32.mrb[0].mxu0
      %v1951 = vpop.f32.mrb[0].mxu0
      %v1952 = vadd.f32 0.0, %v1951
      %v1953 = vpop.f32.mrb[0].mxu0
      %1954 = vmatprep.mubr.bf16.mxu0 %v1572
      %1955 = vmatmul.mubr.bf16.gmra.mrb[0].mxu0 %v1176
      %v1956 = vpop.f32.mrb[0].mxu0
      %v1957 = vadd.f32 0.0, %v1956
      %v1958 = vpop.f32.mrb[0].mxu0
      %v1959 = vpop.f32.mrb[0].mxu0
      %v1960 = vadd.f32 0.0, %v1959
      %v1961 = vpop.f32.mrb[0].mxu0
      %1962 = vmatprep.mubr.bf16.mxu0 %v1575
      %1963 = vmatmul.mubr.bf16.gmra.mrb[0].mxu0 %v1178
      %v1964 = vpop.f32.mrb[0].mxu0
      %v1965 = vadd.f32 0.0, %v1964
      %v1966 = vpop.f32.mrb[0].mxu0
      %v1967 = vpop.f32.mrb[0].mxu0
      %v1968 = vadd.f32 0.0, %v1967
      %v1969 = vpop.f32.mrb[0].mxu0
      %1970 = vmatprep.mubr.bf16.mxu0 %v1578
      %1971 = vmatmul.mubr.bf16.gmra.mrb[0].mxu0 %v1180
      %v1972 = vpop.f32.mrb[0].mxu0
      %v1973 = vadd.f32 0.0, %v1972
      %v1974 = vpop.f32.mrb[0].mxu0
      %v1975 = vpop.f32.mrb[0].mxu0
      %v1976 = vadd.f32 0.0, %v1975
      %v1977 = vpop.f32.mrb[0].mxu0
      %1978 = vmatprep.mubr.bf16.mxu0 %v1581
      %1979 = vmatmul.mubr.bf16.gmra.mrb[0].mxu0 %v1182
      %v1980 = vpop.f32.mrb[0].mxu0
      %v1981 = vadd.f32 0.0, %v1980
      %v1982 = vpop.f32.mrb[0].mxu0
      %v1983 = vpop.f32.mrb[0].mxu0
      %v1984 = vadd.f32 0.0, %v1983
      %v1985 = vpop.f32.mrb[0].mxu0
      %1986 = vmatprep.mubr.bf16.mxu0 %v1584
      %1987 = vmatmul.mubr.bf16.gmra.mrb[0].mxu0 %v1184
      %v1988 = vpop.f32.mrb[0].mxu0
      %v1989 = vadd.f32 0.0, %v1988
      %v1990 = vpop.f32.mrb[0].mxu0
      %v1991 = vpop.f32.mrb[0].mxu0
      %v1992 = vadd.f32 0.0, %v1991
      %v1993 = vpop.f32.mrb[0].mxu0
      %1994 = vmatprep.mubr.bf16.mxu0 %v1587
      %1995 = vmatmul.mubr.bf16.gmra.mrb[0].mxu0 %v1186
      %v1996 = vpop.f32.mrb[0].mxu0
      %v1997 = vadd.f32 0.0, %v1996
      %v1998 = vpop.f32.mrb[0].mxu0
      %v1999 = vpop.f32.mrb[0].mxu0
      %v2000 = vadd.f32 0.0, %v1999
      %v2001 = vpop.f32.mrb[0].mxu0
      %2002 = vmatprep.mubr.bf16.mxu0 %v1590
      %2003 = vmatmul.mubr.bf16.gmra.mrb[0].mxu0 %v1188
      %v2004 = vpop.f32.mrb[0].mxu0
      %v2005 = vadd.f32 0.0, %v2004
      %v2006 = vpop.f32.mrb[0].mxu0
      %v2007 = vpop.f32.mrb[0].mxu0
      %v2008 = vadd.f32 0.0, %v2007
      %v2009 = vpop.f32.mrb[0].mxu0
      %2010 = vmatprep.mubr.bf16.mxu0 %v1593
      %2011 = vmatmul.mubr.bf16.gmra.mrb[0].mxu0 %v1190
      %v2012 = vpop.f32.mrb[0].mxu0
      %v2013 = vadd.f32 0.0, %v2012
      %v2014 = vpop.f32.mrb[0].mxu0
      %v2015 = vpop.f32.mrb[0].mxu0
      %v2016 = vadd.f32 0.0, %v2015
      %v2017 = vpop.f32.mrb[0].mxu0
      %2018 = vmatprep.mubr.bf16.mxu0 %v1596
      %2019 = vmatmul.mubr.bf16.gmra.mrb[0].mxu0 %v1192
      %v2020 = vpop.f32.mrb[0].mxu0
      %v2021 = vadd.f32 0.0, %v2020
      %v2022 = vpop.f32.mrb[0].mxu0
      %v2023 = vpop.f32.mrb[0].mxu0
      %v2024 = vadd.f32 0.0, %v2023
      %v2025 = vpop.f32.mrb[0].mxu0
      %2026 = vmatprep.mubr.bf16.mxu0 %v1599
      %2027 = vmatmul.mubr.bf16.gmra.mrb[0].mxu0 %v1194
      %v2028 = vpop.f32.mrb[0].mxu0
      %v2029 = vadd.f32 0.0, %v2028
      %v2030 = vpop.f32.mrb[0].mxu0
      %v2031 = vpop.f32.mrb[0].mxu0
      %v2032 = vadd.f32 0.0, %v2031
      %v2033 = vpop.f32.mrb[0].mxu0
      %2034 = vmatprep.mubr.bf16.mxu0 %v1602
      %2035 = vmatmul.mubr.bf16.gmra.mrb[0].mxu0 %v1196
      %v2036 = vpop.f32.mrb[0].mxu0
      %v2037 = vadd.f32 0.0, %v2036
      %v2038 = vpop.f32.mrb[0].mxu0
      %v2039 = vpop.f32.mrb[0].mxu0
      %v2040 = vadd.f32 0.0, %v2039
      %v2041 = vpop.f32.mrb[0].mxu0
      %2042 = vmatprep.mubr.bf16.mxu0 %v1605
      %2043 = vmatmul.mubr.bf16.gmra.mrb[0].mxu0 %v1198
      %v2044 = vpop.f32.mrb[0].mxu0
      %v2045 = vadd.f32 0.0, %v2044
      %v2046 = vpop.f32.mrb[0].mxu0
      %v2047 = vpop.f32.mrb[0].mxu0
      %v2048 = vadd.f32 0.0, %v2047
      %v2049 = vpop.f32.mrb[0].mxu0
      %2050 = vmatprep.mubr.bf16.mxu0 %v1608
      %2051 = vmatmul.mubr.bf16.gmra.mrb[0].mxu0 %v1200
      %v2052 = vpop.f32.mrb[0].mxu0
      %v2053 = vadd.f32 0.0, %v2052
      %v2054 = vpop.f32.mrb[0].mxu0
      %v2055 = vpop.f32.mrb[0].mxu0
      %v2056 = vadd.f32 0.0, %v2055
      %v2057 = vpop.f32.mrb[0].mxu0
      %2058 = vmatprep.mubr.bf16.mxu0 %v1611
      %2059 = vmatmul.mubr.bf16.gmra.mrb[0].mxu0 %v1202
      %v2060 = vpop.f32.mrb[0].mxu0
      %v2061 = vadd.f32 0.0, %v2060
      %v2062 = vpop.f32.mrb[0].mxu0
      %v2063 = vpop.f32.mrb[0].mxu0
      %v2064 = vadd.f32 0.0, %v2063
      %v2065 = vpop.f32.mrb[0].mxu0
      %2066 = vmatprep.mubr.bf16.mxu0 %v1614
      %2067 = vmatmul.mubr.bf16.gmra.mrb[0].mxu0 %v1204
      %v2068 = vpop.f32.mrb[0].mxu0
      %v2069 = vadd.f32 0.0, %v2068
      %v2070 = vpop.f32.mrb[0].mxu0
      %v2071 = vpop.f32.mrb[0].mxu0
      %v2072 = vadd.f32 0.0, %v2071
      %v2073 = vpop.f32.mrb[0].mxu0
      %2074 = vmatprep.mubr.bf16.mxu0 %v1617
      %2075 = vmatmul.mubr.bf16.gmra.mrb[0].mxu0 %v1206
      %v2076 = vpop.f32.mrb[0].mxu0
      %v2077 = vadd.f32 0.0, %v2076
      %v2078 = vpop.f32.mrb[0].mxu0
      %v2079 = vpop.f32.mrb[0].mxu0
      %v2080 = vadd.f32 0.0, %v2079
      %v2081 = vpop.f32.mrb[0].mxu0
      %2082 = vmatprep.mubr.bf16.mxu0 %v1620
      %2083 = vmatmul.mubr.bf16.gmra.mrb[0].mxu0 %v1208
      %v2084 = vpop.f32.mrb[0].mxu0
      %v2085 = vadd.f32 0.0, %v2084
      %v2086 = vpop.f32.mrb[0].mxu0
      %v2087 = vpop.f32.mrb[0].mxu0
      %v2088 = vadd.f32 0.0, %v2087
      %v2089 = vpop.f32.mrb[0].mxu0
      %2090 = vmatprep.mubr.bf16.mxu0 %v1623
      %2091 = vmatmul.mubr.bf16.gmra.mrb[0].mxu0 %v1210
      %v2092 = vpop.f32.mrb[0].mxu0
      %v2093 = vadd.f32 0.0, %v2092
      %v2094 = vpop.f32.mrb[0].mxu0
      %v2095 = vpop.f32.mrb[0].mxu0
      %v2096 = vadd.f32 0.0, %v2095
      %v2097 = vpop.f32.mrb[0].mxu0
      %2098 = vmatprep.mubr.bf16.mxu0 %v1626
      %2099 = vmatmul.mubr.bf16.gmra.mrb[0].mxu0 %v1212
      %v2100 = vpop.f32.mrb[0].mxu0
      %v2101 = vadd.f32 0.0, %v2100
      %v2102 = vpop.f32.mrb[0].mxu0
      %v2103 = vpop.f32.mrb[0].mxu0
      %v2104 = vadd.f32 0.0, %v2103
      %v2105 = vpop.f32.mrb[0].mxu0
      %2106 = vmatprep.mubr.bf16.mxu0 %v1629
      %2107 = vmatmul.mubr.bf16.gmra.mrb[0].mxu0 %v1214
      %v2108 = vpop.f32.mrb[0].mxu0
      %v2109 = vadd.f32 0.0, %v2108
      %v2110 = vpop.f32.mrb[0].mxu0
      %v2111 = vpop.f32.mrb[0].mxu0
      %v2112 = vadd.f32 0.0, %v2111
      %v2113 = vpop.f32.mrb[0].mxu0
      %2114 = vmatprep.mubr.bf16.mxu0 %v1632
      %2115 = vmatmul.mubr.bf16.gmra.mrb[0].mxu0 %v1216
      %v2116 = vpop.f32.mrb[0].mxu0
      %v2117 = vadd.f32 0.0, %v2116
      %v2118 = vpop.f32.mrb[0].mxu0
      %v2119 = vpop.f32.mrb[0].mxu0
      %v2120 = vadd.f32 0.0, %v2119
      %v2121 = vpop.f32.mrb[0].mxu0
      %2122 = vmatprep.mubr.bf16.mxu0 %v1635
      %2123 = vmatmul.mubr.bf16.gmra.mrb[0].mxu0 %v1218
      %v2124 = vpop.f32.mrb[0].mxu0
      %v2125 = vadd.f32 0.0, %v2124
      %v2126 = vpop.f32.mrb[0].mxu0
      %v2127 = vpop.f32.mrb[0].mxu0
      %v2128 = vadd.f32 0.0, %v2127
      %v2129 = vpop.f32.mrb[0].mxu0
      %2130 = vmatprep.mubr.bf16.mxu0 %v1638
      %2131 = vmatmul.mubr.bf16.gmra.mrb[0].mxu0 %v1220
      %v2132 = vpop.f32.mrb[0].mxu0
      %v2133 = vadd.f32 0.0, %v2132
      %v2134 = vpop.f32.mrb[0].mxu0
      %v2135 = vpop.f32.mrb[0].mxu0
      %v2136 = vadd.f32 0.0, %v2135
      %v2137 = vpop.f32.mrb[0].mxu0
      %2138 = vmatprep.mubr.bf16.mxu0 %v1641
      %2139 = vmatmul.mubr.bf16.gmra.mrb[0].mxu0 %v1222
      %v2140 = vpop.f32.mrb[0].mxu0
      %v2141 = vadd.f32 0.0, %v2140
      %v2142 = vpop.f32.mrb[0].mxu0
      %v2143 = vpop.f32.mrb[0].mxu0
      %v2144 = vadd.f32 0.0, %v2143
      %v2145 = vpop.f32.mrb[0].mxu0
      %2146 = vmatprep.mubr.bf16.mxu0 %v1644
      %2147 = vmatmul.mubr.bf16.gmra.mrb[0].mxu0 %v1224
      %v2148 = vpop.f32.mrb[0].mxu0
      %v2149 = vadd.f32 0.0, %v2148
      %v2150 = vpop.f32.mrb[0].mxu0
      %v2151 = vpop.f32.mrb[0].mxu0
      %v2152 = vadd.f32 0.0, %v2151
      %v2153 = vpop.f32.mrb[0].mxu0
      %2154 = vmatprep.mubr.bf16.mxu0 %v1647
      %2155 = vmatmul.mubr.bf16.gmra.mrb[0].mxu0 %v1226
      %v2156 = vpop.f32.mrb[0].mxu0
      %v2157 = vadd.f32 0.0, %v2156
      %v2158 = vpop.f32.mrb[0].mxu0
      %v2159 = vpop.f32.mrb[0].mxu0
      %v2160 = vadd.f32 0.0, %v2159
      %v2161 = vpop.f32.mrb[0].mxu0
      %2162 = vmatprep.mubr.bf16.mxu0 %v1650
      %2163 = vmatmul.mubr.bf16.gmra.mrb[0].mxu0 %v1228
      %v2164 = vpop.f32.mrb[0].mxu0
      %v2165 = vadd.f32 0.0, %v2164
      %v2166 = vpop.f32.mrb[0].mxu0
      %v2167 = vpop.f32.mrb[0].mxu0
      %v2168 = vadd.f32 0.0, %v2167
      %v2169 = vpop.f32.mrb[0].mxu0
      %2170 = vmatprep.mubr.bf16.mxu0 %v1653
      %2171 = vmatmul.mubr.bf16.gmra.mrb[0].mxu0 %v1230
      %v2172 = vpop.f32.mrb[0].mxu0
      %v2173 = vadd.f32 0.0, %v2172
      %v2174 = vpop.f32.mrb[0].mxu0
      %v2175 = vpop.f32.mrb[0].mxu0
      %v2176 = vadd.f32 0.0, %v2175
      %v2177 = vpop.f32.mrb[0].mxu0
      %2178 = vmatprep.mubr.bf16.mxu0 %v1656
      %2179 = vmatmul.mubr.bf16.gmra.mrb[0].mxu0 %v1232
      %v2180 = vpop.f32.mrb[0].mxu0
      %v2181 = vadd.f32 0.0, %v2180
      %v2182 = vpop.f32.mrb[0].mxu0
      %v2183 = vpop.f32.mrb[0].mxu0
      %v2184 = vadd.f32 0.0, %v2183
      %v2185 = vpop.f32.mrb[0].mxu0
      %2186 = vmatprep.mubr.bf16.mxu0 %v1659
      %2187 = vmatmul.mubr.bf16.gmra.mrb[0].mxu0 %v1234
      %v2188 = vpop.f32.mrb[0].mxu0
      %v2189 = vadd.f32 0.0, %v2188
      %v2190 = vpop.f32.mrb[0].mxu0
      %v2191 = vpop.f32.mrb[0].mxu0
      %v2192 = vadd.f32 0.0, %v2191
      %v2193 = vpop.f32.mrb[0].mxu0
      %2194 = vmatprep.mubr.bf16.mxu0 %v1662
      %2195 = vmatmul.mubr.bf16.gmra.mrb[0].mxu0 %v1236
      %v2196 = vpop.f32.mrb[0].mxu0
      %v2197 = vadd.f32 0.0, %v2196
      %v2198 = vpop.f32.mrb[0].mxu0
      %v2199 = vpop.f32.mrb[0].mxu0
      %v2200 = vadd.f32 0.0, %v2199
      %v2201 = vpop.f32.mrb[0].mxu0
      %2202 = vmatprep.mubr.bf16.mxu0 %v1665
      %2203 = vmatmul.mubr.bf16.gmra.mrb[0].mxu0 %v1238
      %v2204 = vpop.f32.mrb[0].mxu0
      %v2205 = vadd.f32 0.0, %v2204
      %v2206 = vpop.f32.mrb[0].mxu0
      %v2207 = vpop.f32.mrb[0].mxu0
      %v2208 = vadd.f32 0.0, %v2207
      %v2209 = vpop.f32.mrb[0].mxu0
      %2210 = vmatprep.mubr.bf16.mxu0 %v1668
      %2211 = vmatmul.mubr.bf16.gmra.mrb[0].mxu0 %v1240
      %v2212 = vpop.f32.mrb[0].mxu0
      %v2213 = vadd.f32 0.0, %v2212
      %v2214 = vpop.f32.mrb[0].mxu0
      %v2215 = vpop.f32.mrb[0].mxu0
      %v2216 = vadd.f32 0.0, %v2215
      %v2217 = vpop.f32.mrb[0].mxu0
      %2218 = vmatprep.mubr.bf16.mxu0 %v1671
      %2219 = vmatmul.mubr.bf16.gmra.mrb[0].mxu0 %v1242
      %v2220 = vpop.f32.mrb[0].mxu0
      %v2221 = vadd.f32 0.0, %v2220
      %v2222 = vpop.f32.mrb[0].mxu0
      %v2223 = vpop.f32.mrb[0].mxu0
      %v2224 = vadd.f32 0.0, %v2223
      %v2225 = vpop.f32.mrb[0].mxu0
      %2226 = vmatprep.mubr.bf16.mxu0 %v1674
      %2227 = vmatmul.mubr.bf16.gmra.mrb[0].mxu0 %v1244
      %v2228 = vpop.f32.mrb[0].mxu0
      %v2229 = vadd.f32 0.0, %v2228
      %v2230 = vpop.f32.mrb[0].mxu0
      %v2231 = vpop.f32.mrb[0].mxu0
      %v2232 = vadd.f32 0.0, %v2231
      %v2233 = vpop.f32.mrb[0].mxu0
      %2234 = vmatprep.mubr.bf16.mxu0 %v1677
      %2235 = vmatmul.mubr.bf16.gmra.mrb[0].mxu0 %v1246
      %v2236 = vpop.f32.mrb[0].mxu0
      %v2237 = vadd.f32 0.0, %v2236
      %v2238 = vpop.f32.mrb[0].mxu0
      %v2239 = vpop.f32.mrb[0].mxu0
      %v2240 = vadd.f32 0.0, %v2239
      %v2241 = vpop.f32.mrb[0].mxu0
      %2242 = vmatprep.mubr.bf16.mxu0 %v1680
      %2243 = vmatmul.mubr.bf16.gmra.mrb[0].mxu0 %v1248
      %v2244 = vpop.f32.mrb[0].mxu0
      %v2245 = vadd.f32 0.0, %v2244
      %v2246 = vpop.f32.mrb[0].mxu0
      %v2247 = vpop.f32.mrb[0].mxu0
      %v2248 = vadd.f32 0.0, %v2247
      %v2249 = vpop.f32.mrb[0].mxu0
      %2250 = vmatprep.mubr.bf16.mxu0 %v1683
      %2251 = vmatmul.mubr.bf16.gmra.mrb[0].mxu0 %v1250
      %v2252 = vpop.f32.mrb[0].mxu0
      %v2253 = vadd.f32 0.0, %v2252
      %v2254 = vpop.f32.mrb[0].mxu0
      %v2255 = vpop.f32.mrb[0].mxu0
      %v2256 = vadd.f32 0.0, %v2255
      %v2257 = vpop.f32.mrb[0].mxu0
      %2258 = vmatprep.mubr.bf16.mxu0 %v1686
      %2259 = vmatmul.mubr.bf16.gmra.mrb[0].mxu0 %v1252
      %v2260 = vpop.f32.mrb[0].mxu0
      %v2261 = vadd.f32 0.0, %v2260
      %v2262 = vpop.f32.mrb[0].mxu0
      %v2263 = vpop.f32.mrb[0].mxu0
      %v2264 = vadd.f32 0.0, %v2263
      %v2265 = vpop.f32.mrb[0].mxu0
      %2266 = vmatprep.mubr.bf16.mxu0 %v1689
      %2267 = vmatmul.mubr.bf16.gmra.mrb[0].mxu0 %v1254
      %v2268 = vpop.f32.mrb[0].mxu0
      %v2269 = vadd.f32 0.0, %v2268
      %v2270 = vpop.f32.mrb[0].mxu0
      %v2271 = vpop.f32.mrb[0].mxu0
      %v2272 = vadd.f32 0.0, %v2271
      %v2273 = vpop.f32.mrb[0].mxu0
      %2274 = vmatprep.mubr.bf16.mxu0 %v1692
      %2275 = vmatmul.mubr.bf16.gmra.mrb[0].mxu0 %v1256
      %v2276 = vpop.f32.mrb[0].mxu0
      %v2277 = vadd.f32 0.0, %v2276
      %v2278 = vpop.f32.mrb[0].mxu0
      %v2279 = vpop.f32.mrb[0].mxu0
      %v2280 = vadd.f32 0.0, %v2279
      %v2281 = vpop.f32.mrb[0].mxu0
      %2282 = vmatprep.mubr.bf16.mxu0 %v1695
      %2283 = vmatmul.mubr.bf16.gmra.mrb[0].mxu0 %v1258
      %v2284 = vpop.f32.mrb[0].mxu0
      %v2285 = vadd.f32 0.0, %v2284
      %v2286 = vpop.f32.mrb[0].mxu0
      %v2287 = vpop.f32.mrb[0].mxu0
      %v2288 = vadd.f32 0.0, %v2287
      %v2289 = vpop.f32.mrb[0].mxu0
      %2290 = vmatprep.mubr.bf16.mxu0 %v1698
      %2291 = vmatmul.mubr.bf16.gmra.mrb[0].mxu0 %v1260
      %v2292 = vpop.f32.mrb[0].mxu0
      %v2293 = vadd.f32 0.0, %v2292
      %v2294 = vpop.f32.mrb[0].mxu0
      %v2295 = vpop.f32.mrb[0].mxu0
      %v2296 = vadd.f32 0.0, %v2295
      %v2297 = vpop.f32.mrb[0].mxu0
      %2298 = vmatprep.mubr.bf16.mxu0 %v1701
      %2299 = vmatmul.mubr.bf16.gmra.mrb[0].mxu0 %v1262
      %v2300 = vpop.f32.mrb[0].mxu0
      %v2301 = vadd.f32 0.0, %v2300
      %v2302 = vpop.f32.mrb[0].mxu0
      %v2303 = vpop.f32.mrb[0].mxu0
      %v2304 = vadd.f32 0.0, %v2303
      %v2305 = vpop.f32.mrb[0].mxu0
      %2306 = vmatprep.mubr.bf16.mxu0 %v1704
      %2307 = vmatmul.mubr.bf16.gmra.mrb[0].mxu0 %v1264
      %v2308 = vpop.f32.mrb[0].mxu0
      %v2309 = vadd.f32 0.0, %v2308
      %v2310 = vpop.f32.mrb[0].mxu0
      %v2311 = vpop.f32.mrb[0].mxu0
      %v2312 = vadd.f32 0.0, %v2311
      %v2313 = vpop.f32.mrb[0].mxu0
      %2314 = vmatprep.mubr.bf16.mxu0 %v1707
      %2315 = vmatmul.mubr.bf16.gmra.mrb[0].mxu0 %v1266
      %v2316 = vpop.f32.mrb[0].mxu0
      %v2317 = vadd.f32 0.0, %v2316
      %v2318 = vpop.f32.mrb[0].mxu0
      %v2319 = vpop.f32.mrb[0].mxu0
      %v2320 = vadd.f32 0.0, %v2319
      %v2321 = vpop.f32.mrb[0].mxu0
      %2322 = vmatprep.mubr.bf16.mxu0 %v1710
      %2323 = vmatmul.mubr.bf16.gmra.mrb[0].mxu0 %v1268
      %v2324 = vpop.f32.mrb[0].mxu0
      %v2325 = vadd.f32 0.0, %v2324
      %v2326 = vpop.f32.mrb[0].mxu0
      %v2327 = vpop.f32.mrb[0].mxu0
      %v2328 = vadd.f32 0.0, %v2327
      %v2329 = vpop.f32.mrb[0].mxu0
      %2330 = vmatprep.mubr.bf16.mxu0 %v1713
      %2331 = vmatmul.mubr.bf16.gmra.mrb[0].mxu0 %v1270
      %v2332 = vpop.f32.mrb[0].mxu0
      %v2333 = vadd.f32 0.0, %v2332
      %v2334 = vpop.f32.mrb[0].mxu0
      %v2335 = vpop.f32.mrb[0].mxu0
      %v2336 = vadd.f32 0.0, %v2335
      %v2337 = vpop.f32.mrb[0].mxu0
      %2338 = vmatprep.mubr.bf16.mxu0 %v1716
      %2339 = vmatmul.mubr.bf16.gmra.mrb[0].mxu0 %v1272
      %v2340 = vpop.f32.mrb[0].mxu0
      %v2341 = vadd.f32 0.0, %v2340
      %v2342 = vpop.f32.mrb[0].mxu0
      %v2343 = vpop.f32.mrb[0].mxu0
      %v2344 = vadd.f32 0.0, %v2343
      %v2345 = vpop.f32.mrb[0].mxu0
      %2346 = vmatprep.mubr.bf16.mxu0 %v1719
      %2347 = vmatmul.mubr.bf16.gmra.mrb[0].mxu0 %v1274
      %v2348 = vpop.f32.mrb[0].mxu0
      %v2349 = vadd.f32 0.0, %v2348
      %v2350 = vpop.f32.mrb[0].mxu0
      %v2351 = vpop.f32.mrb[0].mxu0
      %v2352 = vadd.f32 0.0, %v2351
      %v2353 = vpop.f32.mrb[0].mxu0
      %2354 = vmatprep.mubr.bf16.mxu0 %v1722
      %2355 = vmatmul.mubr.bf16.gmra.mrb[0].mxu0 %v1276
      %v2356 = vpop.f32.mrb[0].mxu0
      %v2357 = vadd.f32 0.0, %v2356
      %v2358 = vpop.f32.mrb[0].mxu0
      %v2359 = vpop.f32.mrb[0].mxu0
      %v2360 = vadd.f32 0.0, %v2359
      %v2361 = vpop.f32.mrb[0].mxu0
      %2362 = vmatprep.mubr.bf16.mxu0 %v1725
      %2363 = vmatmul.mubr.bf16.gmra.mrb[0].mxu0 %v1278
      %v2364 = vpop.f32.mrb[0].mxu0
      %v2365 = vadd.f32 0.0, %v2364
      %v2366 = vpop.f32.mrb[0].mxu0
      %v2367 = vpop.f32.mrb[0].mxu0
      %v2368 = vadd.f32 0.0, %v2367
      %v2369 = vpop.f32.mrb[0].mxu0
      %2370 = vmatprep.mubr.bf16.mxu0 %v1728
      %2371 = vmatmul.mubr.bf16.gmra.mrb[0].mxu0 %v1280
      %v2372 = vpop.f32.mrb[0].mxu0
      %v2373 = vadd.f32 0.0, %v2372
      %v2374 = vpop.f32.mrb[0].mxu0
      %v2375 = vpop.f32.mrb[0].mxu0
      %v2376 = vadd.f32 0.0, %v2375
      %v2377 = vpop.f32.mrb[0].mxu0
      %2378 = vmatprep.mubr.bf16.mxu0 %v1731
      %2379 = vmatmul.mubr.bf16.gmra.mrb[0].mxu0 %v1282
      %v2380 = vpop.f32.mrb[0].mxu0
      %v2381 = vadd.f32 0.0, %v2380
      %v2382 = vpop.f32.mrb[0].mxu0
      %v2383 = vpop.f32.mrb[0].mxu0
      %v2384 = vadd.f32 0.0, %v2383
      %v2385 = vpop.f32.mrb[0].mxu0
      %2386 = vmatprep.mubr.bf16.mxu0 %v1734
      %2387 = vmatmul.mubr.bf16.gmra.mrb[0].mxu0 %v1284
      %v2388 = vpop.f32.mrb[0].mxu0
      %v2389 = vadd.f32 0.0, %v2388
      %v2390 = vpop.f32.mrb[0].mxu0
      %v2391 = vpop.f32.mrb[0].mxu0
      %v2392 = vadd.f32 0.0, %v2391
      %v2393 = vpop.f32.mrb[0].mxu0
      %2394 = vmatprep.mubr.bf16.mxu0 %v1737
      %2395 = vmatmul.mubr.bf16.gmra.mrb[0].mxu0 %v1286
      %v2396 = vpop.f32.mrb[0].mxu0
      %v2397 = vadd.f32 0.0, %v2396
      %v2398 = vpop.f32.mrb[0].mxu0
      %v2399 = vpop.f32.mrb[0].mxu0
      %v2400 = vadd.f32 0.0, %v2399
      %v2401 = vpop.f32.mrb[0].mxu0
      %2402 = vmatprep.mubr.bf16.mxu0 %v1740
      %2403 = vmatmul.mubr.bf16.gmra.mrb[0].mxu0 %v1288
      %v2404 = vpop.f32.mrb[0].mxu0
      %v2405 = vadd.f32 0.0, %v2404
      %v2406 = vpop.f32.mrb[0].mxu0
      %v2407 = vpop.f32.mrb[0].mxu0
      %v2408 = vadd.f32 0.0, %v2407
      %v2409 = vpop.f32.mrb[0].mxu0
      %2410 = vmatprep.mubr.bf16.mxu0 %v1743
      %2411 = vmatmul.mubr.bf16.gmra.mrb[0].mxu0 %v1290
      %v2412 = vpop.f32.mrb[0].mxu0
      %v2413 = vadd.f32 0.0, %v2412
      %v2414 = vpop.f32.mrb[0].mxu0
      %v2415 = vpop.f32.mrb[0].mxu0
      %v2416 = vadd.f32 0.0, %v2415
      %v2417 = vpop.f32.mrb[0].mxu0
      %2418 = vmatprep.mubr.bf16.mxu0 %v1746
      %2419 = vmatmul.mubr.bf16.gmra.mrb[0].mxu0 %v1292
      %v2420 = vpop.f32.mrb[0].mxu0
      %v2421 = vadd.f32 0.0, %v2420
      %v2422 = vpop.f32.mrb[0].mxu0
      %v2423 = vpop.f32.mrb[0].mxu0
      %v2424 = vadd.f32 0.0, %v2423
      %v2425 = vpop.f32.mrb[0].mxu0
      %2426 = vmatprep.mubr.bf16.mxu0 %v1749
      %2427 = vmatmul.mubr.bf16.gmra.mrb[0].mxu0 %v1294
      %v2428 = vpop.f32.mrb[0].mxu0
      %v2429 = vadd.f32 0.0, %v2428
      %v2430 = vpop.f32.mrb[0].mxu0
      %v2431 = vpop.f32.mrb[0].mxu0
      %v2432 = vadd.f32 0.0, %v2431
      %v2433 = vpop.f32.mrb[0].mxu0
      %2434 = vmatprep.mubr.bf16.mxu0 %v1752
      %2435 = vmatmul.mubr.bf16.gmra.mrb[0].mxu0 %v1296
      %v2436 = vpop.f32.mrb[0].mxu0
      %v2437 = vadd.f32 0.0, %v2436
      %v2438 = vpop.f32.mrb[0].mxu0
      %v2439 = vpop.f32.mrb[0].mxu0
      %v2440 = vadd.f32 0.0, %v2439
      %v2441 = vpop.f32.mrb[0].mxu0
      %2442 = vmatprep.mubr.bf16.mxu0 %v1755
      %2443 = vmatmul.mubr.bf16.gmra.mrb[0].mxu0 %v1298
      %v2444 = vpop.f32.mrb[0].mxu0
      %v2445 = vadd.f32 0.0, %v2444
      %v2446 = vpop.f32.mrb[0].mxu0
      %v2447 = vpop.f32.mrb[0].mxu0
      %v2448 = vadd.f32 0.0, %v2447
      %v2449 = vpop.f32.mrb[0].mxu0
      %2450 = vmatprep.mubr.bf16.mxu0 %v1758
      %2451 = vmatmul.mubr.bf16.gmra.mrb[0].mxu0 %v1300
      %v2452 = vpop.f32.mrb[0].mxu0
      %v2453 = vadd.f32 0.0, %v2452
      %v2454 = vpop.f32.mrb[0].mxu0
      %v2455 = vpop.f32.mrb[0].mxu0
      %v2456 = vadd.f32 0.0, %v2455
      %v2457 = vpop.f32.mrb[0].mxu0
      %2458 = vmatprep.mubr.bf16.mxu0 %v1761
      %2459 = vmatmul.mubr.bf16.gmra.mrb[0].mxu0 %v1302
      %v2460 = vpop.f32.mrb[0].mxu0
      %v2461 = vadd.f32 0.0, %v2460
      %v2462 = vpop.f32.mrb[0].mxu0
      %v2463 = vpop.f32.mrb[0].mxu0
      %v2464 = vadd.f32 0.0, %v2463
      %v2465 = vpop.f32.mrb[0].mxu0
      %2466 = vmatprep.mubr.bf16.mxu0 %v1764
      %2467 = vmatmul.mubr.bf16.gmra.mrb[0].mxu0 %v1304
      %v2468 = vpop.f32.mrb[0].mxu0
      %v2469 = vadd.f32 0.0, %v2468
      %v2470 = vpop.f32.mrb[0].mxu0
      %v2471 = vpop.f32.mrb[0].mxu0
      %v2472 = vadd.f32 0.0, %v2471
      %v2473 = vpop.f32.mrb[0].mxu0
      %2474 = vmatprep.mubr.bf16.mxu0 %v1767
      %2475 = vmatmul.mubr.bf16.gmra.mrb[0].mxu0 %v1306
      %v2476 = vpop.f32.mrb[0].mxu0
      %v2477 = vadd.f32 0.0, %v2476
      %v2478 = vpop.f32.mrb[0].mxu0
      %v2479 = vpop.f32.mrb[0].mxu0
      %v2480 = vadd.f32 0.0, %v2479
      %v2481 = vpop.f32.mrb[0].mxu0
      %2482 = vmatprep.mubr.bf16.mxu0 %v1770
      %2483 = vmatmul.mubr.bf16.gmra.mrb[0].mxu0 %v1308
      %v2484 = vpop.f32.mrb[0].mxu0
      %v2485 = vadd.f32 0.0, %v2484
      %v2486 = vpop.f32.mrb[0].mxu0
      %v2487 = vpop.f32.mrb[0].mxu0
      %v2488 = vadd.f32 0.0, %v2487
      %v2489 = vpop.f32.mrb[0].mxu0
      %2490 = vmatprep.mubr.bf16.mxu0 %v1773
      %2491 = vmatmul.mubr.bf16.gmra.mrb[0].mxu0 %v1310
      %v2492 = vpop.f32.mrb[0].mxu0
      %v2493 = vadd.f32 0.0, %v2492
      %v2494 = vpop.f32.mrb[0].mxu0
      %v2495 = vpop.f32.mrb[0].mxu0
      %v2496 = vadd.f32 0.0, %v2495
      %v2497 = vpop.f32.mrb[0].mxu0
      %2498 = vmatprep.mubr.bf16.mxu0 %v1776
      %2499 = vmatmul.mubr.bf16.gmra.mrb[0].mxu0 %v1312
      %v2500 = vpop.f32.mrb[0].mxu0
      %v2501 = vadd.f32 0.0, %v2500
      %v2502 = vpop.f32.mrb[0].mxu0
      %v2503 = vpop.f32.mrb[0].mxu0
      %v2504 = vadd.f32 0.0, %v2503
      %v2505 = vpop.f32.mrb[0].mxu0
      %2506 = vmatprep.mubr.bf16.mxu0 %v1779
      %2507 = vmatmul.mubr.bf16.gmra.mrb[0].mxu0 %v1314
      %v2508 = vpop.f32.mrb[0].mxu0
      %v2509 = vadd.f32 0.0, %v2508
      %v2510 = vpop.f32.mrb[0].mxu0
      %v2511 = vpop.f32.mrb[0].mxu0
      %v2512 = vadd.f32 0.0, %v2511
      %v2513 = vpop.f32.mrb[0].mxu0
      %2514 = vmatprep.mubr.bf16.mxu0 %v1782
      %2515 = vmatmul.mubr.bf16.gmra.mrb[0].mxu0 %v1316
      %v2516 = vpop.f32.mrb[0].mxu0
      %v2517 = vadd.f32 0.0, %v2516
      %v2518 = vpop.f32.mrb[0].mxu0
      %v2519 = vpop.f32.mrb[0].mxu0
      %v2520 = vadd.f32 0.0, %v2519
      %v2521 = vpop.f32.mrb[0].mxu0
      %2522 = vmatprep.mubr.bf16.mxu0 %v1785
      %2523 = vmatmul.mubr.bf16.gmra.mrb[0].mxu0 %v1318
      %v2524 = vpop.f32.mrb[0].mxu0
      %v2525 = vadd.f32 0.0, %v2524
      %v2526 = vpop.f32.mrb[0].mxu0
      %v2527 = vpop.f32.mrb[0].mxu0
      %v2528 = vadd.f32 0.0, %v2527
      %v2529 = vpop.f32.mrb[0].mxu0
      %2530 = vmatprep.mubr.bf16.mxu0 %v1788
      %2531 = vmatmul.mubr.bf16.gmra.mrb[0].mxu0 %v1320
      %v2532 = vpop.f32.mrb[0].mxu0
      %v2533 = vadd.f32 0.0, %v2532
      %v2534 = vpop.f32.mrb[0].mxu0
      %v2535 = vpop.f32.mrb[0].mxu0
      %v2536 = vadd.f32 0.0, %v2535
      %v2537 = vpop.f32.mrb[0].mxu0
      %2538 = vmatprep.mubr.bf16.mxu0 %v1791
      %2539 = vmatmul.mubr.bf16.gmra.mrb[0].mxu0 %v1322
      %v2540 = vpop.f32.mrb[0].mxu0
      %v2541 = vadd.f32 0.0, %v2540
      %v2542 = vpop.f32.mrb[0].mxu0
      %v2543 = vpop.f32.mrb[0].mxu0
      %v2544 = vadd.f32 0.0, %v2543
      %v2545 = vpop.f32.mrb[0].mxu0
      %2546 = vmatprep.mubr.bf16.mxu0 %v1794
      %2547 = vmatmul.mubr.bf16.gmra.mrb[0].mxu0 %v1324
      %v2548 = vpop.f32.mrb[0].mxu0
      %v2549 = vadd.f32 0.0, %v2548
      %v2550 = vpop.f32.mrb[0].mxu0
      %v2551 = vpop.f32.mrb[0].mxu0
      %v2552 = vadd.f32 0.0, %v2551
      %v2553 = vpop.f32.mrb[0].mxu0
      %2554 = vmatprep.mubr.bf16.mxu0 %v1797
      %2555 = vmatmul.mubr.bf16.gmra.mrb[0].mxu0 %v1326
      %v2556 = vpop.f32.mrb[0].mxu0
      %v2557 = vadd.f32 0.0, %v2556
      %v2558 = vpop.f32.mrb[0].mxu0
      %v2559 = vpop.f32.mrb[0].mxu0
      %v2560 = vadd.f32 0.0, %v2559
      %v2561 = vpop.f32.mrb[0].mxu0
      %2562 = vmatprep.mubr.bf16.mxu0 %v1800
      %2563 = vmatmul.mubr.bf16.gmra.mrb[0].mxu0 %v1328
      %v2564 = vpop.f32.mrb[0].mxu0
      %v2565 = vadd.f32 0.0, %v2564
      %v2566 = vpop.f32.mrb[0].mxu0
      %v2567 = vpop.f32.mrb[0].mxu0
      %v2568 = vadd.f32 0.0, %v2567
      %v2569 = vpop.f32.mrb[0].mxu0
      %2570 = vmatprep.mubr.bf16.mxu0 %v1803
      %2571 = vmatmul.mubr.bf16.gmra.mrb[0].mxu0 %v1330
      %v2572 = vpop.f32.mrb[0].mxu0
      %v2573 = vadd.f32 0.0, %v2572
      %v2574 = vpop.f32.mrb[0].mxu0
      %v2575 = vpop.f32.mrb[0].mxu0
      %v2576 = vadd.f32 0.0, %v2575
      %v2577 = vpop.f32.mrb[0].mxu0
      %2578 = vmatprep.mubr.bf16.mxu0 %v1806
      %2579 = vmatmul.mubr.bf16.gmra.mrb[0].mxu0 %v1332
      %v2580 = vpop.f32.mrb[0].mxu0
      %v2581 = vadd.f32 0.0, %v2580
      %v2582 = vpop.f32.mrb[0].mxu0
      %v2583 = vpop.f32.mrb[0].mxu0
      %v2584 = vadd.f32 0.0, %v2583
      %v2585 = vpop.f32.mrb[0].mxu0
      %2586 = vmatprep.mubr.bf16.mxu0 %v1809
      %2587 = vmatmul.mubr.bf16.gmra.mrb[0].mxu0 %v1334
      %v2588 = vpop.f32.mrb[0].mxu0
      %v2589 = vadd.f32 0.0, %v2588
      %v2590 = vpop.f32.mrb[0].mxu0
      %v2591 = vpop.f32.mrb[0].mxu0
      %v2592 = vadd.f32 0.0, %v2591
      %v2593 = vpop.f32.mrb[0].mxu0
      %2594 = vmatprep.mubr.bf16.mxu0 %v1812
      %2595 = vmatmul.mubr.bf16.gmra.mrb[0].mxu0 %v1336
      %v2596 = vpop.f32.mrb[0].mxu0
      %v2597 = vadd.f32 0.0, %v2596
      %v2598 = vpop.f32.mrb[0].mxu0
      %v2599 = vpop.f32.mrb[0].mxu0
      %v2600 = vadd.f32 0.0, %v2599
      %v2601 = vpop.f32.mrb[0].mxu0
      %2602 = vmatprep.mubr.bf16.mxu0 %v1815
      %2603 = vmatmul.mubr.bf16.gmra.mrb[0].mxu0 %v1338
      %v2604 = vpop.f32.mrb[0].mxu0
      %v2605 = vadd.f32 0.0, %v2604
      %v2606 = vpop.f32.mrb[0].mxu0
      %v2607 = vpop.f32.mrb[0].mxu0
      %v2608 = vadd.f32 0.0, %v2607
      %v2609 = vpop.f32.mrb[0].mxu0
      %2610 = vmatprep.mubr.bf16.mxu0 %v1818
      %2611 = vmatmul.mubr.bf16.gmra.mrb[0].mxu0 %v1340
      %v2612 = vpop.f32.mrb[0].mxu0
      %v2613 = vadd.f32 0.0, %v2612
      %v2614 = vpop.f32.mrb[0].mxu0
      %v2615 = vpop.f32.mrb[0].mxu0
      %v2616 = vadd.f32 0.0, %v2615
      %v2617 = vpop.f32.mrb[0].mxu0
      %2618 = vmatprep.mubr.bf16.mxu0 %v1821
      %2619 = vmatmul.mubr.bf16.gmra.mrb[0].mxu0 %v1342
      %v2620 = vpop.f32.mrb[0].mxu0
      %v2621 = vadd.f32 0.0, %v2620
      %v2622 = vpop.f32.mrb[0].mxu0
      %v2623 = vpop.f32.mrb[0].mxu0
      %v2624 = vadd.f32 0.0, %v2623
      %v2625 = vpop.f32.mrb[0].mxu0
      %2626 = vmatprep.mubr.bf16.mxu0 %v1824
      %2627 = vmatmul.mubr.bf16.gmra.mrb[0].mxu0 %v1344
      %v2628 = vpop.f32.mrb[0].mxu0
      %v2629 = vadd.f32 0.0, %v2628
      %v2630 = vpop.f32.mrb[0].mxu0
      %v2631 = vpop.f32.mrb[0].mxu0
      %v2632 = vadd.f32 0.0, %v2631
      %v2633 = vpop.f32.mrb[0].mxu0
      %2634 = vmatprep.mubr.bf16.mxu0 %v1827
      %2635 = vmatmul.mubr.bf16.gmra.mrb[0].mxu0 %v1346
      %v2636 = vpop.f32.mrb[0].mxu0
      %v2637 = vadd.f32 0.0, %v2636
      %v2638 = vpop.f32.mrb[0].mxu0
      %v2639 = vpop.f32.mrb[0].mxu0
      %v2640 = vadd.f32 0.0, %v2639
      %v2641 = vpop.f32.mrb[0].mxu0
      %2642 = vmatprep.mubr.bf16.mxu0 %v1830
      %2643 = vmatmul.mubr.bf16.gmra.mrb[0].mxu0 %v1348
      %v2644 = vpop.f32.mrb[0].mxu0
      %v2645 = vadd.f32 0.0, %v2644
      %v2646 = vpop.f32.mrb[0].mxu0
      %v2647 = vpop.f32.mrb[0].mxu0
      %v2648 = vadd.f32 0.0, %v2647
      %v2649 = vpop.f32.mrb[0].mxu0
      %2650 = vmatprep.mubr.bf16.mxu0 %v1833
      %2651 = vmatmul.mubr.bf16.gmra.mrb[0].mxu0 %v1350
      %v2652 = vpop.f32.mrb[0].mxu0
      %v2653 = vadd.f32 0.0, %v2652
      %v2654 = vpop.f32.mrb[0].mxu0
      %v2655 = vpop.f32.mrb[0].mxu0
      %v2656 = vadd.f32 0.0, %v2655
      %v2657 = vpop.f32.mrb[0].mxu0
      %2658 = vmatprep.mubr.bf16.mxu0 %v1836
      %2659 = vmatmul.mubr.bf16.gmra.mrb[0].mxu0 %v1352
      %v2660 = vpop.f32.mrb[0].mxu0
      %v2661 = vadd.f32 0.0, %v2660
      %v2662 = vpop.f32.mrb[0].mxu0
      %v2663 = vpop.f32.mrb[0].mxu0
      %v2664 = vadd.f32 0.0, %v2663
      %v2665 = vpop.f32.mrb[0].mxu0
      %2666 = vmatprep.mubr.bf16.mxu0 %v1839
      %2667 = vmatmul.mubr.bf16.gmra.mrb[0].mxu0 %v1354
      %v2668 = vpop.f32.mrb[0].mxu0
      %v2669 = vadd.f32 0.0, %v2668
      %v2670 = vpop.f32.mrb[0].mxu0
      %v2671 = vpop.f32.mrb[0].mxu0
      %v2672 = vadd.f32 0.0, %v2671
      %v2673 = vpop.f32.mrb[0].mxu0
      %2674 = vmatprep.mubr.bf16.mxu0 %v1842
      %2675 = vmatmul.mubr.bf16.gmra.mrb[0].mxu0 %v1356
      %v2676 = vpop.f32.mrb[0].mxu0
      %v2677 = vadd.f32 0.0, %v2676
      %v2678 = vpop.f32.mrb[0].mxu0
      %v2679 = vpop.f32.mrb[0].mxu0
      %v2680 = vadd.f32 0.0, %v2679
      %v2681 = vpop.f32.mrb[0].mxu0
      %2682 = vmatprep.mubr.bf16.mxu0 %v1845
      %2683 = vmatmul.mubr.bf16.gmra.mrb[0].mxu0 %v1358
      %v2684 = vpop.f32.mrb[0].mxu0
      %v2685 = vadd.f32 0.0, %v2684
      %v2686 = vpop.f32.mrb[0].mxu0
      %v2687 = vpop.f32.mrb[0].mxu0
      %v2688 = vadd.f32 0.0, %v2687
      %v2689 = vpop.f32.mrb[0].mxu0
      %2690 = vmatprep.mubr.bf16.mxu0 %v1848
      %2691 = vmatmul.mubr.bf16.gmra.mrb[0].mxu0 %v1360
      %v2692 = vpop.f32.mrb[0].mxu0
      %v2693 = vadd.f32 0.0, %v2692
      %v2694 = vpop.f32.mrb[0].mxu0
      %v2695 = vpop.f32.mrb[0].mxu0
      %v2696 = vadd.f32 0.0, %v2695
      %v2697 = vpop.f32.mrb[0].mxu0
      %2698 = vmatprep.mubr.bf16.mxu0 %v1851
      %2699 = vmatmul.mubr.bf16.gmra.mrb[0].mxu0 %v1362
      %v2700 = vpop.f32.mrb[0].mxu0
      %v2701 = vadd.f32 0.0, %v2700
      %v2702 = vpop.f32.mrb[0].mxu0
      %v2703 = vpop.f32.mrb[0].mxu0
      %v2704 = vadd.f32 0.0, %v2703
      %v2705 = vpop.f32.mrb[0].mxu0
      %2706 = vmatprep.mubr.bf16.mxu0 %v1854
      %2707 = vmatmul.mubr.bf16.gmra.mrb[0].mxu0 %v1364
      %v2708 = vpop.f32.mrb[0].mxu0
      %v2709 = vadd.f32 0.0, %v2708
      %v2710 = vpop.f32.mrb[0].mxu0
      %v2711 = vpop.f32.mrb[0].mxu0
      %v2712 = vadd.f32 0.0, %v2711
      %v2713 = vpop.f32.mrb[0].mxu0
      %2714 = vmatprep.mubr.bf16.mxu0 %v1857
      %2715 = vmatmul.mubr.bf16.gmra.mrb[0].mxu0 %v1366
      %v2716 = vpop.f32.mrb[0].mxu0
      %v2717 = vadd.f32 0.0, %v2716
      %v2718 = vpop.f32.mrb[0].mxu0
      %v2719 = vpop.f32.mrb[0].mxu0
      %v2720 = vadd.f32 0.0, %v2719
      %v2721 = vpop.f32.mrb[0].mxu0
      %2722 = vmatprep.mubr.bf16.mxu0 %v1860
      %2723 = vmatmul.mubr.bf16.gmra.mrb[0].mxu0 %v1368
      %v2724 = vpop.f32.mrb[0].mxu0
      %v2725 = vadd.f32 0.0, %v2724
      %v2726 = vpop.f32.mrb[0].mxu0
      %v2727 = vpop.f32.mrb[0].mxu0
      %v2728 = vadd.f32 0.0, %v2727
      %v2729 = vpop.f32.mrb[0].mxu0
      %2730 = vdwg.mxu0
      %v2731 = vmax.f32 %v1901, %v1952
      %v2732 = vmax.f32 %v1904, %v1957
      %v2733 = vmax.f32 %v1909, %v1960
      %v2734 = vmax.f32 %v1912, %v1965
      %v2735 = vmax.f32 %v1917, %v1968
      %v2736 = vmax.f32 %v1920, %v1973
      %v2737 = vmax.f32 %v1925, %v1976
      %v2738 = vmax.f32 %v1928, %v1981
      %v2739 = vmax.f32 %v1933, %v1984
      %v2740 = vmax.f32 %v1936, %v1989
      %v2741 = vmax.f32 %v1941, %v1992
      %v2742 = vmax.f32 %v1944, %v1997
      %v2743 = vmax.f32 %v1949, %v2000
      %v2744 = vmax.f32 %v2731, %v2005
      %v2745 = vmax.f32 %v2732, %v2008
      %v2746 = vmax.f32 %v2733, %v2013
      %v2747 = vmax.f32 %v2734, %v2016
      %v2748 = vmax.f32 %v2735, %v2021
      %v2749 = vmax.f32 %v2736, %v2024
      %v2750 = vmax.f32 %v2737, %v2029
      %v2751 = vmax.f32 %v2738, %v2032
      %v2752 = vmax.f32 %v2739, %v2037
      %v2753 = vmax.f32 %v2740, %v2040
      %v2754 = vmax.f32 %v2741, %v2045
      %v2755 = vmax.f32 %v2742, %v2048
      %v2756 = vmax.f32 %v2743, %v2053
      %v2757 = vmax.f32 %v2744, %v2056
      %v2758 = vmax.f32 %v2745, %v2061
      %v2759 = vmax.f32 %v2746, %v2064
      %v2760 = vmax.f32 %v2747, %v2069
      %v2761 = vmax.f32 %v2748, %v2072
      %v2762 = vmax.f32 %v2749, %v2077
      %v2763 = vmax.f32 %v2750, %v2080
      %v2764 = vmax.f32 %v2751, %v2085
      %v2765 = vmax.f32 %v2752, %v2088
      %v2766 = vmax.f32 %v2753, %v2093
      %v2767 = vmax.f32 %v2754, %v2096
      %v2768 = vmax.f32 %v2755, %v2101
      %v2769 = vmax.f32 %v2756, %v2104
      %v2770 = vmax.f32 %v2757, %v2109
      %v2771 = vmax.f32 %v2758, %v2112
      %v2772 = vmax.f32 %v2759, %v2117
      %v2773 = vmax.f32 %v2760, %v2120
      %v2774 = vmax.f32 %v2761, %v2125
      %v2775 = vmax.f32 %v2762, %v2128
      %v2776 = vmax.f32 %v2763, %v2133
      %v2777 = vmax.f32 %v2764, %v2136
      %v2778 = vmax.f32 %v2765, %v2141
      %v2779 = vmax.f32 %v2766, %v2144
      %v2780 = vmax.f32 %v2767, %v2149
      %v2781 = vmax.f32 %v2768, %v2152
      %v2782 = vmax.f32 %v2769, %v2157
      %v2783 = vmax.f32 %v2770, %v2160
      %v2784 = vmax.f32 %v2771, %v2165
      %v2785 = vmax.f32 %v2772, %v2168
      %v2786 = vmax.f32 %v2773, %v2173
      %v2787 = vmax.f32 %v2774, %v2176
      %v2788 = vmax.f32 %v2775, %v2181
      %v2789 = vmax.f32 %v2776, %v2184
      %v2790 = vmax.f32 %v2777, %v2189
      %v2791 = vmax.f32 %v2778, %v2192
      %v2792 = vmax.f32 %v2779, %v2197
      %v2793 = vmax.f32 %v2780, %v2200
      %v2794 = vmax.f32 %v2781, %v2205
      %v2795 = vmax.f32 %v2782, %v2208
      %v2796 = vmax.f32 %v2783, %v2213
      %v2797 = vmax.f32 %v2784, %v2216
      %v2798 = vmax.f32 %v2785, %v2221
      %v2799 = vmax.f32 %v2786, %v2224
      %v2800 = vmax.f32 %v2787, %v2229
      %v2801 = vmax.f32 %v2788, %v2232
      %v2802 = vmax.f32 %v2789, %v2237
      %v2803 = vmax.f32 %v2790, %v2240
      %v2804 = vmax.f32 %v2791, %v2245
      %v2805 = vmax.f32 %v2792, %v2248
      %v2806 = vmax.f32 %v2793, %v2253
      %v2807 = vmax.f32 %v2794, %v2256
      %v2808 = vmax.f32 %v2795, %v2261
      %v2809 = vmax.f32 %v2796, %v2264
      %v2810 = vmax.f32 %v2797, %v2269
      %v2811 = vmax.f32 %v2798, %v2272
      %v2812 = vmax.f32 %v2799, %v2277
      %v2813 = vmax.f32 %v2800, %v2280
      %v2814 = vmax.f32 %v2801, %v2285
      %v2815 = vmax.f32 %v2802, %v2288
      %v2816 = vmax.f32 %v2803, %v2293
      %v2817 = vmax.f32 %v2804, %v2296
      %v2818 = vmax.f32 %v2805, %v2301
      %v2819 = vmax.f32 %v2806, %v2304
      %v2820 = vmax.f32 %v2807, %v2309
      %v2821 = vmax.f32 %v2808, %v2312
      %v2822 = vmax.f32 %v2809, %v2317
      %v2823 = vmax.f32 %v2810, %v2320
      %v2824 = vmax.f32 %v2811, %v2325
      %v2825 = vmax.f32 %v2812, %v2328
      %v2826 = vmax.f32 %v2813, %v2333
      %v2827 = vmax.f32 %v2814, %v2336
      %v2828 = vmax.f32 %v2815, %v2341
      %v2829 = vmax.f32 %v2816, %v2344
      %v2830 = vmax.f32 %v2817, %v2349
      %v2831 = vmax.f32 %v2818, %v2352
      %v2832 = vmax.f32 %v2819, %v2357
      %v2833 = vmax.f32 %v2820, %v2360
      %v2834 = vmax.f32 %v2821, %v2365
      %v2835 = vmax.f32 %v2822, %v2368
      %v2836 = vmax.f32 %v2823, %v2373
      %v2837 = vmax.f32 %v2824, %v2376
      %v2838 = vmax.f32 %v2825, %v2381
      %v2839 = vmax.f32 %v2826, %v2384
      %v2840 = vmax.f32 %v2827, %v2389
      %v2841 = vmax.f32 %v2828, %v2392
      %v2842 = vmax.f32 %v2829, %v2397
      %v2843 = vmax.f32 %v2830, %v2400
      %v2844 = vmax.f32 %v2831, %v2405
      %v2845 = vmax.f32 %v2832, %v2408
      %v2846 = vmax.f32 %v2833, %v2413
      %v2847 = vmax.f32 %v2834, %v2416
      %v2848 = vmax.f32 %v2835, %v2421
      %v2849 = vmax.f32 %v2836, %v2424
      %v2850 = vmax.f32 %v2837, %v2429
      %v2851 = vmax.f32 %v2838, %v2432
      %v2852 = vmax.f32 %v2839, %v2437
      %v2853 = vmax.f32 %v2840, %v2440
      %v2854 = vmax.f32 %v2841, %v2445
      %v2855 = vmax.f32 %v2842, %v2448
      %v2856 = vmax.f32 %v2843, %v2453
      %v2857 = vmax.f32 %v2844, %v2456
      %v2858 = vmax.f32 %v2845, %v2461
      %v2859 = vmax.f32 %v2846, %v2464
      %v2860 = vmax.f32 %v2847, %v2469
      %v2861 = vmax.f32 %v2848, %v2472
      %v2862 = vmax.f32 %v2849, %v2477
      %v2863 = vmax.f32 %v2850, %v2480
      %v2864 = vmax.f32 %v2851, %v2485
      %v2865 = vmax.f32 %v2852, %v2488
      %v2866 = vmax.f32 %v2853, %v2493
      %v2867 = vmax.f32 %v2854, %v2496
      %v2868 = vmax.f32 %v2855, %v2501
      %v2869 = vmax.f32 %v2856, %v2504
      %v2870 = vmax.f32 %v2857, %v2509
      %v2871 = vmax.f32 %v2858, %v2512
      %v2872 = vmax.f32 %v2859, %v2517
      %v2873 = vmax.f32 %v2860, %v2520
      %v2874 = vmax.f32 %v2861, %v2525
      %v2875 = vmax.f32 %v2862, %v2528
      %v2876 = vmax.f32 %v2863, %v2533
      %v2877 = vmax.f32 %v2864, %v2536
      %v2878 = vmax.f32 %v2865, %v2541
      %v2879 = vmax.f32 %v2866, %v2544
      %v2880 = vmax.f32 %v2867, %v2549
      %v2881 = vmax.f32 %v2868, %v2552
      %v2882 = vmax.f32 %v2869, %v2557
      %v2883 = vmax.f32 %v2870, %v2560
      %v2884 = vmax.f32 %v2871, %v2565
      %v2885 = vmax.f32 %v2872, %v2568
      %v2886 = vmax.f32 %v2873, %v2573
      %v2887 = vmax.f32 %v2874, %v2576
      %v2888 = vmax.f32 %v2875, %v2581
      %v2889 = vmax.f32 %v2876, %v2584
      %v2890 = vmax.f32 %v2877, %v2589
      %v2891 = vmax.f32 %v2878, %v2592
      %v2892 = vmax.f32 %v2879, %v2597
      %v2893 = vmax.f32 %v2880, %v2600
      %v2894 = vmax.f32 %v2881, %v2605
      %v2895 = vmax.f32 %v2882, %v2608
      %v2896 = vmax.f32 %v2883, %v2613
      %v2897 = vmax.f32 %v2884, %v2616
      %v2898 = vmax.f32 %v2885, %v2621
      %v2899 = vmax.f32 %v2886, %v2624
      %v2900 = vmax.f32 %v2887, %v2629
      %v2901 = vmax.f32 %v2888, %v2632
      %v2902 = vmax.f32 %v2889, %v2637
      %v2903 = vmax.f32 %v2890, %v2640
      %v2904 = vmax.f32 %v2891, %v2645
      %v2905 = vmax.f32 %v2892, %v2648
      %v2906 = vmax.f32 %v2893, %v2653
      %v2907 = vmax.f32 %v2894, %v2656
      %v2908 = vmax.f32 %v2895, %v2661
      %v2909 = vmax.f32 %v2896, %v2664
      %v2910 = vmax.f32 %v2897, %v2669
      %v2911 = vmax.f32 %v2898, %v2672
      %v2912 = vmax.f32 %v2899, %v2677
      %v2913 = vmax.f32 %v2900, %v2680
      %v2914 = vmax.f32 %v2901, %v2685
      %v2915 = vmax.f32 %v2902, %v2688
      %v2916 = vmax.f32 %v2903, %v2693
      %v2917 = vmax.f32 %v2904, %v2696
      %v2918 = vmax.f32 %v2905, %v2701
      %v2919 = vmax.f32 %v2906, %v2704
      %v2920 = vmax.f32 %v2907, %v2709
      %v2921 = vmax.f32 %v2908, %v2712
      %v2922 = vmax.f32 %v2909, %v2717
      %v2923 = vmax.f32 %v2910, %v2720
      %v2924 = vmax.f32 %v2911, %v2725
      %v2925 = vmax.f32 %v2912, %v2728
      %v2926 = vmax.f32 %v2913, 0.0
      %v2927 = vmax.f32 %v2914, 0.0
      %v2928 = vmax.f32 %v2915, 0.0
      %v2929 = vmax.f32 %v2916, 0.0
      %v2930 = vmax.f32 %v2917, 0.0
      %v2931 = vmax.f32 %v2918, 0.0
      %v2932 = vmax.f32 %v2919, 0.0
      %v2933 = vmax.f32 %v2920, 0.0
      %v2934 = vmax.f32 %v2921, 0.0
      %v2935 = vmax.f32 %v2922, 0.0
      %v2936 = vmax.f32 %v2923, 0.0
      %v2937 = vmax.f32 %v2924, 0.0
      %v2938 = vmax.f32 %v2925, 0.0
      %vm2939 = vcmask 130048
      %2940 = vst.msk [vmem:[#allocation2] sm:$0xff] %vm2939, 0.0
      %2941 = vst.msk [vmem:[#allocation2 + $0x8] sm:$0xff] %vm2939, 0.0
      %2942 = vst.msk [vmem:[#allocation2 + $0x10] sm:$0xff] %vm2939, 0.0
      %2943 = vst.msk [vmem:[#allocation2 + $0x18] sm:$0xff] %vm2939, 0.0
      %2944 = vst.msk [vmem:[#allocation2 + $0x20] sm:$0xff] %vm2939, 0.0
      %2945 = vst.msk [vmem:[#allocation2 + $0x28] sm:$0xff] %vm2939, 0.0
      %2946 = vst.msk [vmem:[#allocation2 + $0x30] sm:$0xff] %vm2939, 0.0
      %2947 = vst.msk [vmem:[#allocation2 + $0x38] sm:$0xff] %vm2939, 0.0
      %2948 = vst.msk [vmem:[#allocation2 + $0x40] sm:$0xff] %vm2939, 0.0
      %2949 = vst.msk [vmem:[#allocation2 + $0x48] sm:$0xff] %vm2939, 0.0
      %2950 = vst.msk [vmem:[#allocation2 + $0x50] sm:$0xff] %vm2939, 0.0
      %2951 = vst.msk [vmem:[#allocation2 + $0x58] sm:$0xff] %vm2939, 0.0
      %2952 = vst.msk [vmem:[#allocation2 + $0x60] sm:$0xff] %vm2939, 0.0
      %2953 = vst.msk [vmem:[#allocation2 + $0x68] sm:$0xff] %vm2939, 0.0
      %2954 = vst.msk [vmem:[#allocation2 + $0x70] sm:$0xff] %vm2939, 0.0
      %2955 = vst.msk [vmem:[#allocation2 + $0x78] sm:$0xff] %vm2939, 0.0
      %2956 = vst.msk [vmem:[#allocation2 + $0x80] sm:$0xff] %vm2939, 0.0
      %2957 = vst.msk [vmem:[#allocation2 + $0x88] sm:$0xff] %vm2939, 0.0
      %2958 = vst.msk [vmem:[#allocation2 + $0x90] sm:$0xff] %vm2939, 0.0
      %2959 = vst.msk [vmem:[#allocation2 + $0x98] sm:$0xff] %vm2939, 0.0
      %2960 = vst.msk [vmem:[#allocation2 + $0xa0] sm:$0xff] %vm2939, 0.0
      %2961 = vst.msk [vmem:[#allocation2 + $0xa8] sm:$0xff] %vm2939, 0.0
      %vm2962 = vcmask 261120
      %2963 = vst.msk [vmem:[#allocation3] sm:$0xff] %vm2962, 0.0
      %2964 = vst.msk [vmem:[#allocation3 + $0x8] sm:$0xff] %vm2962, 0.0
      %2965 = vst.msk [vmem:[#allocation3 + $0x10] sm:$0xff] %vm2962, 0.0
      %2966 = vst.msk [vmem:[#allocation3 + $0x18] sm:$0xff] %vm2962, 0.0
      %2967 = vst.msk [vmem:[#allocation3 + $0x20] sm:$0xff] %vm2962, 0.0
      %2968 = vst.msk [vmem:[#allocation3 + $0x28] sm:$0xff] %vm2962, 0.0
      %2969 = vst.msk [vmem:[#allocation3 + $0x30] sm:$0xff] %vm2962, 0.0
      %2970 = vst.msk [vmem:[#allocation3 + $0x38] sm:$0xff] %vm2962, 0.0
      %2971 = vst.msk [vmem:[#allocation3 + $0x40] sm:$0xff] %vm2962, 0.0
      %2972 = vst.msk [vmem:[#allocation3 + $0x48] sm:$0xff] %vm2962, 0.0
      %2973 = vst.msk [vmem:[#allocation3 + $0x50] sm:$0xff] %vm2962, 0.0
      %2974 = vst.msk [vmem:[#allocation3 + $0x58] sm:$0xff] %vm2962, 0.0
      %2975 = vst.msk [vmem:[#allocation3 + $0x60] sm:$0xff] %vm2962, 0.0
      %2976 = vst.msk [vmem:[#allocation3 + $0x68] sm:$0xff] %vm2962, 0.0
      %2977 = vst.msk [vmem:[#allocation3 + $0x70] sm:$0xff] %vm2962, 0.0
      %2978 = vst.msk [vmem:[#allocation3 + $0x78] sm:$0xff] %vm2962, 0.0
      %2979 = vst.msk [vmem:[#allocation3 + $0x80] sm:$0xff] %vm2962, 0.0
      %2980 = vst.msk [vmem:[#allocation3 + $0x88] sm:$0xff] %vm2962, 0.0
      %2981 = vst.msk [vmem:[#allocation3 + $0x90] sm:$0xff] %vm2962, 0.0
      %2982 = vst.msk [vmem:[#allocation3 + $0x98] sm:$0xff] %vm2962, 0.0
      %2983 = vst.msk [vmem:[#allocation3 + $0xa0] sm:$0xff] %vm2962, 0.0
      %2984 = vst.msk [vmem:[#allocation3 + $0xa8] sm:$0xff] %vm2962, 0.0
      %2985 = vst.msk [vmem:[#allocation2 + $0xd] sm:$0xff] %vm2939, %v2926
      %vm2986 = vcmask 123904
      %2987 = vst.msk [vmem:[#allocation2 + $0x15] sm:$0x3] %vm2986, %v2927
      %vm2988 = vcmask 130050
      %2989 = vst.msk [vmem:[#allocation2 + $0x17] sm:$0xfc] %vm2988, %v2927
      %vm2990 = vcmask 125952
      %2991 = vst.msk [vmem:[#allocation2 + $0x1f] sm:$0xf] %vm2990, %v2928
      %vm2992 = vcmask 130052
      %2993 = vst.msk [vmem:[#allocation2 + $0x21] sm:$0xf0] %vm2992, %v2928
      %vm2994 = vcmask 128000
      %2995 = vst.msk [vmem:[#allocation2 + $0x29] sm:$0x3f] %vm2994, %v2929
      %vm2996 = vcmask 130054
      %2997 = vst.msk [vmem:[#allocation2 + $0x2b] sm:$0xc0] %vm2996, %v2929
      %2998 = vst.msk [vmem:[#allocation2 + $0x33] sm:$0xff] %vm2939, %v2930
      %2999 = vst.msk [vmem:[#allocation2 + $0x3d] sm:$0xff] %vm2939, %v2931
      %3000 = vst.msk [vmem:[#allocation2 + $0x45] sm:$0x3] %vm2986, %v2932
      %3001 = vst.msk [vmem:[#allocation2 + $0x47] sm:$0xfc] %vm2988, %v2932
      %3002 = vst.msk [vmem:[#allocation2 + $0x4f] sm:$0xf] %vm2990, %v2933
      %3003 = vst.msk [vmem:[#allocation2 + $0x51] sm:$0xf0] %vm2992, %v2933
      %3004 = vst.msk [vmem:[#allocation2 + $0x59] sm:$0x3f] %vm2994, %v2934
      %3005 = vst.msk [vmem:[#allocation2 + $0x5b] sm:$0xc0] %vm2996, %v2934
      %3006 = vst.msk [vmem:[#allocation2 + $0x63] sm:$0xff] %vm2939, %v2935
      %3007 = vst.msk [vmem:[#allocation2 + $0x6d] sm:$0xff] %vm2939, %v2936
      %3008 = vst.msk [vmem:[#allocation2 + $0x75] sm:$0x3] %vm2986, %v2937
      %3009 = vst.msk [vmem:[#allocation2 + $0x77] sm:$0xfc] %vm2988, %v2937
      %3010 = vst.msk [vmem:[#allocation2 + $0x7f] sm:$0xf] %vm2990, %v2938
      %v3011 = vld [vmem:[#allocation2] sm:$0xff]
      %v3012 = vld [vmem:[#allocation2 + $0x8] sm:$0xff]
      %v3013 = vld [vmem:[#allocation2 + $0x10] sm:$0xff]
      %v3014 = vld [vmem:[#allocation2 + $0x18] sm:$0xff]
      %v3015 = vld [vmem:[#allocation2 + $0x20] sm:$0xff]
      %v3016 = vld [vmem:[#allocation2 + $0x28] sm:$0xff]
      %v3017 = vld [vmem:[#allocation2 + $0x30] sm:$0xff]
      %v3018 = vld [vmem:[#allocation2 + $0x38] sm:$0xff]
      %v3019 = vld [vmem:[#allocation2 + $0x40] sm:$0xff]
      %v3020 = vld [vmem:[#allocation2 + $0x48] sm:$0xff]
      %v3021 = vld [vmem:[#allocation2 + $0x50] sm:$0xff]
      %v3022 = vld [vmem:[#allocation2 + $0x58] sm:$0xff]
      %v3023 = vld [vmem:[#allocation2 + $0x60] sm:$0xff]
      %v3024 = vld [vmem:[#allocation2 + $0x68] sm:$0xff]
      %v3025 = vld [vmem:[#allocation2 + $0x70] sm:$0xff]
      %v3026 = vld [vmem:[#allocation2 + $0x78] sm:$0xff]
      %v3027 = vld [vmem:[#allocation2 + $0x80] sm:$0xff]
      %v3028 = vld [vmem:[#allocation2 + $0x88] sm:$0xff]
      %v3029 = vld [vmem:[#allocation2 + $0x1] sm:$0xff]
      %v3030 = vld [vmem:[#allocation2 + $0x9] sm:$0xff]
      %v3031 = vld [vmem:[#allocation2 + $0x11] sm:$0xff]
      %v3032 = vld [vmem:[#allocation2 + $0x19] sm:$0xff]
      %v3033 = vld [vmem:[#allocation2 + $0x21] sm:$0xff]
      %v3034 = vld [vmem:[#allocation2 + $0x29] sm:$0xff]
      %v3035 = vld [vmem:[#allocation2 + $0x31] sm:$0xff]
      %v3036 = vld [vmem:[#allocation2 + $0x39] sm:$0xff]
      %v3037 = vld [vmem:[#allocation2 + $0x41] sm:$0xff]
      %v3038 = vld [vmem:[#allocation2 + $0x49] sm:$0xff]
      %v3039 = vld [vmem:[#allocation2 + $0x51] sm:$0xff]
      %v3040 = vld [vmem:[#allocation2 + $0x59] sm:$0xff]
      %v3041 = vld [vmem:[#allocation2 + $0x61] sm:$0xff]
      %v3042 = vld [vmem:[#allocation2 + $0x69] sm:$0xff]
      %v3043 = vld [vmem:[#allocation2 + $0x71] sm:$0xff]
      %v3044 = vld [vmem:[#allocation2 + $0x79] sm:$0xff]
      %v3045 = vld [vmem:[#allocation2 + $0x81] sm:$0xff]
      %v3046 = vld [vmem:[#allocation2 + $0x89] sm:$0xff]
      %v3047 = vld [vmem:[#allocation2 + $0x2] sm:$0xff]
      %v3048 = vld [vmem:[#allocation2 + $0xa] sm:$0xff]
      %v3049 = vld [vmem:[#allocation2 + $0x12] sm:$0xff]
      %v3050 = vld [vmem:[#allocation2 + $0x1a] sm:$0xff]
      %v3051 = vld [vmem:[#allocation2 + $0x22] sm:$0xff]
      %v3052 = vld [vmem:[#allocation2 + $0x2a] sm:$0xff]
      %v3053 = vld [vmem:[#allocation2 + $0x32] sm:$0xff]
      %v3054 = vld [vmem:[#allocation2 + $0x3a] sm:$0xff]
      %v3055 = vld [vmem:[#allocation2 + $0x42] sm:$0xff]
      %v3056 = vld [vmem:[#allocation2 + $0x4a] sm:$0xff]
      %v3057 = vld [vmem:[#allocation2 + $0x52] sm:$0xff]
      %v3058 = vld [vmem:[#allocation2 + $0x5a] sm:$0xff]
      %v3059 = vld [vmem:[#allocation2 + $0x62] sm:$0xff]
      %v3060 = vld [vmem:[#allocation2 + $0x6a] sm:$0xff]
      %v3061 = vld [vmem:[#allocation2 + $0x72] sm:$0xff]
      %v3062 = vld [vmem:[#allocation2 + $0x7a] sm:$0xff]
      %v3063 = vld [vmem:[#allocation2 + $0x82] sm:$0xff]
      %v3064 = vld [vmem:[#allocation2 + $0x8a] sm:$0xff]
      %v3065 = vld [vmem:[#allocation2 + $0xc] sm:$0xff]
      %v3066 = vld [vmem:[#allocation2 + $0x14] sm:$0xff]
      %v3067 = vld [vmem:[#allocation2 + $0x1c] sm:$0xff]
      %v3068 = vld [vmem:[#allocation2 + $0x24] sm:$0xff]
      %v3069 = vld [vmem:[#allocation2 + $0x2c] sm:$0xff]
      %v3070 = vld [vmem:[#allocation2 + $0x34] sm:$0xff]
      %v3071 = vld [vmem:[#allocation2 + $0x3c] sm:$0xff]
      %v3072 = vld [vmem:[#allocation2 + $0x44] sm:$0xff]
      %v3073 = vld [vmem:[#allocation2 + $0x4c] sm:$0xff]
      %v3074 = vld [vmem:[#allocation2 + $0x54] sm:$0xff]
      %v3075 = vld [vmem:[#allocation2 + $0x5c] sm:$0xff]
      %v3076 = vld [vmem:[#allocation2 + $0x64] sm:$0xff]
      %v3077 = vld [vmem:[#allocation2 + $0x6c] sm:$0xff]
      %v3078 = vld [vmem:[#allocation2 + $0x74] sm:$0xff]
      %v3079 = vld [vmem:[#allocation2 + $0x7c] sm:$0xff]
      %v3080 = vld [vmem:[#allocation2 + $0x84] sm:$0xff]
      %v3081 = vld [vmem:[#allocation2 + $0x8c] sm:$0xff]
      %v3082 = vld [vmem:[#allocation2 + $0x94] sm:$0xff]
      %v3083 = vld [vmem:[#allocation2 + $0xd] sm:$0xff]
      %v3084 = vld [vmem:[#allocation2 + $0x15] sm:$0xff]
      %v3085 = vld [vmem:[#allocation2 + $0x1d] sm:$0xff]
      %v3086 = vld [vmem:[#allocation2 + $0x25] sm:$0xff]
      %v3087 = vld [vmem:[#allocation2 + $0x2d] sm:$0xff]
      %v3088 = vld [vmem:[#allocation2 + $0x35] sm:$0xff]
      %v3089 = vld [vmem:[#allocation2 + $0x3d] sm:$0xff]
      %v3090 = vld [vmem:[#allocation2 + $0x45] sm:$0xff]
      %v3091 = vld [vmem:[#allocation2 + $0x4d] sm:$0xff]
      %v3092 = vld [vmem:[#allocation2 + $0x55] sm:$0xff]
      %v3093 = vld [vmem:[#allocation2 + $0x5d] sm:$0xff]
      %v3094 = vld [vmem:[#allocation2 + $0x65] sm:$0xff]
      %v3095 = vld [vmem:[#allocation2 + $0x6d] sm:$0xff]
      %v3096 = vld [vmem:[#allocation2 + $0x75] sm:$0xff]
      %v3097 = vld [vmem:[#allocation2 + $0x7d] sm:$0xff]
      %v3098 = vld [vmem:[#allocation2 + $0x85] sm:$0xff]
      %v3099 = vld [vmem:[#allocation2 + $0x8d] sm:$0xff]
      %v3100 = vld [vmem:[#allocation2 + $0x95] sm:$0xff]
      %v3101 = vld [vmem:[#allocation2 + $0xe] sm:$0xff]
      %v3102 = vld [vmem:[#allocation2 + $0x16] sm:$0xff]
      %v3103 = vld [vmem:[#allocation2 + $0x1e] sm:$0xff]
      %v3104 = vld [vmem:[#allocation2 + $0x26] sm:$0xff]
      %v3105 = vld [vmem:[#allocation2 + $0x2e] sm:$0xff]
      %v3106 = vld [vmem:[#allocation2 + $0x36] sm:$0xff]
      %v3107 = vld [vmem:[#allocation2 + $0x3e] sm:$0xff]
      %v3108 = vld [vmem:[#allocation2 + $0x46] sm:$0xff]
      %v3109 = vld [vmem:[#allocation2 + $0x4e] sm:$0xff]
      %v3110 = vld [vmem:[#allocation2 + $0x56] sm:$0xff]
      %v3111 = vld [vmem:[#allocation2 + $0x5e] sm:$0xff]
      %v3112 = vld [vmem:[#allocation2 + $0x66] sm:$0xff]
      %v3113 = vld [vmem:[#allocation2 + $0x6e] sm:$0xff]
      %v3114 = vld [vmem:[#allocation2 + $0x76] sm:$0xff]
      %v3115 = vld [vmem:[#allocation2 + $0x7e] sm:$0xff]
      %v3116 = vld [vmem:[#allocation2 + $0x86] sm:$0xff]
      %v3117 = vld [vmem:[#allocation2 + $0x8e] sm:$0xff]
      %v3118 = vld [vmem:[#allocation2 + $0x96] sm:$0xff]
      %v3119 = vld [vmem:[#allocation2 + $0x90] sm:$0xff]
      %v3120 = vld [vmem:[#allocation2 + $0x98] sm:$0xff]
      %v3121 = vld [vmem:[#allocation2 + $0xa0] sm:$0xff]
      %v3122 = vld [vmem:[#allocation2 + $0x91] sm:$0xff]
      %v3123 = vld [vmem:[#allocation2 + $0x99] sm:$0xff]
      %v3124 = vld [vmem:[#allocation2 + $0xa1] sm:$0xff]
      %v3125 = vld [vmem:[#allocation2 + $0x92] sm:$0xff]
      %v3126 = vld [vmem:[#allocation2 + $0x9a] sm:$0xff]
      %v3127 = vld [vmem:[#allocation2 + $0xa2] sm:$0xff]
      %3146 = vrot.lane.b32.xlu0 %v3029, 16
      %v3147 = vpop.permute.xlu0 %3146
      %3148 = vrot.lane.b32.xlu0 %v3030, 16
      %v3149 = vpop.permute.xlu0 %3148
      %3150 = vrot.lane.b32.xlu0 %v3031, 16
      %v3151 = vpop.permute.xlu0 %3150
      %3152 = vrot.lane.b32.xlu0 %v3032, 16
      %v3153 = vpop.permute.xlu0 %3152
      %3154 = vrot.lane.b32.xlu0 %v3033, 16
      %v3155 = vpop.permute.xlu0 %3154
      %3156 = vrot.lane.b32.xlu0 %v3034, 16
      %v3157 = vpop.permute.xlu0 %3156
      %3158 = vrot.lane.b32.xlu0 %v3035, 16
      %v3159 = vpop.permute.xlu0 %3158
      %3160 = vrot.lane.b32.xlu0 %v3036, 16
      %v3161 = vpop.permute.xlu0 %3160
      %3162 = vrot.lane.b32.xlu0 %v3037, 16
      %v3163 = vpop.permute.xlu0 %3162
      %3164 = vrot.lane.b32.xlu0 %v3038, 16
      %v3165 = vpop.permute.xlu0 %3164
      %3166 = vrot.lane.b32.xlu0 %v3039, 16
      %v3167 = vpop.permute.xlu0 %3166
      %3168 = vrot.lane.b32.xlu0 %v3040, 16
      %v3169 = vpop.permute.xlu0 %3168
      %3170 = vrot.lane.b32.xlu0 %v3041, 16
      %v3171 = vpop.permute.xlu0 %3170
      %3172 = vrot.lane.b32.xlu0 %v3042, 16
      %v3173 = vpop.permute.xlu0 %3172
      %3174 = vrot.lane.b32.xlu0 %v3043, 16
      %v3175 = vpop.permute.xlu0 %3174
      %3176 = vrot.lane.b32.xlu0 %v3044, 16
      %v3177 = vpop.permute.xlu0 %3176
      %3178 = vrot.lane.b32.xlu0 %v3045, 16
      %v3179 = vpop.permute.xlu0 %3178
      %3180 = vrot.lane.b32.xlu0 %v3046, 16
      %v3181 = vpop.permute.xlu0 %3180
      %3218 = vrot.lane.b32.xlu0 %v3047, 32
      %v3219 = vpop.permute.xlu0 %3218
      %3220 = vrot.lane.b32.xlu0 %v3048, 32
      %v3221 = vpop.permute.xlu0 %3220
      %3222 = vrot.lane.b32.xlu0 %v3049, 32
      %v3223 = vpop.permute.xlu0 %3222
      %3224 = vrot.lane.b32.xlu0 %v3050, 32
      %v3225 = vpop.permute.xlu0 %3224
      %3226 = vrot.lane.b32.xlu0 %v3051, 32
      %v3227 = vpop.permute.xlu0 %3226
      %3228 = vrot.lane.b32.xlu0 %v3052, 32
      %v3229 = vpop.permute.xlu0 %3228
      %3230 = vrot.lane.b32.xlu0 %v3053, 32
      %v3231 = vpop.permute.xlu0 %3230
      %3232 = vrot.lane.b32.xlu0 %v3054, 32
      %v3233 = vpop.permute.xlu0 %3232
      %3234 = vrot.lane.b32.xlu0 %v3055, 32
      %v3235 = vpop.permute.xlu0 %3234
      %3236 = vrot.lane.b32.xlu0 %v3056, 32
      %v3237 = vpop.permute.xlu0 %3236
      %3238 = vrot.lane.b32.xlu0 %v3057, 32
      %v3239 = vpop.permute.xlu0 %3238
      %3240 = vrot.lane.b32.xlu0 %v3058, 32
      %v3241 = vpop.permute.xlu0 %3240
      %3242 = vrot.lane.b32.xlu0 %v3059, 32
      %v3243 = vpop.permute.xlu0 %3242
      %3244 = vrot.lane.b32.xlu0 %v3060, 32
      %v3245 = vpop.permute.xlu0 %3244
      %3246 = vrot.lane.b32.xlu0 %v3061, 32
      %v3247 = vpop.permute.xlu0 %3246
      %3248 = vrot.lane.b32.xlu0 %v3062, 32
      %v3249 = vpop.permute.xlu0 %3248
      %3250 = vrot.lane.b32.xlu0 %v3063, 32
      %v3251 = vpop.permute.xlu0 %3250
      %3252 = vrot.lane.b32.xlu0 %v3064, 32
      %v3253 = vpop.permute.xlu0 %3252
      %3290 = vrot.lane.b32.xlu0 %v3065, 48
      %v3291 = vpop.permute.xlu0 %3290
      %3292 = vrot.lane.b32.xlu0 %v3066, 48
      %v3293 = vpop.permute.xlu0 %3292
      %3294 = vrot.lane.b32.xlu0 %v3067, 48
      %v3295 = vpop.permute.xlu0 %3294
      %3296 = vrot.lane.b32.xlu0 %v3068, 48
      %v3297 = vpop.permute.xlu0 %3296
      %3298 = vrot.lane.b32.xlu0 %v3069, 48
      %v3299 = vpop.permute.xlu0 %3298
      %3300 = vrot.lane.b32.xlu0 %v3070, 48
      %v3301 = vpop.permute.xlu0 %3300
      %3302 = vrot.lane.b32.xlu0 %v3071, 48
      %v3303 = vpop.permute.xlu0 %3302
      %3304 = vrot.lane.b32.xlu0 %v3072, 48
      %v3305 = vpop.permute.xlu0 %3304
      %3306 = vrot.lane.b32.xlu0 %v3073, 48
      %v3307 = vpop.permute.xlu0 %3306
      %3308 = vrot.lane.b32.xlu0 %v3074, 48
      %v3309 = vpop.permute.xlu0 %3308
      %3310 = vrot.lane.b32.xlu0 %v3075, 48
      %v3311 = vpop.permute.xlu0 %3310
      %3312 = vrot.lane.b32.xlu0 %v3076, 48
      %v3313 = vpop.permute.xlu0 %3312
      %3314 = vrot.lane.b32.xlu0 %v3077, 48
      %v3315 = vpop.permute.xlu0 %3314
      %3316 = vrot.lane.b32.xlu0 %v3078, 48
      %v3317 = vpop.permute.xlu0 %3316
      %3318 = vrot.lane.b32.xlu0 %v3079, 48
      %v3319 = vpop.permute.xlu0 %3318
      %3320 = vrot.lane.b32.xlu0 %v3080, 48
      %v3321 = vpop.permute.xlu0 %3320
      %3322 = vrot.lane.b32.xlu0 %v3081, 48
      %v3323 = vpop.permute.xlu0 %3322
      %3324 = vrot.lane.b32.xlu0 %v3082, 48
      %v3325 = vpop.permute.xlu0 %3324
      %3362 = vrot.lane.b32.xlu0 %v3083, 64
      %v3363 = vpop.permute.xlu0 %3362
      %3364 = vrot.lane.b32.xlu0 %v3084, 64
      %v3365 = vpop.permute.xlu0 %3364
      %3366 = vrot.lane.b32.xlu0 %v3085, 64
      %v3367 = vpop.permute.xlu0 %3366
      %3368 = vrot.lane.b32.xlu0 %v3086, 64
      %v3369 = vpop.permute.xlu0 %3368
      %3370 = vrot.lane.b32.xlu0 %v3087, 64
      %v3371 = vpop.permute.xlu0 %3370
      %3372 = vrot.lane.b32.xlu0 %v3088, 64
      %v3373 = vpop.permute.xlu0 %3372
      %3374 = vrot.lane.b32.xlu0 %v3089, 64
      %v3375 = vpop.permute.xlu0 %3374
      %3376 = vrot.lane.b32.xlu0 %v3090, 64
      %v3377 = vpop.permute.xlu0 %3376
      %3378 = vrot.lane.b32.xlu0 %v3091, 64
      %v3379 = vpop.permute.xlu0 %3378
      %3380 = vrot.lane.b32.xlu0 %v3092, 64
      %v3381 = vpop.permute.xlu0 %3380
      %3382 = vrot.lane.b32.xlu0 %v3093, 64
      %v3383 = vpop.permute.xlu0 %3382
      %3384 = vrot.lane.b32.xlu0 %v3094, 64
      %v3385 = vpop.permute.xlu0 %3384
      %3386 = vrot.lane.b32.xlu0 %v3095, 64
      %v3387 = vpop.permute.xlu0 %3386
      %3388 = vrot.lane.b32.xlu0 %v3096, 64
      %v3389 = vpop.permute.xlu0 %3388
      %3390 = vrot.lane.b32.xlu0 %v3097, 64
      %v3391 = vpop.permute.xlu0 %3390
      %3392 = vrot.lane.b32.xlu0 %v3098, 64
      %v3393 = vpop.permute.xlu0 %3392
      %3394 = vrot.lane.b32.xlu0 %v3099, 64
      %v3395 = vpop.permute.xlu0 %3394
      %3396 = vrot.lane.b32.xlu0 %v3100, 64
      %v3397 = vpop.permute.xlu0 %3396
      %3434 = vrot.lane.b32.xlu0 %v3101, 80
      %v3435 = vpop.permute.xlu0 %3434
      %3436 = vrot.lane.b32.xlu0 %v3102, 80
      %v3437 = vpop.permute.xlu0 %3436
      %3438 = vrot.lane.b32.xlu0 %v3103, 80
      %v3439 = vpop.permute.xlu0 %3438
      %3440 = vrot.lane.b32.xlu0 %v3104, 80
      %v3441 = vpop.permute.xlu0 %3440
      %3442 = vrot.lane.b32.xlu0 %v3105, 80
      %v3443 = vpop.permute.xlu0 %3442
      %3444 = vrot.lane.b32.xlu0 %v3106, 80
      %v3445 = vpop.permute.xlu0 %3444
      %3446 = vrot.lane.b32.xlu0 %v3107, 80
      %v3447 = vpop.permute.xlu0 %3446
      %3448 = vrot.lane.b32.xlu0 %v3108, 80
      %v3449 = vpop.permute.xlu0 %3448
      %3450 = vrot.lane.b32.xlu0 %v3109, 80
      %v3451 = vpop.permute.xlu0 %3450
      %3452 = vrot.lane.b32.xlu0 %v3110, 80
      %v3453 = vpop.permute.xlu0 %3452
      %3454 = vrot.lane.b32.xlu0 %v3111, 80
      %v3455 = vpop.permute.xlu0 %3454
      %3456 = vrot.lane.b32.xlu0 %v3112, 80
      %v3457 = vpop.permute.xlu0 %3456
      %3458 = vrot.lane.b32.xlu0 %v3113, 80
      %v3459 = vpop.permute.xlu0 %3458
      %3460 = vrot.lane.b32.xlu0 %v3114, 80
      %v3461 = vpop.permute.xlu0 %3460
      %3462 = vrot.lane.b32.xlu0 %v3115, 80
      %v3463 = vpop.permute.xlu0 %3462
      %3464 = vrot.lane.b32.xlu0 %v3116, 80
      %v3465 = vpop.permute.xlu0 %3464
      %3466 = vrot.lane.b32.xlu0 %v3117, 80
      %v3467 = vpop.permute.xlu0 %3466
      %3468 = vrot.lane.b32.xlu0 %v3118, 80
      %v3469 = vpop.permute.xlu0 %3468
      %3506 = vrot.lane.b32.xlu0 %v3014, 96
      %v3507 = vpop.permute.xlu0 %3506
      %3508 = vrot.lane.b32.xlu0 %v3015, 96
      %v3509 = vpop.permute.xlu0 %3508
      %3510 = vrot.lane.b32.xlu0 %v3016, 96
      %v3511 = vpop.permute.xlu0 %3510
      %3512 = vrot.lane.b32.xlu0 %v3017, 96
      %v3513 = vpop.permute.xlu0 %3512
      %3514 = vrot.lane.b32.xlu0 %v3018, 96
      %v3515 = vpop.permute.xlu0 %3514
      %3516 = vrot.lane.b32.xlu0 %v3019, 96
      %v3517 = vpop.permute.xlu0 %3516
      %3518 = vrot.lane.b32.xlu0 %v3020, 96
      %v3519 = vpop.permute.xlu0 %3518
      %3520 = vrot.lane.b32.xlu0 %v3021, 96
      %v3521 = vpop.permute.xlu0 %3520
      %3522 = vrot.lane.b32.xlu0 %v3022, 96
      %v3523 = vpop.permute.xlu0 %3522
      %3524 = vrot.lane.b32.xlu0 %v3023, 96
      %v3525 = vpop.permute.xlu0 %3524
      %3526 = vrot.lane.b32.xlu0 %v3024, 96
      %v3527 = vpop.permute.xlu0 %3526
      %3528 = vrot.lane.b32.xlu0 %v3025, 96
      %v3529 = vpop.permute.xlu0 %3528
      %3530 = vrot.lane.b32.xlu0 %v3026, 96
      %v3531 = vpop.permute.xlu0 %3530
      %3532 = vrot.lane.b32.xlu0 %v3027, 96
      %v3533 = vpop.permute.xlu0 %3532
      %3534 = vrot.lane.b32.xlu0 %v3028, 96
      %v3535 = vpop.permute.xlu0 %3534
      %3536 = vrot.lane.b32.xlu0 %v3119, 96
      %v3537 = vpop.permute.xlu0 %3536
      %3538 = vrot.lane.b32.xlu0 %v3120, 96
      %v3539 = vpop.permute.xlu0 %3538
      %3540 = vrot.lane.b32.xlu0 %v3121, 96
      %v3541 = vpop.permute.xlu0 %3540
      %3563 = vrot.lane.b32.xlu0 %v3032, 112
      %v3564 = vpop.permute.xlu0 %3563
      %3565 = vrot.lane.b32.xlu0 %v3033, 112
      %v3566 = vpop.permute.xlu0 %3565
      %3567 = vrot.lane.b32.xlu0 %v3034, 112
      %v3568 = vpop.permute.xlu0 %3567
      %3569 = vrot.lane.b32.xlu0 %v3035, 112
      %v3570 = vpop.permute.xlu0 %3569
      %3571 = vrot.lane.b32.xlu0 %v3036, 112
      %v3572 = vpop.permute.xlu0 %3571
      %3573 = vrot.lane.b32.xlu0 %v3037, 112
      %v3574 = vpop.permute.xlu0 %3573
      %3575 = vrot.lane.b32.xlu0 %v3038, 112
      %v3576 = vpop.permute.xlu0 %3575
      %3577 = vrot.lane.b32.xlu0 %v3039, 112
      %v3578 = vpop.permute.xlu0 %3577
      %3579 = vrot.lane.b32.xlu0 %v3040, 112
      %v3580 = vpop.permute.xlu0 %3579
      %3581 = vrot.lane.b32.xlu0 %v3041, 112
      %v3582 = vpop.permute.xlu0 %3581
      %3583 = vrot.lane.b32.xlu0 %v3042, 112
      %v3584 = vpop.permute.xlu0 %3583
      %3585 = vrot.lane.b32.xlu0 %v3043, 112
      %v3586 = vpop.permute.xlu0 %3585
      %3587 = vrot.lane.b32.xlu0 %v3044, 112
      %v3588 = vpop.permute.xlu0 %3587
      %3589 = vrot.lane.b32.xlu0 %v3045, 112
      %v3590 = vpop.permute.xlu0 %3589
      %3591 = vrot.lane.b32.xlu0 %v3046, 112
      %v3592 = vpop.permute.xlu0 %3591
      %3593 = vrot.lane.b32.xlu0 %v3122, 112
      %v3594 = vpop.permute.xlu0 %3593
      %3595 = vrot.lane.b32.xlu0 %v3123, 112
      %v3596 = vpop.permute.xlu0 %3595
      %3597 = vrot.lane.b32.xlu0 %v3124, 112
      %v3598 = vpop.permute.xlu0 %3597
      %v3617 = vsel %vm2939, %v3011, %v3147
      %v3618 = vsel %vm2939, %v3012, %v3149
      %v3619 = vsel %vm2939, %v3013, %v3151
      %v3620 = vsel %vm2939, %v3014, %v3153
      %v3621 = vsel %vm2939, %v3015, %v3155
      %v3622 = vsel %vm2939, %v3016, %v3157
      %v3623 = vsel %vm2939, %v3017, %v3159
      %v3624 = vsel %vm2939, %v3018, %v3161
      %v3625 = vsel %vm2939, %v3019, %v3163
      %v3626 = vsel %vm2939, %v3020, %v3165
      %v3627 = vsel %vm2939, %v3021, %v3167
      %v3628 = vsel %vm2939, %v3022, %v3169
      %v3629 = vsel %vm2939, %v3023, %v3171
      %v3630 = vsel %vm2939, %v3024, %v3173
      %v3631 = vsel %vm2939, %v3025, %v3175
      %v3632 = vsel %vm2939, %v3026, %v3177
      %v3633 = vsel %vm2939, %v3027, %v3179
      %v3634 = vsel %vm2939, %v3028, %v3181
      %v3635 = vsel %vm2962, %v3617, %v3219
      %v3636 = vsel %vm2962, %v3618, %v3221
      %v3637 = vsel %vm2962, %v3619, %v3223
      %v3638 = vsel %vm2962, %v3620, %v3225
      %v3639 = vsel %vm2962, %v3621, %v3227
      %v3640 = vsel %vm2962, %v3622, %v3229
      %v3641 = vsel %vm2962, %v3623, %v3231
      %v3642 = vsel %vm2962, %v3624, %v3233
      %v3643 = vsel %vm2962, %v3625, %v3235
      %v3644 = vsel %vm2962, %v3626, %v3237
      %v3645 = vsel %vm2962, %v3627, %v3239
      %v3646 = vsel %vm2962, %v3628, %v3241
      %v3647 = vsel %vm2962, %v3629, %v3243
      %v3648 = vsel %vm2962, %v3630, %v3245
      %v3649 = vsel %vm2962, %v3631, %v3247
      %v3650 = vsel %vm2962, %v3632, %v3249
      %v3651 = vsel %vm2962, %v3633, %v3251
      %v3652 = vsel %vm2962, %v3634, %v3253
      %vm3653 = vcmask 392192
      %v3654 = vsel %vm3653, %v3635, %v3291
      %v3655 = vsel %vm3653, %v3636, %v3293
      %v3656 = vsel %vm3653, %v3637, %v3295
      %v3657 = vsel %vm3653, %v3638, %v3297
      %v3658 = vsel %vm3653, %v3639, %v3299
      %v3659 = vsel %vm3653, %v3640, %v3301
      %v3660 = vsel %vm3653, %v3641, %v3303
      %v3661 = vsel %vm3653, %v3642, %v3305
      %v3662 = vsel %vm3653, %v3643, %v3307
      %v3663 = vsel %vm3653, %v3644, %v3309
      %v3664 = vsel %vm3653, %v3645, %v3311
      %v3665 = vsel %vm3653, %v3646, %v3313
      %v3666 = vsel %vm3653, %v3647, %v3315
      %v3667 = vsel %vm3653, %v3648, %v3317
      %v3668 = vsel %vm3653, %v3649, %v3319
      %v3669 = vsel %vm3653, %v3650, %v3321
      %v3670 = vsel %vm3653, %v3651, %v3323
      %v3671 = vsel %vm3653, %v3652, %v3325
      %vm3672 = vcmask 523264
      %v3673 = vsel %vm3672, %v3654, %v3363
      %v3674 = vsel %vm3672, %v3655, %v3365
      %v3675 = vsel %vm3672, %v3656, %v3367
      %v3676 = vsel %vm3672, %v3657, %v3369
      %v3677 = vsel %vm3672, %v3658, %v3371
      %v3678 = vsel %vm3672, %v3659, %v3373
      %v3679 = vsel %vm3672, %v3660, %v3375
      %v3680 = vsel %vm3672, %v3661, %v3377
      %v3681 = vsel %vm3672, %v3662, %v3379
      %v3682 = vsel %vm3672, %v3663, %v3381
      %v3683 = vsel %vm3672, %v3664, %v3383
      %v3684 = vsel %vm3672, %v3665, %v3385
      %v3685 = vsel %vm3672, %v3666, %v3387
      %v3686 = vsel %vm3672, %v3667, %v3389
      %v3687 = vsel %vm3672, %v3668, %v3391
      %v3688 = vsel %vm3672, %v3669, %v3393
      %v3689 = vsel %vm3672, %v3670, %v3395
      %v3690 = vsel %vm3672, %v3671, %v3397
      %vm3691 = vcmask 654336
      %v3692 = vsel %vm3691, %v3673, %v3435
      %v3693 = vsel %vm3691, %v3674, %v3437
      %v3694 = vsel %vm3691, %v3675, %v3439
      %v3695 = vsel %vm3691, %v3676, %v3441
      %v3696 = vsel %vm3691, %v3677, %v3443
      %v3697 = vsel %vm3691, %v3678, %v3445
      %v3698 = vsel %vm3691, %v3679, %v3447
      %v3699 = vsel %vm3691, %v3680, %v3449
      %v3700 = vsel %vm3691, %v3681, %v3451
      %v3701 = vsel %vm3691, %v3682, %v3453
      %v3702 = vsel %vm3691, %v3683, %v3455
      %v3703 = vsel %vm3691, %v3684, %v3457
      %v3704 = vsel %vm3691, %v3685, %v3459
      %v3705 = vsel %vm3691, %v3686, %v3461
      %v3706 = vsel %vm3691, %v3687, %v3463
      %v3707 = vsel %vm3691, %v3688, %v3465
      %v3708 = vsel %vm3691, %v3689, %v3467
      %v3709 = vsel %vm3691, %v3690, %v3469
      %vm3710 = vcmask 785408
      %v3711 = vsel %vm3710, %v3692, %v3507
      %v3712 = vsel %vm3710, %v3693, %v3509
      %v3713 = vsel %vm3710, %v3694, %v3511
      %v3714 = vsel %vm3710, %v3695, %v3513
      %v3715 = vsel %vm3710, %v3696, %v3515
      %v3716 = vsel %vm3710, %v3697, %v3517
      %v3717 = vsel %vm3710, %v3698, %v3519
      %v3718 = vsel %vm3710, %v3699, %v3521
      %v3719 = vsel %vm3710, %v3700, %v3523
      %v3720 = vsel %vm3710, %v3701, %v3525
      %v3721 = vsel %vm3710, %v3702, %v3527
      %v3722 = vsel %vm3710, %v3703, %v3529
      %v3723 = vsel %vm3710, %v3704, %v3531
      %v3724 = vsel %vm3710, %v3705, %v3533
      %v3725 = vsel %vm3710, %v3706, %v3535
      %v3726 = vsel %vm3710, %v3707, %v3537
      %v3727 = vsel %vm3710, %v3708, %v3539
      %v3728 = vsel %vm3710, %v3709, %v3541
      %vm3729 = vcmask 916480
      %v3730 = vsel %vm3729, %v3711, %v3564
      %v3731 = vsel %vm3729, %v3712, %v3566
      %v3732 = vsel %vm3729, %v3713, %v3568
      %v3733 = vsel %vm3729, %v3714, %v3570
      %v3734 = vsel %vm3729, %v3715, %v3572
      %v3735 = vsel %vm3729, %v3716, %v3574
      %v3736 = vsel %vm3729, %v3717, %v3576
      %v3737 = vsel %vm3729, %v3718, %v3578
      %v3738 = vsel %vm3729, %v3719, %v3580
      %v3739 = vsel %vm3729, %v3720, %v3582
      %v3740 = vsel %vm3729, %v3721, %v3584
      %v3741 = vsel %vm3729, %v3722, %v3586
      %v3742 = vsel %vm3729, %v3723, %v3588
      %v3743 = vsel %vm3729, %v3724, %v3590
      %v3744 = vsel %vm3729, %v3725, %v3592
      %v3745 = vsel %vm3729, %v3726, %v3594
      %v3746 = vsel %vm3729, %v3727, %v3596
      %v3747 = vsel %vm3729, %v3728, %v3598
      %v3748 = vpack.c.bf16 %v3731, %v3730
      %v3749 = vpack.c.bf16 %v3051, %v3050
      %v3750 = vpack.c.bf16 %v3733, %v3732
      %v3751 = vpack.c.bf16 %v3053, %v3052
      %v3752 = vpack.c.bf16 %v3735, %v3734
      %v3753 = vpack.c.bf16 %v3055, %v3054
      %v3754 = vpack.c.bf16 %v3737, %v3736
      %v3755 = vpack.c.bf16 %v3057, %v3056
      %v3756 = vpack.c.bf16 %v3739, %v3738
      %v3757 = vpack.c.bf16 %v3059, %v3058
      %v3758 = vpack.c.bf16 %v3741, %v3740
      %v3759 = vpack.c.bf16 %v3061, %v3060
      %v3760 = vpack.c.bf16 %v3743, %v3742
      %v3761 = vpack.c.bf16 %v3063, %v3062
      %v3762 = vpack.c.bf16 %v3745, %v3744
      %v3763 = vpack.c.bf16 %v3125, %v3064
      %v3764 = vpack.c.bf16 %v3747, %v3746
      %v3765 = vpack.c.bf16 %v3127, %v3126
      %v3766 = vld [vmem:[%s2] sm:$0xf]
      %v3767 = vld [vmem:[%s2 + $0x4] sm:$0xf]
      %v3768 = vld [vmem:[%s2 + $0x8] sm:$0xf]
      %v3769 = vld [vmem:[%s2 + $0xc] sm:$0xf]
      %v3770 = vld [vmem:[%s2 + $0x10] sm:$0xf]
      %v3771 = vld [vmem:[%s2 + $0x14] sm:$0xf]
      %v3772 = vld [vmem:[%s2 + $0x18] sm:$0xf]
      %v3773 = vld [vmem:[%s2 + $0x1c] sm:$0xf]
      %v3774 = vld [vmem:[%s2 + $0x20] sm:$0xf]
      %v3775 = vld [vmem:[%s2 + $0x24] sm:$0xf]
      %v3776 = vld [vmem:[%s2 + $0x28] sm:$0xf]
      %v3777 = vld [vmem:[%s2 + $0x2c] sm:$0xf]
      %v3778 = vld [vmem:[%s2 + $0x30] sm:$0xf]
      %v3779 = vld [vmem:[%s2 + $0x34] sm:$0xf]
      %v3780 = vld [vmem:[%s2 + $0x38] sm:$0xf]
      %v3781 = vld [vmem:[%s2 + $0x3c] sm:$0xf]
      %v3782 = vld [vmem:[%s2 + $0x40] sm:$0xf]
      %v3783 = vld [vmem:[%s2 + $0x44] sm:$0xf]
      %v3802 = vunpack.c.l.b16 %v3766
      %v3803 = vunpack.c.l.b16 %v3767
      %v3804 = vunpack.c.l.b16 %v3768
      %v3805 = vunpack.c.l.b16 %v3769
      %v3806 = vunpack.c.l.b16 %v3770
      %v3807 = vunpack.c.l.b16 %v3771
      %v3808 = vunpack.c.l.b16 %v3772
      %v3809 = vunpack.c.l.b16 %v3773
      %v3810 = vunpack.c.l.b16 %v3774
      %v3811 = vunpack.c.l.b16 %v3775
      %v3812 = vunpack.c.l.b16 %v3776
      %v3813 = vunpack.c.l.b16 %v3777
      %v3814 = vunpack.c.l.b16 %v3778
      %v3815 = vunpack.c.l.b16 %v3779
      %v3816 = vunpack.c.l.b16 %v3780
      %v3817 = vunpack.c.l.b16 %v3781
      %v3818 = vunpack.c.l.b16 %v3782
      %v3819 = vunpack.c.l.b16 %v3783
      %v3820 = vpack.c.b16 %v3803, %v3802
      %v3821 = vpack.c.b16 %v3805, %v3804
      %v3822 = vpack.c.b16 %v3807, %v3806
      %v3823 = vpack.c.b16 %v3809, %v3808
      %v3824 = vpack.c.b16 %v3811, %v3810
      %v3825 = vpack.c.b16 %v3813, %v3812
      %v3826 = vpack.c.b16 %v3815, %v3814
      %v3827 = vpack.c.b16 %v3817, %v3816
      %v3828 = vpack.c.b16 %v3819, %v3818
      %v3839 = vsel %vm2939, %v3749, 0
      %v3842 = vsel %vm2939, %v3751, 0
      %v3845 = vsel %vm2939, %v3753, 0
      %v3848 = vsel %vm2939, %v3755, 0
      %v3851 = vsel %vm2939, %v3757, 0
      %v3854 = vsel %vm2939, %v3759, 0
      %v3857 = vsel %vm2939, %v3761, 0
      %v3860 = vsel %vm2939, %v3763, 0
      %v3863 = vsel %vm2939, %v3765, 0
      %3865 = vmatprep.subr.bf16.mxu0 0
      %3866 = vmatpush1.bf16.msra.mxu0 %v3820
      %3867 = vmatprep.subr.bf16.mxu0 0
      %3868 = vmatpush1.bf16.msra.mxu0 %v3821
      %3869 = vmatprep.subr.bf16.mxu0 0
      %3870 = vmatpush1.bf16.msra.mxu0 %v3822
      %3871 = vmatprep.subr.bf16.mxu0 0
      %3872 = vmatpush1.bf16.msra.mxu0 %v3823
      %3873 = vmatprep.subr.bf16.mxu0 0
      %3874 = vmatpush1.bf16.msra.mxu0 %v3824
      %3875 = vmatprep.subr.bf16.mxu0 0
      %3876 = vmatpush1.bf16.msra.mxu0 %v3825
      %3877 = vmatprep.subr.bf16.mxu0 0
      %3878 = vmatpush1.bf16.msra.mxu0 %v3826
      %3879 = vmatprep.subr.bf16.mxu0 0
      %3880 = vmatpush1.bf16.msra.mxu0 %v3827
      %3881 = vmatprep.subr.bf16.mxu0 0
      %3882 = vmatpush1.bf16.msra.mxu0 %v3828
      %3883 = vmatprep.subr.bf16.mxu0 0
      %3884 = vmatpush1.bf16.msra.mxu0 0
      %3885 = vmatprep.subr.bf16.mxu0 0
      %3886 = vmatpush1.bf16.msra.mxu0 0
      %3887 = vmatprep.subr.bf16.mxu0 0
      %3888 = vmatpush1.bf16.msra.mxu0 0
      %3889 = vmatprep.subr.bf16.mxu0 0
      %3890 = vmatpush1.bf16.msra.mxu0 0
      %3891 = vmatprep.subr.bf16.mxu0 0
      %3892 = vmatpush1.bf16.msra.mxu0 0
      %3893 = vmatprep.subr.bf16.mxu0 0
      %3894 = vmatpush1.bf16.msra.mxu0 0
      %3895 = vmatprep.subr.bf16.mxu0 0
      %3896 = vmatpush1.bf16.msra.mxu0 0
      %3897 = vmatprep.mubr.bf16.mxu0 %v3839
      %3898 = vmatmul.mubr.bf16.gmra.mrb[0].mxu0 %v3748
      %v3899 = vpop.f32.mrb[0].mxu0
      %v3900 = vadd.f32 0.0, %v3899
      %v3901 = vpop.f32.mrb[0].mxu0
      %v3902 = vpop.f32.mrb[0].mxu0
      %v3903 = vadd.f32 0.0, %v3902
      %v3904 = vpop.f32.mrb[0].mxu0
      %3905 = vmatprep.mubr.bf16.mxu0 %v3842
      %3906 = vmatmul.mubr.bf16.gmra.mrb[0].mxu0 %v3750
      %v3907 = vpop.f32.mrb[0].mxu0
      %v3908 = vadd.f32 0.0, %v3907
      %v3909 = vpop.f32.mrb[0].mxu0
      %v3910 = vpop.f32.mrb[0].mxu0
      %v3911 = vadd.f32 0.0, %v3910
      %v3912 = vpop.f32.mrb[0].mxu0
      %3913 = vmatprep.mubr.bf16.mxu0 %v3845
      %3914 = vmatmul.mubr.bf16.gmra.mrb[0].mxu0 %v3752
      %v3915 = vpop.f32.mrb[0].mxu0
      %v3916 = vadd.f32 0.0, %v3915
      %v3917 = vpop.f32.mrb[0].mxu0
      %v3918 = vpop.f32.mrb[0].mxu0
      %v3919 = vadd.f32 0.0, %v3918
      %v3920 = vpop.f32.mrb[0].mxu0
      %3921 = vmatprep.mubr.bf16.mxu0 %v3848
      %3922 = vmatmul.mubr.bf16.gmra.mrb[0].mxu0 %v3754
      %v3923 = vpop.f32.mrb[0].mxu0
      %v3924 = vadd.f32 0.0, %v3923
      %v3925 = vpop.f32.mrb[0].mxu0
      %v3926 = vpop.f32.mrb[0].mxu0
      %v3927 = vadd.f32 0.0, %v3926
      %v3928 = vpop.f32.mrb[0].mxu0
      %3929 = vmatprep.mubr.bf16.mxu0 %v3851
      %3930 = vmatmul.mubr.bf16.gmra.mrb[0].mxu0 %v3756
      %v3931 = vpop.f32.mrb[0].mxu0
      %v3932 = vadd.f32 0.0, %v3931
      %v3933 = vpop.f32.mrb[0].mxu0
      %v3934 = vpop.f32.mrb[0].mxu0
      %v3935 = vadd.f32 0.0, %v3934
      %v3936 = vpop.f32.mrb[0].mxu0
      %3937 = vmatprep.mubr.bf16.mxu0 %v3854
      %3938 = vmatmul.mubr.bf16.gmra.mrb[0].mxu0 %v3758
      %v3939 = vpop.f32.mrb[0].mxu0
      %v3940 = vadd.f32 0.0, %v3939
      %v3941 = vpop.f32.mrb[0].mxu0
      %v3942 = vpop.f32.mrb[0].mxu0
      %v3943 = vadd.f32 0.0, %v3942
      %v3944 = vpop.f32.mrb[0].mxu0
      %3945 = vmatprep.mubr.bf16.mxu0 %v3857
      %3946 = vmatmul.mubr.bf16.gmra.mrb[0].mxu0 %v3760
      %v3947 = vpop.f32.mrb[0].mxu0
      %v3948 = vadd.f32 0.0, %v3947
      %v3949 = vpop.f32.mrb[0].mxu0
      %v3950 = vpop.f32.mrb[0].mxu0
      %v3951 = vadd.f32 0.0, %v3950
      %v3952 = vpop.f32.mrb[0].mxu0
      %3953 = vmatprep.mubr.bf16.mxu0 %v3860
      %3954 = vmatmul.mubr.bf16.gmra.mrb[0].mxu0 %v3762
      %v3955 = vpop.f32.mrb[0].mxu0
      %v3956 = vadd.f32 0.0, %v3955
      %v3957 = vpop.f32.mrb[0].mxu0
      %v3958 = vpop.f32.mrb[0].mxu0
      %v3959 = vadd.f32 0.0, %v3958
      %v3960 = vpop.f32.mrb[0].mxu0
      %3961 = vmatprep.mubr.bf16.mxu0 %v3863
      %3962 = vmatmul.mubr.bf16.gmra.mrb[0].mxu0 %v3764
      %v3963 = vpop.f32.mrb[0].mxu0
      %v3964 = vadd.f32 0.0, %v3963
      %v3965 = vpop.f32.mrb[0].mxu0
      %v3966 = vpop.f32.mrb[0].mxu0
      %v3967 = vadd.f32 0.0, %v3966
      %v3968 = vpop.f32.mrb[0].mxu0
      %3969 = vdwg.mxu0
      %v3970 = vlaneseq
      %v3971 = vshrl.u32 %v3970, 7
      %v3972 = vadd.s32 %v3971, 8
      %v3973 = vadd.s32 %v3971, 16
      %v3974 = vadd.s32 %v3971, 24
      %v3975 = vadd.s32 %v3971, 32
      %v3976 = vadd.s32 %v3971, 40
      %v3977 = vadd.s32 %v3971, 48
      %v3978 = vadd.s32 %v3971, 56
      %v3979 = vadd.s32 %v3971, 64
      %v3980 = vadd.s32 %v3971, 72
      %v3981 = vadd.s32 %v3971, 80
      %v3982 = vadd.s32 %v3971, 88
      %v3983 = vadd.s32 %v3971, 96
      %v3984 = vadd.s32 %v3971, 104
      %v3985 = vadd.s32 %v3971, 112
      %v3986 = vadd.s32 %v3971, 120
      %v3987 = vadd.s32 %v3971, 128
      %v3988 = vadd.s32 %v3971, 136
      %vm3989 = vcmp.lt.s32.totalorder %v3971, 0
      %v3990 = vsub.s32 0, %v3971
      %v3991 = vsel %vm3989, %v3990, %v3971
      %v3992 = vmul.u32.u64.compose %v3991, 2863311531
      %v3993 = vextract.low.u32 %v3992
      %v3994 = vextract.high.u32 %v3992
      %v3995 = vshrl.u32 %v3994, 3
      %v3996 = vmul.u32 %v3995, 12
      %v3997 = vsub.s32 %v3991, %v3996
      %v3998 = vsub.s32 0, %v3997
      %v3999 = vsel %vm3989, %v3998, %v3997
      %vm4000 = vcmp.lt.s32.totalorder %v3972, 0
      %v4001 = vsub.s32 0, %v3972
      %v4002 = vsel %vm4000, %v4001, %v3972
      %v4003 = vmul.u32.u64.compose %v4002, 2863311531
      %v4004 = vextract.low.u32 %v4003
      %v4005 = vextract.high.u32 %v4003
      %v4006 = vshrl.u32 %v4005, 3
      %v4007 = vmul.u32 %v4006, 12
      %v4008 = vsub.s32 %v4002, %v4007
      %v4009 = vsub.s32 0, %v4008
      %v4010 = vsel %vm4000, %v4009, %v4008
      %vm4011 = vcmp.lt.s32.totalorder %v3973, 0
      %v4012 = vsub.s32 0, %v3973
      %v4013 = vsel %vm4011, %v4012, %v3973
      %v4014 = vmul.u32.u64.compose %v4013, 2863311531
      %v4015 = vextract.low.u32 %v4014
      %v4016 = vextract.high.u32 %v4014
      %v4017 = vshrl.u32 %v4016, 3
      %v4018 = vmul.u32 %v4017, 12
      %v4019 = vsub.s32 %v4013, %v4018
      %v4020 = vsub.s32 0, %v4019
      %v4021 = vsel %vm4011, %v4020, %v4019
      %vm4022 = vcmp.lt.s32.totalorder %v3974, 0
      %v4023 = vsub.s32 0, %v3974
      %v4024 = vsel %vm4022, %v4023, %v3974
      %v4025 = vmul.u32.u64.compose %v4024, 2863311531
      %v4026 = vextract.low.u32 %v4025
      %v4027 = vextract.high.u32 %v4025
      %v4028 = vshrl.u32 %v4027, 3
      %v4029 = vmul.u32 %v4028, 12
      %v4030 = vsub.s32 %v4024, %v4029
      %v4031 = vsub.s32 0, %v4030
      %v4032 = vsel %vm4022, %v4031, %v4030
      %vm4033 = vcmp.lt.s32.totalorder %v3975, 0
      %v4034 = vsub.s32 0, %v3975
      %v4035 = vsel %vm4033, %v4034, %v3975
      %v4036 = vmul.u32.u64.compose %v4035, 2863311531
      %v4037 = vextract.low.u32 %v4036
      %v4038 = vextract.high.u32 %v4036
      %v4039 = vshrl.u32 %v4038, 3
      %v4040 = vmul.u32 %v4039, 12
      %v4041 = vsub.s32 %v4035, %v4040
      %v4042 = vsub.s32 0, %v4041
      %v4043 = vsel %vm4033, %v4042, %v4041
      %vm4044 = vcmp.lt.s32.totalorder %v3976, 0
      %v4045 = vsub.s32 0, %v3976
      %v4046 = vsel %vm4044, %v4045, %v3976
      %v4047 = vmul.u32.u64.compose %v4046, 2863311531
      %v4048 = vextract.low.u32 %v4047
      %v4049 = vextract.high.u32 %v4047
      %v4050 = vshrl.u32 %v4049, 3
      %v4051 = vmul.u32 %v4050, 12
      %v4052 = vsub.s32 %v4046, %v4051
      %v4053 = vsub.s32 0, %v4052
      %v4054 = vsel %vm4044, %v4053, %v4052
      %vm4055 = vcmp.lt.s32.totalorder %v3977, 0
      %v4056 = vsub.s32 0, %v3977
      %v4057 = vsel %vm4055, %v4056, %v3977
      %v4058 = vmul.u32.u64.compose %v4057, 2863311531
      %v4059 = vextract.low.u32 %v4058
      %v4060 = vextract.high.u32 %v4058
      %v4061 = vshrl.u32 %v4060, 3
      %v4062 = vmul.u32 %v4061, 12
      %v4063 = vsub.s32 %v4057, %v4062
      %v4064 = vsub.s32 0, %v4063
      %v4065 = vsel %vm4055, %v4064, %v4063
      %vm4066 = vcmp.lt.s32.totalorder %v3978, 0
      %v4067 = vsub.s32 0, %v3978
      %v4068 = vsel %vm4066, %v4067, %v3978
      %v4069 = vmul.u32.u64.compose %v4068, 2863311531
      %v4070 = vextract.low.u32 %v4069
      %v4071 = vextract.high.u32 %v4069
      %v4072 = vshrl.u32 %v4071, 3
      %v4073 = vmul.u32 %v4072, 12
      %v4074 = vsub.s32 %v4068, %v4073
      %v4075 = vsub.s32 0, %v4074
      %v4076 = vsel %vm4066, %v4075, %v4074
      %vm4077 = vcmp.lt.s32.totalorder %v3979, 0
      %v4078 = vsub.s32 0, %v3979
      %v4079 = vsel %vm4077, %v4078, %v3979
      %v4080 = vmul.u32.u64.compose %v4079, 2863311531
      %v4081 = vextract.low.u32 %v4080
      %v4082 = vextract.high.u32 %v4080
      %v4083 = vshrl.u32 %v4082, 3
      %v4084 = vmul.u32 %v4083, 12
      %v4085 = vsub.s32 %v4079, %v4084
      %v4086 = vsub.s32 0, %v4085
      %v4087 = vsel %vm4077, %v4086, %v4085
      %vm4088 = vcmp.lt.s32.totalorder %v3980, 0
      %v4089 = vsub.s32 0, %v3980
      %v4090 = vsel %vm4088, %v4089, %v3980
      %v4091 = vmul.u32.u64.compose %v4090, 2863311531
      %v4092 = vextract.low.u32 %v4091
      %v4093 = vextract.high.u32 %v4091
      %v4094 = vshrl.u32 %v4093, 3
      %v4095 = vmul.u32 %v4094, 12
      %v4096 = vsub.s32 %v4090, %v4095
      %v4097 = vsub.s32 0, %v4096
      %v4098 = vsel %vm4088, %v4097, %v4096
      %vm4099 = vcmp.lt.s32.totalorder %v3981, 0
      %v4100 = vsub.s32 0, %v3981
      %v4101 = vsel %vm4099, %v4100, %v3981
      %v4102 = vmul.u32.u64.compose %v4101, 2863311531
      %v4103 = vextract.low.u32 %v4102
      %v4104 = vextract.high.u32 %v4102
      %v4105 = vshrl.u32 %v4104, 3
      %v4106 = vmul.u32 %v4105, 12
      %v4107 = vsub.s32 %v4101, %v4106
      %v4108 = vsub.s32 0, %v4107
      %v4109 = vsel %vm4099, %v4108, %v4107
      %vm4110 = vcmp.lt.s32.totalorder %v3982, 0
      %v4111 = vsub.s32 0, %v3982
      %v4112 = vsel %vm4110, %v4111, %v3982
      %v4113 = vmul.u32.u64.compose %v4112, 2863311531
      %v4114 = vextract.low.u32 %v4113
      %v4115 = vextract.high.u32 %v4113
      %v4116 = vshrl.u32 %v4115, 3
      %v4117 = vmul.u32 %v4116, 12
      %v4118 = vsub.s32 %v4112, %v4117
      %v4119 = vsub.s32 0, %v4118
      %v4120 = vsel %vm4110, %v4119, %v4118
      %vm4121 = vcmp.lt.s32.totalorder %v3983, 0
      %v4122 = vsub.s32 0, %v3983
      %v4123 = vsel %vm4121, %v4122, %v3983
      %v4124 = vmul.u32.u64.compose %v4123, 2863311531
      %v4125 = vextract.low.u32 %v4124
      %v4126 = vextract.high.u32 %v4124
      %v4127 = vshrl.u32 %v4126, 3
      %v4128 = vmul.u32 %v4127, 12
      %v4129 = vsub.s32 %v4123, %v4128
      %v4130 = vsub.s32 0, %v4129
      %v4131 = vsel %vm4121, %v4130, %v4129
      %vm4132 = vcmp.lt.s32.totalorder %v3984, 0
      %v4133 = vsub.s32 0, %v3984
      %v4134 = vsel %vm4132, %v4133, %v3984
      %v4135 = vmul.u32.u64.compose %v4134, 2863311531
      %v4136 = vextract.low.u32 %v4135
      %v4137 = vextract.high.u32 %v4135
      %v4138 = vshrl.u32 %v4137, 3
      %v4139 = vmul.u32 %v4138, 12
      %v4140 = vsub.s32 %v4134, %v4139
      %v4141 = vsub.s32 0, %v4140
      %v4142 = vsel %vm4132, %v4141, %v4140
      %vm4143 = vcmp.lt.s32.totalorder %v3985, 0
      %v4144 = vsub.s32 0, %v3985
      %v4145 = vsel %vm4143, %v4144, %v3985
      %v4146 = vmul.u32.u64.compose %v4145, 2863311531
      %v4147 = vextract.low.u32 %v4146
      %v4148 = vextract.high.u32 %v4146
      %v4149 = vshrl.u32 %v4148, 3
      %v4150 = vmul.u32 %v4149, 12
      %v4151 = vsub.s32 %v4145, %v4150
      %v4152 = vsub.s32 0, %v4151
      %v4153 = vsel %vm4143, %v4152, %v4151
      %vm4154 = vcmp.lt.s32.totalorder %v3986, 0
      %v4155 = vsub.s32 0, %v3986
      %v4156 = vsel %vm4154, %v4155, %v3986
      %v4157 = vmul.u32.u64.compose %v4156, 2863311531
      %v4158 = vextract.low.u32 %v4157
      %v4159 = vextract.high.u32 %v4157
      %v4160 = vshrl.u32 %v4159, 3
      %v4161 = vmul.u32 %v4160, 12
      %v4162 = vsub.s32 %v4156, %v4161
      %v4163 = vsub.s32 0, %v4162
      %v4164 = vsel %vm4154, %v4163, %v4162
      %vm4165 = vcmp.lt.s32.totalorder %v3987, 0
      %v4166 = vsub.s32 0, %v3987
      %v4167 = vsel %vm4165, %v4166, %v3987
      %v4168 = vmul.u32.u64.compose %v4167, 2863311531
      %v4169 = vextract.low.u32 %v4168
      %v4170 = vextract.high.u32 %v4168
      %v4171 = vshrl.u32 %v4170, 3
      %v4172 = vmul.u32 %v4171, 12
      %v4173 = vsub.s32 %v4167, %v4172
      %v4174 = vsub.s32 0, %v4173
      %v4175 = vsel %vm4165, %v4174, %v4173
      %vm4176 = vcmp.lt.s32.totalorder %v3988, 0
      %v4177 = vsub.s32 0, %v3988
      %v4178 = vsel %vm4176, %v4177, %v3988
      %v4179 = vmul.u32.u64.compose %v4178, 2863311531
      %v4180 = vextract.low.u32 %v4179
      %v4181 = vextract.high.u32 %v4179
      %v4182 = vshrl.u32 %v4181, 3
      %v4183 = vmul.u32 %v4182, 12
      %v4184 = vsub.s32 %v4178, %v4183
      %v4185 = vsub.s32 0, %v4184
      %v4186 = vsel %vm4176, %v4185, %v4184
      %vm4187 = vcmp.ne.s32.totalorder %v3999, 0
      %vm4188 = vcmp.ne.s32.totalorder %v4010, 0
      %vm4189 = vcmp.ne.s32.totalorder %v4021, 0
      %vm4190 = vcmp.ne.s32.totalorder %v4032, 0
      %vm4191 = vcmp.ne.s32.totalorder %v4043, 0
      %vm4192 = vcmp.ne.s32.totalorder %v4054, 0
      %vm4193 = vcmp.ne.s32.totalorder %v4065, 0
      %vm4194 = vcmp.ne.s32.totalorder %v4076, 0
      %vm4195 = vcmp.ne.s32.totalorder %v4087, 0
      %vm4196 = vcmp.ne.s32.totalorder %v4098, 0
      %vm4197 = vcmp.ne.s32.totalorder %v4109, 0
      %vm4198 = vcmp.ne.s32.totalorder %v4120, 0
      %vm4199 = vcmp.ne.s32.totalorder %v4131, 0
      %vm4200 = vcmp.ne.s32.totalorder %v4142, 0
      %vm4201 = vcmp.ne.s32.totalorder %v4153, 0
      %vm4202 = vcmp.ne.s32.totalorder %v4164, 0
      %vm4203 = vcmp.ne.s32.totalorder %v4175, 0
      %vm4204 = vcmp.ne.s32.totalorder %v4186, 0
      %vm4205 = vcmp.lt.s32.totalorder %v3999, 0
      %vm4206 = vcmp.lt.s32.totalorder %v4010, 0
      %vm4207 = vcmp.lt.s32.totalorder %v4021, 0
      %vm4208 = vcmp.lt.s32.totalorder %v4032, 0
      %vm4209 = vcmp.lt.s32.totalorder %v4043, 0
      %vm4210 = vcmp.lt.s32.totalorder %v4054, 0
      %vm4211 = vcmp.lt.s32.totalorder %v4065, 0
      %vm4212 = vcmp.lt.s32.totalorder %v4076, 0
      %vm4213 = vcmp.lt.s32.totalorder %v4087, 0
      %vm4214 = vcmp.lt.s32.totalorder %v4098, 0
      %vm4215 = vcmp.lt.s32.totalorder %v4109, 0
      %vm4216 = vcmp.lt.s32.totalorder %v4120, 0
      %vm4217 = vcmp.lt.s32.totalorder %v4131, 0
      %vm4218 = vcmp.lt.s32.totalorder %v4142, 0
      %vm4219 = vcmp.lt.s32.totalorder %v4153, 0
      %vm4220 = vcmp.lt.s32.totalorder %v4164, 0
      %vm4221 = vcmp.lt.s32.totalorder %v4175, 0
      %vm4222 = vcmp.lt.s32.totalorder %v4186, 0
      %vm4223 = vmand %vm4205, %vm4187
      %vm4224 = vmand %vm4206, %vm4188
      %vm4225 = vmand %vm4207, %vm4189
      %vm4226 = vmand %vm4208, %vm4190
      %vm4227 = vmand %vm4209, %vm4191
      %vm4228 = vmand %vm4210, %vm4192
      %vm4229 = vmand %vm4211, %vm4193
      %vm4230 = vmand %vm4212, %vm4194
      %vm4231 = vmand %vm4213, %vm4195
      %vm4232 = vmand %vm4214, %vm4196
      %vm4233 = vmand %vm4215, %vm4197
      %vm4234 = vmand %vm4216, %vm4198
      %vm4235 = vmand %vm4217, %vm4199
      %vm4236 = vmand %vm4218, %vm4200
      %vm4237 = vmand %vm4219, %vm4201
      %vm4238 = vmand %vm4220, %vm4202
      %vm4239 = vmand %vm4221, %vm4203
      %vm4240 = vmand %vm4222, %vm4204
      %v4241 = vadd.s32 %v3999, 12
      %v4242 = vadd.s32 %v4010, 12
      %v4243 = vadd.s32 %v4021, 12
      %v4244 = vadd.s32 %v4032, 12
      %v4245 = vadd.s32 %v4043, 12
      %v4246 = vadd.s32 %v4054, 12
      %v4247 = vadd.s32 %v4065, 12
      %v4248 = vadd.s32 %v4076, 12
      %v4249 = vadd.s32 %v4087, 12
      %v4250 = vadd.s32 %v4098, 12
      %v4251 = vadd.s32 %v4109, 12
      %v4252 = vadd.s32 %v4120, 12
      %v4253 = vadd.s32 %v4131, 12
      %v4254 = vadd.s32 %v4142, 12
      %v4255 = vadd.s32 %v4153, 12
      %v4256 = vadd.s32 %v4164, 12
      %v4257 = vadd.s32 %v4175, 12
      %v4258 = vadd.s32 %v4186, 12
      %v4259 = vsel %vm4223, %v4241, %v3999
      %v4260 = vsel %vm4224, %v4242, %v4010
      %v4261 = vsel %vm4225, %v4243, %v4021
      %v4262 = vsel %vm4226, %v4244, %v4032
      %v4263 = vsel %vm4227, %v4245, %v4043
      %v4264 = vsel %vm4228, %v4246, %v4054
      %v4265 = vsel %vm4229, %v4247, %v4065
      %v4266 = vsel %vm4230, %v4248, %v4076
      %v4267 = vsel %vm4231, %v4249, %v4087
      %v4268 = vsel %vm4232, %v4250, %v4098
      %v4269 = vsel %vm4233, %v4251, %v4109
      %v4270 = vsel %vm4234, %v4252, %v4120
      %v4271 = vsel %vm4235, %v4253, %v4131
      %v4272 = vsel %vm4236, %v4254, %v4142
      %v4273 = vsel %vm4237, %v4255, %v4153
      %v4274 = vsel %vm4238, %v4256, %v4164
      %v4275 = vsel %vm4239, %v4257, %v4175
      %v4276 = vsel %vm4240, %v4258, %v4186
      %vm4277 = vcmp.lt.s32.totalorder %v4259, 10
      %vm4278 = vcmp.lt.s32.totalorder %v4260, 10
      %vm4279 = vcmp.lt.s32.totalorder %v4261, 10
      %vm4280 = vcmp.lt.s32.totalorder %v4262, 10
      %vm4281 = vcmp.lt.s32.totalorder %v4263, 10
      %vm4282 = vcmp.lt.s32.totalorder %v4264, 10
      %vm4283 = vcmp.lt.s32.totalorder %v4265, 10
      %vm4284 = vcmp.lt.s32.totalorder %v4266, 10
      %vm4285 = vcmp.lt.s32.totalorder %v4267, 10
      %vm4286 = vcmp.lt.s32.totalorder %v4268, 10
      %vm4287 = vcmp.lt.s32.totalorder %v4269, 10
      %vm4288 = vcmp.lt.s32.totalorder %v4270, 10
      %vm4289 = vcmp.lt.s32.totalorder %v4271, 10
      %vm4290 = vcmp.lt.s32.totalorder %v4272, 10
      %vm4291 = vcmp.lt.s32.totalorder %v4273, 10
      %vm4292 = vcmp.lt.s32.totalorder %v4274, 10
      %vm4293 = vcmp.lt.s32.totalorder %v4275, 10
      %vm4294 = vcmp.lt.s32.totalorder %v4276, 10
      %vm4295 = vcmp.lt.s32.totalorder %v3971, 120
      %vm4296 = vcmp.lt.s32.totalorder %v3972, 120
      %vm4297 = vcmp.lt.s32.totalorder %v3973, 120
      %vm4298 = vcmp.lt.s32.totalorder %v3974, 120
      %vm4299 = vcmp.lt.s32.totalorder %v3975, 120
      %vm4300 = vcmp.lt.s32.totalorder %v3976, 120
      %vm4301 = vcmp.lt.s32.totalorder %v3977, 120
      %vm4302 = vcmp.lt.s32.totalorder %v3978, 120
      %vm4303 = vcmp.lt.s32.totalorder %v3979, 120
      %vm4304 = vcmp.lt.s32.totalorder %v3980, 120
      %vm4305 = vcmp.lt.s32.totalorder %v3981, 120
      %vm4306 = vcmp.lt.s32.totalorder %v3982, 120
      %vm4307 = vcmp.lt.s32.totalorder %v3983, 120
      %vm4308 = vcmp.lt.s32.totalorder %v3984, 120
      %vm4309 = vcmp.lt.s32.totalorder %v3985, 120
      %vm4310 = vcmp.lt.s32.totalorder %v3986, 120
      %vm4311 = vcmp.lt.s32.totalorder %v3987, 120
      %vm4312 = vcmp.lt.s32.totalorder %v3988, 120
      %vm4313 = vmand %vm4277, %vm4295
      %vm4314 = vmand %vm4278, %vm4296
      %vm4315 = vmand %vm4279, %vm4297
      %vm4316 = vmand %vm4280, %vm4298
      %vm4317 = vmand %vm4281, %vm4299
      %vm4318 = vmand %vm4282, %vm4300
      %vm4319 = vmand %vm4283, %vm4301
      %vm4320 = vmand %vm4284, %vm4302
      %vm4321 = vmand %vm4285, %vm4303
      %vm4322 = vmand %vm4286, %vm4304
      %vm4323 = vmand %vm4287, %vm4305
      %vm4324 = vmand %vm4288, %vm4306
      %vm4325 = vmand %vm4289, %vm4307
      %vm4326 = vmand %vm4290, %vm4308
      %vm4327 = vmand %vm4291, %vm4309
      %vm4328 = vmand %vm4292, %vm4310
      %vm4329 = vmand %vm4293, %vm4311
      %vm4330 = vmand %vm4294, %vm4312
      %v4331 = vsel %vm4313, 1.0, 0.0
      %v4332 = vsel %vm4314, 1.0, 0.0
      %v4333 = vsel %vm4315, 1.0, 0.0
      %v4334 = vsel %vm4316, 1.0, 0.0
      %v4335 = vsel %vm4317, 1.0, 0.0
      %v4336 = vsel %vm4318, 1.0, 0.0
      %v4337 = vsel %vm4319, 1.0, 0.0
      %v4338 = vsel %vm4320, 1.0, 0.0
      %v4339 = vsel %vm4321, 1.0, 0.0
      %v4340 = vsel %vm4322, 1.0, 0.0
      %v4341 = vsel %vm4323, 1.0, 0.0
      %v4342 = vsel %vm4324, 1.0, 0.0
      %v4343 = vsel %vm4325, 1.0, 0.0
      %v4344 = vsel %vm4326, 1.0, 0.0
      %v4345 = vsel %vm4327, 1.0, 0.0
      %v4346 = vsel %vm4328, 1.0, 0.0
      %v4347 = vsel %vm4329, 1.0, 0.0
      %v4348 = vsel %vm4330, 1.0, 0.0
      %v4349 = vmax.f32 %v3900, 0.0
      %v4350 = vmax.f32 %v3903, 0.0
      %v4351 = vmax.f32 %v3908, 0.0
      %v4352 = vmax.f32 %v3911, 0.0
      %v4353 = vmax.f32 %v3916, 0.0
      %v4354 = vmax.f32 %v3919, 0.0
      %v4355 = vmax.f32 %v3924, 0.0
      %v4356 = vmax.f32 %v3927, 0.0
      %v4357 = vmax.f32 %v3932, 0.0
      %v4358 = vmax.f32 %v3935, 0.0
      %v4359 = vmax.f32 %v3940, 0.0
      %v4360 = vmax.f32 %v3943, 0.0
      %v4361 = vmax.f32 %v3948, 0.0
      %v4362 = vmax.f32 %v3951, 0.0
      %v4363 = vmax.f32 %v3956, 0.0
      %v4364 = vmax.f32 %v3959, 0.0
      %v4365 = vmax.f32 %v3964, 0.0
      %v4366 = vmax.f32 %v3967, 0.0
      %v4367 = vmul.f32 %v4349, %v4331
      %v4368 = vmul.f32 %v4350, %v4332
      %v4369 = vmul.f32 %v4351, %v4333
      %v4370 = vmul.f32 %v4352, %v4334
      %v4371 = vmul.f32 %v4353, %v4335
      %v4372 = vmul.f32 %v4354, %v4336
      %v4373 = vmul.f32 %v4355, %v4337
      %v4374 = vmul.f32 %v4356, %v4338
      %v4375 = vmul.f32 %v4357, %v4339
      %v4376 = vmul.f32 %v4358, %v4340
      %v4377 = vmul.f32 %v4359, %v4341
      %v4378 = vmul.f32 %v4360, %v4342
      %v4379 = vmul.f32 %v4361, %v4343
      %v4380 = vmul.f32 %v4362, %v4344
      %v4381 = vmul.f32 %v4363, %v4345
      %v4382 = vmul.f32 %v4364, %v4346
      %v4383 = vmul.f32 %v4365, %v4347
      %v4384 = vmul.f32 %v4366, %v4348
      %4385 = vst.msk [vmem:[#allocation3 + $0xd] sm:$0xff] %vm2962, %v4367
      %4386 = vst.msk [vmem:[#allocation3 + $0x15] sm:$0xff] %vm2962, %v4368
      %4387 = vst.msk [vmem:[#allocation3 + $0x1d] sm:$0xff] %vm2962, %v4369
      %4388 = vst.msk [vmem:[#allocation3 + $0x25] sm:$0xff] %vm2962, %v4370
      %4389 = vst.msk [vmem:[#allocation3 + $0x2d] sm:$0xff] %vm2962, %v4371
      %4390 = vst.msk [vmem:[#allocation3 + $0x35] sm:$0xff] %vm2962, %v4372
      %4391 = vst.msk [vmem:[#allocation3 + $0x3d] sm:$0xff] %vm2962, %v4373
      %4392 = vst.msk [vmem:[#allocation3 + $0x45] sm:$0xff] %vm2962, %v4374
      %4393 = vst.msk [vmem:[#allocation3 + $0x4d] sm:$0xff] %vm2962, %v4375
      %4394 = vst.msk [vmem:[#allocation3 + $0x55] sm:$0xff] %vm2962, %v4376
      %4395 = vst.msk [vmem:[#allocation3 + $0x5d] sm:$0xff] %vm2962, %v4377
      %4396 = vst.msk [vmem:[#allocation3 + $0x65] sm:$0xff] %vm2962, %v4378
      %4397 = vst.msk [vmem:[#allocation3 + $0x6d] sm:$0xff] %vm2962, %v4379
      %4398 = vst.msk [vmem:[#allocation3 + $0x75] sm:$0xff] %vm2962, %v4380
      %4399 = vst.msk [vmem:[#allocation3 + $0x7d] sm:$0xff] %vm2962, %v4381
      %4400 = vst.msk [vmem:[#allocation3 + $0x85] sm:$0xff] %vm2962, %v4382
      %4401 = vst.msk [vmem:[#allocation3 + $0x8d] sm:$0xff] %vm2962, %v4383
      %4402 = vst.msk [vmem:[#allocation3 + $0x95] sm:$0xff] %vm2962, %v4384
      %v4403 = vld [vmem:[#allocation3] sm:$0xff]
      %v4404 = vld [vmem:[#allocation3 + $0x8] sm:$0xff]
      %v4405 = vld [vmem:[#allocation3 + $0x10] sm:$0xff]
      %v4406 = vld [vmem:[#allocation3 + $0x18] sm:$0xff]
      %v4407 = vld [vmem:[#allocation3 + $0x20] sm:$0xff]
      %v4408 = vld [vmem:[#allocation3 + $0x28] sm:$0xff]
      %v4409 = vld [vmem:[#allocation3 + $0x30] sm:$0xff]
      %v4410 = vld [vmem:[#allocation3 + $0x38] sm:$0xff]
      %v4411 = vld [vmem:[#allocation3 + $0x40] sm:$0xff]
      %v4412 = vld [vmem:[#allocation3 + $0x48] sm:$0xff]
      %v4413 = vld [vmem:[#allocation3 + $0x50] sm:$0xff]
      %v4414 = vld [vmem:[#allocation3 + $0x58] sm:$0xff]
      %v4415 = vld [vmem:[#allocation3 + $0x60] sm:$0xff]
      %v4416 = vld [vmem:[#allocation3 + $0x68] sm:$0xff]
      %v4417 = vld [vmem:[#allocation3 + $0x70] sm:$0xff]
      %v4418 = vld [vmem:[#allocation3 + $0x78] sm:$0xff]
      %v4419 = vld [vmem:[#allocation3 + $0x80] sm:$0xff]
      %v4420 = vld [vmem:[#allocation3 + $0x88] sm:$0xff]
      %v4421 = vld [vmem:[#allocation3 + $0x1] sm:$0xff]
      %v4422 = vld [vmem:[#allocation3 + $0x9] sm:$0xff]
      %v4423 = vld [vmem:[#allocation3 + $0x11] sm:$0xff]
      %v4424 = vld [vmem:[#allocation3 + $0x19] sm:$0xff]
      %v4425 = vld [vmem:[#allocation3 + $0x21] sm:$0xff]
      %v4426 = vld [vmem:[#allocation3 + $0x29] sm:$0xff]
      %v4427 = vld [vmem:[#allocation3 + $0x31] sm:$0xff]
      %v4428 = vld [vmem:[#allocation3 + $0x39] sm:$0xff]
      %v4429 = vld [vmem:[#allocation3 + $0x41] sm:$0xff]
      %v4430 = vld [vmem:[#allocation3 + $0x49] sm:$0xff]
      %v4431 = vld [vmem:[#allocation3 + $0x51] sm:$0xff]
      %v4432 = vld [vmem:[#allocation3 + $0x59] sm:$0xff]
      %v4433 = vld [vmem:[#allocation3 + $0x61] sm:$0xff]
      %v4434 = vld [vmem:[#allocation3 + $0x69] sm:$0xff]
      %v4435 = vld [vmem:[#allocation3 + $0x71] sm:$0xff]
      %v4436 = vld [vmem:[#allocation3 + $0x79] sm:$0xff]
      %v4437 = vld [vmem:[#allocation3 + $0x81] sm:$0xff]
      %v4438 = vld [vmem:[#allocation3 + $0x89] sm:$0xff]
      %v4439 = vld [vmem:[#allocation3 + $0x2] sm:$0xff]
      %v4440 = vld [vmem:[#allocation3 + $0xa] sm:$0xff]
      %v4441 = vld [vmem:[#allocation3 + $0x12] sm:$0xff]
      %v4442 = vld [vmem:[#allocation3 + $0x1a] sm:$0xff]
      %v4443 = vld [vmem:[#allocation3 + $0x22] sm:$0xff]
      %v4444 = vld [vmem:[#allocation3 + $0x2a] sm:$0xff]
      %v4445 = vld [vmem:[#allocation3 + $0x32] sm:$0xff]
      %v4446 = vld [vmem:[#allocation3 + $0x3a] sm:$0xff]
      %v4447 = vld [vmem:[#allocation3 + $0x42] sm:$0xff]
      %v4448 = vld [vmem:[#allocation3 + $0x4a] sm:$0xff]
      %v4449 = vld [vmem:[#allocation3 + $0x52] sm:$0xff]
      %v4450 = vld [vmem:[#allocation3 + $0x5a] sm:$0xff]
      %v4451 = vld [vmem:[#allocation3 + $0x62] sm:$0xff]
      %v4452 = vld [vmem:[#allocation3 + $0x6a] sm:$0xff]
      %v4453 = vld [vmem:[#allocation3 + $0x72] sm:$0xff]
      %v4454 = vld [vmem:[#allocation3 + $0x7a] sm:$0xff]
      %v4455 = vld [vmem:[#allocation3 + $0x82] sm:$0xff]
      %v4456 = vld [vmem:[#allocation3 + $0x8a] sm:$0xff]
      %v4457 = vld [vmem:[#allocation3 + $0xc] sm:$0xff]
      %v4458 = vld [vmem:[#allocation3 + $0x14] sm:$0xff]
      %v4459 = vld [vmem:[#allocation3 + $0x1c] sm:$0xff]
      %v4460 = vld [vmem:[#allocation3 + $0x24] sm:$0xff]
      %v4461 = vld [vmem:[#allocation3 + $0x2c] sm:$0xff]
      %v4462 = vld [vmem:[#allocation3 + $0x34] sm:$0xff]
      %v4463 = vld [vmem:[#allocation3 + $0x3c] sm:$0xff]
      %v4464 = vld [vmem:[#allocation3 + $0x44] sm:$0xff]
      %v4465 = vld [vmem:[#allocation3 + $0x4c] sm:$0xff]
      %v4466 = vld [vmem:[#allocation3 + $0x54] sm:$0xff]
      %v4467 = vld [vmem:[#allocation3 + $0x5c] sm:$0xff]
      %v4468 = vld [vmem:[#allocation3 + $0x64] sm:$0xff]
      %v4469 = vld [vmem:[#allocation3 + $0x6c] sm:$0xff]
      %v4470 = vld [vmem:[#allocation3 + $0x74] sm:$0xff]
      %v4471 = vld [vmem:[#allocation3 + $0x7c] sm:$0xff]
      %v4472 = vld [vmem:[#allocation3 + $0x84] sm:$0xff]
      %v4473 = vld [vmem:[#allocation3 + $0x8c] sm:$0xff]
      %v4474 = vld [vmem:[#allocation3 + $0x94] sm:$0xff]
      %v4475 = vld [vmem:[#allocation3 + $0xd] sm:$0xff]
      %v4476 = vld [vmem:[#allocation3 + $0x15] sm:$0xff]
      %v4477 = vld [vmem:[#allocation3 + $0x1d] sm:$0xff]
      %v4478 = vld [vmem:[#allocation3 + $0x25] sm:$0xff]
      %v4479 = vld [vmem:[#allocation3 + $0x2d] sm:$0xff]
      %v4480 = vld [vmem:[#allocation3 + $0x35] sm:$0xff]
      %v4481 = vld [vmem:[#allocation3 + $0x3d] sm:$0xff]
      %v4482 = vld [vmem:[#allocation3 + $0x45] sm:$0xff]
      %v4483 = vld [vmem:[#allocation3 + $0x4d] sm:$0xff]
      %v4484 = vld [vmem:[#allocation3 + $0x55] sm:$0xff]
      %v4485 = vld [vmem:[#allocation3 + $0x5d] sm:$0xff]
      %v4486 = vld [vmem:[#allocation3 + $0x65] sm:$0xff]
      %v4487 = vld [vmem:[#allocation3 + $0x6d] sm:$0xff]
      %v4488 = vld [vmem:[#allocation3 + $0x75] sm:$0xff]
      %v4489 = vld [vmem:[#allocation3 + $0x7d] sm:$0xff]
      %v4490 = vld [vmem:[#allocation3 + $0x85] sm:$0xff]
      %v4491 = vld [vmem:[#allocation3 + $0x8d] sm:$0xff]
      %v4492 = vld [vmem:[#allocation3 + $0x95] sm:$0xff]
      %v4493 = vld [vmem:[#allocation3 + $0xe] sm:$0xff]
      %v4494 = vld [vmem:[#allocation3 + $0x16] sm:$0xff]
      %v4495 = vld [vmem:[#allocation3 + $0x1e] sm:$0xff]
      %v4496 = vld [vmem:[#allocation3 + $0x26] sm:$0xff]
      %v4497 = vld [vmem:[#allocation3 + $0x2e] sm:$0xff]
      %v4498 = vld [vmem:[#allocation3 + $0x36] sm:$0xff]
      %v4499 = vld [vmem:[#allocation3 + $0x3e] sm:$0xff]
      %v4500 = vld [vmem:[#allocation3 + $0x46] sm:$0xff]
      %v4501 = vld [vmem:[#allocation3 + $0x4e] sm:$0xff]
      %v4502 = vld [vmem:[#allocation3 + $0x56] sm:$0xff]
      %v4503 = vld [vmem:[#allocation3 + $0x5e] sm:$0xff]
      %v4504 = vld [vmem:[#allocation3 + $0x66] sm:$0xff]
      %v4505 = vld [vmem:[#allocation3 + $0x6e] sm:$0xff]
      %v4506 = vld [vmem:[#allocation3 + $0x76] sm:$0xff]
      %v4507 = vld [vmem:[#allocation3 + $0x7e] sm:$0xff]
      %v4508 = vld [vmem:[#allocation3 + $0x86] sm:$0xff]
      %v4509 = vld [vmem:[#allocation3 + $0x8e] sm:$0xff]
      %v4510 = vld [vmem:[#allocation3 + $0x96] sm:$0xff]
      %v4511 = vld [vmem:[#allocation3 + $0x90] sm:$0xff]
      %v4512 = vld [vmem:[#allocation3 + $0x98] sm:$0xff]
      %v4513 = vld [vmem:[#allocation3 + $0xa0] sm:$0xff]
      %v4514 = vld [vmem:[#allocation3 + $0x91] sm:$0xff]
      %v4515 = vld [vmem:[#allocation3 + $0x99] sm:$0xff]
      %v4516 = vld [vmem:[#allocation3 + $0xa1] sm:$0xff]
      %v4517 = vld [vmem:[#allocation3 + $0x92] sm:$0xff]
      %v4518 = vld [vmem:[#allocation3 + $0x9a] sm:$0xff]
      %v4519 = vld [vmem:[#allocation3 + $0xa2] sm:$0xff]
      %4538 = vrot.lane.b32.xlu0 %v4421, 32
      %v4539 = vpop.permute.xlu0 %4538
      %4540 = vrot.lane.b32.xlu0 %v4422, 32
      %v4541 = vpop.permute.xlu0 %4540
      %4542 = vrot.lane.b32.xlu0 %v4423, 32
      %v4543 = vpop.permute.xlu0 %4542
      %4544 = vrot.lane.b32.xlu0 %v4424, 32
      %v4545 = vpop.permute.xlu0 %4544
      %4546 = vrot.lane.b32.xlu0 %v4425, 32
      %v4547 = vpop.permute.xlu0 %4546
      %4548 = vrot.lane.b32.xlu0 %v4426, 32
      %v4549 = vpop.permute.xlu0 %4548
      %4550 = vrot.lane.b32.xlu0 %v4427, 32
      %v4551 = vpop.permute.xlu0 %4550
      %4552 = vrot.lane.b32.xlu0 %v4428, 32
      %v4553 = vpop.permute.xlu0 %4552
      %4554 = vrot.lane.b32.xlu0 %v4429, 32
      %v4555 = vpop.permute.xlu0 %4554
      %4556 = vrot.lane.b32.xlu0 %v4430, 32
      %v4557 = vpop.permute.xlu0 %4556
      %4558 = vrot.lane.b32.xlu0 %v4431, 32
      %v4559 = vpop.permute.xlu0 %4558
      %4560 = vrot.lane.b32.xlu0 %v4432, 32
      %v4561 = vpop.permute.xlu0 %4560
      %4562 = vrot.lane.b32.xlu0 %v4433, 32
      %v4563 = vpop.permute.xlu0 %4562
      %4564 = vrot.lane.b32.xlu0 %v4434, 32
      %v4565 = vpop.permute.xlu0 %4564
      %4566 = vrot.lane.b32.xlu0 %v4435, 32
      %v4567 = vpop.permute.xlu0 %4566
      %4568 = vrot.lane.b32.xlu0 %v4436, 32
      %v4569 = vpop.permute.xlu0 %4568
      %4570 = vrot.lane.b32.xlu0 %v4437, 32
      %v4571 = vpop.permute.xlu0 %4570
      %4572 = vrot.lane.b32.xlu0 %v4438, 32
      %v4573 = vpop.permute.xlu0 %4572
      %4610 = vrot.lane.b32.xlu0 %v4439, 64
      %v4611 = vpop.permute.xlu0 %4610
      %4612 = vrot.lane.b32.xlu0 %v4440, 64
      %v4613 = vpop.permute.xlu0 %4612
      %4614 = vrot.lane.b32.xlu0 %v4441, 64
      %v4615 = vpop.permute.xlu0 %4614
      %4616 = vrot.lane.b32.xlu0 %v4442, 64
      %v4617 = vpop.permute.xlu0 %4616
      %4618 = vrot.lane.b32.xlu0 %v4443, 64
      %v4619 = vpop.permute.xlu0 %4618
      %4620 = vrot.lane.b32.xlu0 %v4444, 64
      %v4621 = vpop.permute.xlu0 %4620
      %4622 = vrot.lane.b32.xlu0 %v4445, 64
      %v4623 = vpop.permute.xlu0 %4622
      %4624 = vrot.lane.b32.xlu0 %v4446, 64
      %v4625 = vpop.permute.xlu0 %4624
      %4626 = vrot.lane.b32.xlu0 %v4447, 64
      %v4627 = vpop.permute.xlu0 %4626
      %4628 = vrot.lane.b32.xlu0 %v4448, 64
      %v4629 = vpop.permute.xlu0 %4628
      %4630 = vrot.lane.b32.xlu0 %v4449, 64
      %v4631 = vpop.permute.xlu0 %4630
      %4632 = vrot.lane.b32.xlu0 %v4450, 64
      %v4633 = vpop.permute.xlu0 %4632
      %4634 = vrot.lane.b32.xlu0 %v4451, 64
      %v4635 = vpop.permute.xlu0 %4634
      %4636 = vrot.lane.b32.xlu0 %v4452, 64
      %v4637 = vpop.permute.xlu0 %4636
      %4638 = vrot.lane.b32.xlu0 %v4453, 64
      %v4639 = vpop.permute.xlu0 %4638
      %4640 = vrot.lane.b32.xlu0 %v4454, 64
      %v4641 = vpop.permute.xlu0 %4640
      %4642 = vrot.lane.b32.xlu0 %v4455, 64
      %v4643 = vpop.permute.xlu0 %4642
      %4644 = vrot.lane.b32.xlu0 %v4456, 64
      %v4645 = vpop.permute.xlu0 %4644
      %4682 = vrot.lane.b32.xlu0 %v4457, 96
      %v4683 = vpop.permute.xlu0 %4682
      %4684 = vrot.lane.b32.xlu0 %v4458, 96
      %v4685 = vpop.permute.xlu0 %4684
      %4686 = vrot.lane.b32.xlu0 %v4459, 96
      %v4687 = vpop.permute.xlu0 %4686
      %4688 = vrot.lane.b32.xlu0 %v4460, 96
      %v4689 = vpop.permute.xlu0 %4688
      %4690 = vrot.lane.b32.xlu0 %v4461, 96
      %v4691 = vpop.permute.xlu0 %4690
      %4692 = vrot.lane.b32.xlu0 %v4462, 96
      %v4693 = vpop.permute.xlu0 %4692
      %4694 = vrot.lane.b32.xlu0 %v4463, 96
      %v4695 = vpop.permute.xlu0 %4694
      %4696 = vrot.lane.b32.xlu0 %v4464, 96
      %v4697 = vpop.permute.xlu0 %4696
      %4698 = vrot.lane.b32.xlu0 %v4465, 96
      %v4699 = vpop.permute.xlu0 %4698
      %4700 = vrot.lane.b32.xlu0 %v4466, 96
      %v4701 = vpop.permute.xlu0 %4700
      %4702 = vrot.lane.b32.xlu0 %v4467, 96
      %v4703 = vpop.permute.xlu0 %4702
      %4704 = vrot.lane.b32.xlu0 %v4468, 96
      %v4705 = vpop.permute.xlu0 %4704
      %4706 = vrot.lane.b32.xlu0 %v4469, 96
      %v4707 = vpop.permute.xlu0 %4706
      %4708 = vrot.lane.b32.xlu0 %v4470, 96
      %v4709 = vpop.permute.xlu0 %4708
      %4710 = vrot.lane.b32.xlu0 %v4471, 96
      %v4711 = vpop.permute.xlu0 %4710
      %4712 = vrot.lane.b32.xlu0 %v4472, 96
      %v4713 = vpop.permute.xlu0 %4712
      %4714 = vrot.lane.b32.xlu0 %v4473, 96
      %v4715 = vpop.permute.xlu0 %4714
      %4716 = vrot.lane.b32.xlu0 %v4474, 96
      %v4717 = vpop.permute.xlu0 %4716
      %4754 = vrot.lane.b32.xlu0 %v4493, 32
      %v4755 = vpop.permute.xlu0 %4754
      %4756 = vrot.lane.b32.xlu0 %v4494, 32
      %v4757 = vpop.permute.xlu0 %4756
      %4758 = vrot.lane.b32.xlu0 %v4495, 32
      %v4759 = vpop.permute.xlu0 %4758
      %4760 = vrot.lane.b32.xlu0 %v4496, 32
      %v4761 = vpop.permute.xlu0 %4760
      %4762 = vrot.lane.b32.xlu0 %v4497, 32
      %v4763 = vpop.permute.xlu0 %4762
      %4764 = vrot.lane.b32.xlu0 %v4498, 32
      %v4765 = vpop.permute.xlu0 %4764
      %4766 = vrot.lane.b32.xlu0 %v4499, 32
      %v4767 = vpop.permute.xlu0 %4766
      %4768 = vrot.lane.b32.xlu0 %v4500, 32
      %v4769 = vpop.permute.xlu0 %4768
      %4770 = vrot.lane.b32.xlu0 %v4501, 32
      %v4771 = vpop.permute.xlu0 %4770
      %4772 = vrot.lane.b32.xlu0 %v4502, 32
      %v4773 = vpop.permute.xlu0 %4772
      %4774 = vrot.lane.b32.xlu0 %v4503, 32
      %v4775 = vpop.permute.xlu0 %4774
      %4776 = vrot.lane.b32.xlu0 %v4504, 32
      %v4777 = vpop.permute.xlu0 %4776
      %4778 = vrot.lane.b32.xlu0 %v4505, 32
      %v4779 = vpop.permute.xlu0 %4778
      %4780 = vrot.lane.b32.xlu0 %v4506, 32
      %v4781 = vpop.permute.xlu0 %4780
      %4782 = vrot.lane.b32.xlu0 %v4507, 32
      %v4783 = vpop.permute.xlu0 %4782
      %4784 = vrot.lane.b32.xlu0 %v4508, 32
      %v4785 = vpop.permute.xlu0 %4784
      %4786 = vrot.lane.b32.xlu0 %v4509, 32
      %v4787 = vpop.permute.xlu0 %4786
      %4788 = vrot.lane.b32.xlu0 %v4510, 32
      %v4789 = vpop.permute.xlu0 %4788
      %4826 = vrot.lane.b32.xlu0 %v4406, 64
      %v4827 = vpop.permute.xlu0 %4826
      %4828 = vrot.lane.b32.xlu0 %v4407, 64
      %v4829 = vpop.permute.xlu0 %4828
      %4830 = vrot.lane.b32.xlu0 %v4408, 64
      %v4831 = vpop.permute.xlu0 %4830
      %4832 = vrot.lane.b32.xlu0 %v4409, 64
      %v4833 = vpop.permute.xlu0 %4832
      %4834 = vrot.lane.b32.xlu0 %v4410, 64
      %v4835 = vpop.permute.xlu0 %4834
      %4836 = vrot.lane.b32.xlu0 %v4411, 64
      %v4837 = vpop.permute.xlu0 %4836
      %4838 = vrot.lane.b32.xlu0 %v4412, 64
      %v4839 = vpop.permute.xlu0 %4838
      %4840 = vrot.lane.b32.xlu0 %v4413, 64
      %v4841 = vpop.permute.xlu0 %4840
      %4842 = vrot.lane.b32.xlu0 %v4414, 64
      %v4843 = vpop.permute.xlu0 %4842
      %4844 = vrot.lane.b32.xlu0 %v4415, 64
      %v4845 = vpop.permute.xlu0 %4844
      %4846 = vrot.lane.b32.xlu0 %v4416, 64
      %v4847 = vpop.permute.xlu0 %4846
      %4848 = vrot.lane.b32.xlu0 %v4417, 64
      %v4849 = vpop.permute.xlu0 %4848
      %4850 = vrot.lane.b32.xlu0 %v4418, 64
      %v4851 = vpop.permute.xlu0 %4850
      %4852 = vrot.lane.b32.xlu0 %v4419, 64
      %v4853 = vpop.permute.xlu0 %4852
      %4854 = vrot.lane.b32.xlu0 %v4420, 64
      %v4855 = vpop.permute.xlu0 %4854
      %4856 = vrot.lane.b32.xlu0 %v4511, 64
      %v4857 = vpop.permute.xlu0 %4856
      %4858 = vrot.lane.b32.xlu0 %v4512, 64
      %v4859 = vpop.permute.xlu0 %4858
      %4860 = vrot.lane.b32.xlu0 %v4513, 64
      %v4861 = vpop.permute.xlu0 %4860
      %4883 = vrot.lane.b32.xlu0 %v4424, 96
      %v4884 = vpop.permute.xlu0 %4883
      %4885 = vrot.lane.b32.xlu0 %v4425, 96
      %v4886 = vpop.permute.xlu0 %4885
      %4887 = vrot.lane.b32.xlu0 %v4426, 96
      %v4888 = vpop.permute.xlu0 %4887
      %4889 = vrot.lane.b32.xlu0 %v4427, 96
      %v4890 = vpop.permute.xlu0 %4889
      %4891 = vrot.lane.b32.xlu0 %v4428, 96
      %v4892 = vpop.permute.xlu0 %4891
      %4893 = vrot.lane.b32.xlu0 %v4429, 96
      %v4894 = vpop.permute.xlu0 %4893
      %4895 = vrot.lane.b32.xlu0 %v4430, 96
      %v4896 = vpop.permute.xlu0 %4895
      %4897 = vrot.lane.b32.xlu0 %v4431, 96
      %v4898 = vpop.permute.xlu0 %4897
      %4899 = vrot.lane.b32.xlu0 %v4432, 96
      %v4900 = vpop.permute.xlu0 %4899
      %4901 = vrot.lane.b32.xlu0 %v4433, 96
      %v4902 = vpop.permute.xlu0 %4901
      %4903 = vrot.lane.b32.xlu0 %v4434, 96
      %v4904 = vpop.permute.xlu0 %4903
      %4905 = vrot.lane.b32.xlu0 %v4435, 96
      %v4906 = vpop.permute.xlu0 %4905
      %4907 = vrot.lane.b32.xlu0 %v4436, 96
      %v4908 = vpop.permute.xlu0 %4907
      %4909 = vrot.lane.b32.xlu0 %v4437, 96
      %v4910 = vpop.permute.xlu0 %4909
      %4911 = vrot.lane.b32.xlu0 %v4438, 96
      %v4912 = vpop.permute.xlu0 %4911
      %4913 = vrot.lane.b32.xlu0 %v4514, 96
      %v4914 = vpop.permute.xlu0 %4913
      %4915 = vrot.lane.b32.xlu0 %v4515, 96
      %v4916 = vpop.permute.xlu0 %4915
      %4917 = vrot.lane.b32.xlu0 %v4516, 96
      %v4918 = vpop.permute.xlu0 %4917
      %v4937 = vsel %vm2962, %v4403, %v4539
      %v4938 = vsel %vm2962, %v4404, %v4541
      %v4939 = vsel %vm2962, %v4405, %v4543
      %v4940 = vsel %vm2962, %v4406, %v4545
      %v4941 = vsel %vm2962, %v4407, %v4547
      %v4942 = vsel %vm2962, %v4408, %v4549
      %v4943 = vsel %vm2962, %v4409, %v4551
      %v4944 = vsel %vm2962, %v4410, %v4553
      %v4945 = vsel %vm2962, %v4411, %v4555
      %v4946 = vsel %vm2962, %v4412, %v4557
      %v4947 = vsel %vm2962, %v4413, %v4559
      %v4948 = vsel %vm2962, %v4414, %v4561
      %v4949 = vsel %vm2962, %v4415, %v4563
      %v4950 = vsel %vm2962, %v4416, %v4565
      %v4951 = vsel %vm2962, %v4417, %v4567
      %v4952 = vsel %vm2962, %v4418, %v4569
      %v4953 = vsel %vm2962, %v4419, %v4571
      %v4954 = vsel %vm2962, %v4420, %v4573
      %v4955 = vsel %vm3672, %v4937, %v4611
      %v4956 = vsel %vm3672, %v4938, %v4613
      %v4957 = vsel %vm3672, %v4939, %v4615
      %v4958 = vsel %vm3672, %v4940, %v4617
      %v4959 = vsel %vm3672, %v4941, %v4619
      %v4960 = vsel %vm3672, %v4942, %v4621
      %v4961 = vsel %vm3672, %v4943, %v4623
      %v4962 = vsel %vm3672, %v4944, %v4625
      %v4963 = vsel %vm3672, %v4945, %v4627
      %v4964 = vsel %vm3672, %v4946, %v4629
      %v4965 = vsel %vm3672, %v4947, %v4631
      %v4966 = vsel %vm3672, %v4948, %v4633
      %v4967 = vsel %vm3672, %v4949, %v4635
      %v4968 = vsel %vm3672, %v4950, %v4637
      %v4969 = vsel %vm3672, %v4951, %v4639
      %v4970 = vsel %vm3672, %v4952, %v4641
      %v4971 = vsel %vm3672, %v4953, %v4643
      %v4972 = vsel %vm3672, %v4954, %v4645
      %v4973 = vsel %vm3710, %v4955, %v4683
      %v4974 = vsel %vm3710, %v4956, %v4685
      %v4975 = vsel %vm3710, %v4957, %v4687
      %v4976 = vsel %vm3710, %v4958, %v4689
      %v4977 = vsel %vm3710, %v4959, %v4691
      %v4978 = vsel %vm3710, %v4960, %v4693
      %v4979 = vsel %vm3710, %v4961, %v4695
      %v4980 = vsel %vm3710, %v4962, %v4697
      %v4981 = vsel %vm3710, %v4963, %v4699
      %v4982 = vsel %vm3710, %v4964, %v4701
      %v4983 = vsel %vm3710, %v4965, %v4703
      %v4984 = vsel %vm3710, %v4966, %v4705
      %v4985 = vsel %vm3710, %v4967, %v4707
      %v4986 = vsel %vm3710, %v4968, %v4709
      %v4987 = vsel %vm3710, %v4969, %v4711
      %v4988 = vsel %vm3710, %v4970, %v4713
      %v4989 = vsel %vm3710, %v4971, %v4715
      %v4990 = vsel %vm3710, %v4972, %v4717
      %v4991 = vsel %vm2962, %v4475, %v4755
      %v4992 = vsel %vm2962, %v4476, %v4757
      %v4993 = vsel %vm2962, %v4477, %v4759
      %v4994 = vsel %vm2962, %v4478, %v4761
      %v4995 = vsel %vm2962, %v4479, %v4763
      %v4996 = vsel %vm2962, %v4480, %v4765
      %v4997 = vsel %vm2962, %v4481, %v4767
      %v4998 = vsel %vm2962, %v4482, %v4769
      %v4999 = vsel %vm2962, %v4483, %v4771
      %v5000 = vsel %vm2962, %v4484, %v4773
      %v5001 = vsel %vm2962, %v4485, %v4775
      %v5002 = vsel %vm2962, %v4486, %v4777
      %v5003 = vsel %vm2962, %v4487, %v4779
      %v5004 = vsel %vm2962, %v4488, %v4781
      %v5005 = vsel %vm2962, %v4489, %v4783
      %v5006 = vsel %vm2962, %v4490, %v4785
      %v5007 = vsel %vm2962, %v4491, %v4787
      %v5008 = vsel %vm2962, %v4492, %v4789
      %v5009 = vsel %vm3672, %v4991, %v4827
      %v5010 = vsel %vm3672, %v4992, %v4829
      %v5011 = vsel %vm3672, %v4993, %v4831
      %v5012 = vsel %vm3672, %v4994, %v4833
      %v5013 = vsel %vm3672, %v4995, %v4835
      %v5014 = vsel %vm3672, %v4996, %v4837
      %v5015 = vsel %vm3672, %v4997, %v4839
      %v5016 = vsel %vm3672, %v4998, %v4841
      %v5017 = vsel %vm3672, %v4999, %v4843
      %v5018 = vsel %vm3672, %v5000, %v4845
      %v5019 = vsel %vm3672, %v5001, %v4847
      %v5020 = vsel %vm3672, %v5002, %v4849
      %v5021 = vsel %vm3672, %v5003, %v4851
      %v5022 = vsel %vm3672, %v5004, %v4853
      %v5023 = vsel %vm3672, %v5005, %v4855
      %v5024 = vsel %vm3672, %v5006, %v4857
      %v5025 = vsel %vm3672, %v5007, %v4859
      %v5026 = vsel %vm3672, %v5008, %v4861
      %v5027 = vsel %vm3710, %v5009, %v4884
      %v5028 = vsel %vm3710, %v5010, %v4886
      %v5029 = vsel %vm3710, %v5011, %v4888
      %v5030 = vsel %vm3710, %v5012, %v4890
      %v5031 = vsel %vm3710, %v5013, %v4892
      %v5032 = vsel %vm3710, %v5014, %v4894
      %v5033 = vsel %vm3710, %v5015, %v4896
      %v5034 = vsel %vm3710, %v5016, %v4898
      %v5035 = vsel %vm3710, %v5017, %v4900
      %v5036 = vsel %vm3710, %v5018, %v4902
      %v5037 = vsel %vm3710, %v5019, %v4904
      %v5038 = vsel %vm3710, %v5020, %v4906
      %v5039 = vsel %vm3710, %v5021, %v4908
      %v5040 = vsel %vm3710, %v5022, %v4910
      %v5041 = vsel %vm3710, %v5023, %v4912
      %v5042 = vsel %vm3710, %v5024, %v4914
      %v5043 = vsel %vm3710, %v5025, %v4916
      %v5044 = vsel %vm3710, %v5026, %v4918
      %v5045 = vpack.c.bf16 %v4974, %v4973
      %v5046 = vpack.c.bf16 %v5028, %v5027
      %v5047 = vpack.c.bf16 %v4443, %v4442
      %v5048 = vpack.c.bf16 %v4976, %v4975
      %v5049 = vpack.c.bf16 %v5030, %v5029
      %v5050 = vpack.c.bf16 %v4445, %v4444
      %v5051 = vpack.c.bf16 %v4978, %v4977
      %v5052 = vpack.c.bf16 %v5032, %v5031
      %v5053 = vpack.c.bf16 %v4447, %v4446
      %v5054 = vpack.c.bf16 %v4980, %v4979
      %v5055 = vpack.c.bf16 %v5034, %v5033
      %v5056 = vpack.c.bf16 %v4449, %v4448
      %v5057 = vpack.c.bf16 %v4982, %v4981
      %v5058 = vpack.c.bf16 %v5036, %v5035
      %v5059 = vpack.c.bf16 %v4451, %v4450
      %v5060 = vpack.c.bf16 %v4984, %v4983
      %v5061 = vpack.c.bf16 %v5038, %v5037
      %v5062 = vpack.c.bf16 %v4453, %v4452
      %v5063 = vpack.c.bf16 %v4986, %v4985
      %v5064 = vpack.c.bf16 %v5040, %v5039
      %v5065 = vpack.c.bf16 %v4455, %v4454
      %v5066 = vpack.c.bf16 %v4988, %v4987
      %v5067 = vpack.c.bf16 %v5042, %v5041
      %v5068 = vpack.c.bf16 %v4517, %v4456
      %v5069 = vpack.c.bf16 %v4990, %v4989
      %v5070 = vpack.c.bf16 %v5044, %v5043
      %v5071 = vpack.c.bf16 %v4519, %v4518
      %v5072 = vld [vmem:[%s3] sm:$0xf]
      %v5073 = vld [vmem:[%s3 + $0x4] sm:$0xf]
      %v5074 = vld [vmem:[%s3 + $0x8] sm:$0xf]
      %v5075 = vld [vmem:[%s3 + $0xc] sm:$0xf]
      %v5076 = vld [vmem:[%s3 + $0x10] sm:$0xf]
      %v5077 = vld [vmem:[%s3 + $0x14] sm:$0xf]
      %v5078 = vld [vmem:[%s3 + $0x18] sm:$0xf]
      %v5079 = vld [vmem:[%s3 + $0x1c] sm:$0xf]
      %v5080 = vld [vmem:[%s3 + $0x20] sm:$0xf]
      %v5081 = vld [vmem:[%s3 + $0x24] sm:$0xf]
      %v5082 = vld [vmem:[%s3 + $0x28] sm:$0xf]
      %v5083 = vld [vmem:[%s3 + $0x2c] sm:$0xf]
      %v5084 = vld [vmem:[%s3 + $0x30] sm:$0xf]
      %v5085 = vld [vmem:[%s3 + $0x34] sm:$0xf]
      %v5086 = vld [vmem:[%s3 + $0x38] sm:$0xf]
      %v5087 = vld [vmem:[%s3 + $0x3c] sm:$0xf]
      %v5088 = vld [vmem:[%s3 + $0x40] sm:$0xf]
      %v5089 = vld [vmem:[%s3 + $0x44] sm:$0xf]
      %v5090 = vld [vmem:[%s3 + $0x48] sm:$0xf]
      %v5091 = vld [vmem:[%s3 + $0x4c] sm:$0xf]
      %v5092 = vld [vmem:[%s3 + $0x50] sm:$0xf]
      %v5093 = vld [vmem:[%s3 + $0x54] sm:$0xf]
      %v5094 = vld [vmem:[%s3 + $0x58] sm:$0xf]
      %v5095 = vld [vmem:[%s3 + $0x5c] sm:$0xf]
      %v5096 = vld [vmem:[%s3 + $0x60] sm:$0xf]
      %v5097 = vld [vmem:[%s3 + $0x64] sm:$0xf]
      %v5098 = vld [vmem:[%s3 + $0x68] sm:$0xf]
      %v5099 = vld [vmem:[%s3 + $0x6c] sm:$0xf]
      %v5100 = vld [vmem:[%s3 + $0x70] sm:$0xf]
      %v5101 = vld [vmem:[%s3 + $0x74] sm:$0xf]
      %v5102 = vld [vmem:[%s3 + $0x78] sm:$0xf]
      %v5103 = vld [vmem:[%s3 + $0x7c] sm:$0xf]
      %v5104 = vld [vmem:[%s3 + $0x80] sm:$0xf]
      %v5105 = vld [vmem:[%s3 + $0x84] sm:$0xf]
      %v5106 = vld [vmem:[%s3 + $0x88] sm:$0xf]
      %v5107 = vld [vmem:[%s3 + $0x8c] sm:$0xf]
      %v5144 = vunpack.c.l.b16 %v5072
      %v5145 = vunpack.c.l.b16 %v5073
      %v5146 = vunpack.c.l.b16 %v5074
      %v5147 = vunpack.c.l.b16 %v5075
      %v5148 = vunpack.c.l.b16 %v5076
      %v5149 = vunpack.c.l.b16 %v5077
      %v5150 = vunpack.c.l.b16 %v5078
      %v5151 = vunpack.c.l.b16 %v5079
      %v5152 = vunpack.c.l.b16 %v5080
      %v5153 = vunpack.c.l.b16 %v5081
      %v5154 = vunpack.c.l.b16 %v5082
      %v5155 = vunpack.c.l.b16 %v5083
      %v5156 = vunpack.c.l.b16 %v5084
      %v5157 = vunpack.c.l.b16 %v5085
      %v5158 = vunpack.c.l.b16 %v5086
      %v5159 = vunpack.c.l.b16 %v5087
      %v5160 = vunpack.c.l.b16 %v5088
      %v5161 = vunpack.c.l.b16 %v5089
      %v5162 = vunpack.c.l.b16 %v5090
      %v5163 = vunpack.c.l.b16 %v5091
      %v5164 = vunpack.c.l.b16 %v5092
      %v5165 = vunpack.c.l.b16 %v5093
      %v5166 = vunpack.c.l.b16 %v5094
      %v5167 = vunpack.c.l.b16 %v5095
      %v5168 = vunpack.c.l.b16 %v5096
      %v5169 = vunpack.c.l.b16 %v5097
      %v5170 = vunpack.c.l.b16 %v5098
      %v5171 = vunpack.c.l.b16 %v5099
      %v5172 = vunpack.c.l.b16 %v5100
      %v5173 = vunpack.c.l.b16 %v5101
      %v5174 = vunpack.c.l.b16 %v5102
      %v5175 = vunpack.c.l.b16 %v5103
      %v5176 = vunpack.c.l.b16 %v5104
      %v5177 = vunpack.c.l.b16 %v5105
      %v5178 = vunpack.c.l.b16 %v5106
      %v5179 = vunpack.c.l.b16 %v5107
      %v5180 = vpack.c.b16 %v5145, %v5144
      %v5181 = vpack.c.b16 %v5147, %v5146
      %v5182 = vpack.c.b16 %v5149, %v5148
      %v5183 = vpack.c.b16 %v5151, %v5150
      %v5184 = vpack.c.b16 %v5153, %v5152
      %v5185 = vpack.c.b16 %v5155, %v5154
      %v5186 = vpack.c.b16 %v5157, %v5156
      %v5187 = vpack.c.b16 %v5159, %v5158
      %v5188 = vpack.c.b16 %v5161, %v5160
      %v5189 = vpack.c.b16 %v5163, %v5162
      %v5190 = vpack.c.b16 %v5165, %v5164
      %v5191 = vpack.c.b16 %v5167, %v5166
      %v5192 = vpack.c.b16 %v5169, %v5168
      %v5193 = vpack.c.b16 %v5171, %v5170
      %v5194 = vpack.c.b16 %v5173, %v5172
      %v5195 = vpack.c.b16 %v5175, %v5174
      %v5196 = vpack.c.b16 %v5177, %v5176
      %v5197 = vpack.c.b16 %v5179, %v5178
      %v5217 = vsel %vm2962, %v5047, 0
      %v5220 = vsel %vm2962, %v5050, 0
      %v5223 = vsel %vm2962, %v5053, 0
      %v5226 = vsel %vm2962, %v5056, 0
      %v5229 = vsel %vm2962, %v5059, 0
      %v5232 = vsel %vm2962, %v5062, 0
      %v5235 = vsel %vm2962, %v5065, 0
      %v5238 = vsel %vm2962, %v5068, 0
      %v5241 = vsel %vm2962, %v5071, 0
      %5243 = vmatprep.subr.bf16.mxu0 0
      %5244 = vmatpush1.bf16.msra.mxu0 %v5180
      %5245 = vmatprep.subr.bf16.mxu0 0
      %5246 = vmatpush1.bf16.msra.mxu0 %v5181
      %5247 = vmatprep.subr.bf16.mxu0 0
      %5248 = vmatpush1.bf16.msra.mxu0 %v5182
      %5249 = vmatprep.subr.bf16.mxu0 0
      %5250 = vmatpush1.bf16.msra.mxu0 %v5183
      %5251 = vmatprep.subr.bf16.mxu0 0
      %5252 = vmatpush1.bf16.msra.mxu0 %v5184
      %5253 = vmatprep.subr.bf16.mxu0 0
      %5254 = vmatpush1.bf16.msra.mxu0 %v5185
      %5255 = vmatprep.subr.bf16.mxu0 0
      %5256 = vmatpush1.bf16.msra.mxu0 %v5186
      %5257 = vmatprep.subr.bf16.mxu0 0
      %5258 = vmatpush1.bf16.msra.mxu0 %v5187
      %5259 = vmatprep.subr.bf16.mxu0 0
      %5260 = vmatpush1.bf16.msra.mxu0 %v5188
      %5261 = vmatprep.subr.bf16.mxu0 0
      %5262 = vmatpush1.bf16.msra.mxu0 %v5189
      %5263 = vmatprep.subr.bf16.mxu0 0
      %5264 = vmatpush1.bf16.msra.mxu0 %v5190
      %5265 = vmatprep.subr.bf16.mxu0 0
      %5266 = vmatpush1.bf16.msra.mxu0 %v5191
      %5267 = vmatprep.subr.bf16.mxu0 0
      %5268 = vmatpush1.bf16.msra.mxu0 %v5192
      %5269 = vmatprep.subr.bf16.mxu0 0
      %5270 = vmatpush1.bf16.msra.mxu0 %v5193
      %5271 = vmatprep.subr.bf16.mxu0 0
      %5272 = vmatpush1.bf16.msra.mxu0 %v5194
      %5273 = vmatprep.subr.bf16.mxu0 0
      %5274 = vmatpush1.bf16.msra.mxu0 %v5195
      %5275 = vmatprep.mubr.bf16.mxu0 %v5046
      %5276 = vmatmul.mubr.bf16.gmra.mrb[0].mxu0 %v5045
      %v5277 = vpop.f32.mrb[0].mxu0
      %v5278 = vadd.f32 0.0, %v5277
      %v5279 = vpop.f32.mrb[0].mxu0
      %v5280 = vpop.f32.mrb[0].mxu0
      %v5281 = vadd.f32 0.0, %v5280
      %v5282 = vpop.f32.mrb[0].mxu0
      %5283 = vmatprep.mubr.bf16.mxu0 %v5049
      %5284 = vmatmul.mubr.bf16.gmra.mrb[0].mxu0 %v5048
      %v5285 = vpop.f32.mrb[0].mxu0
      %v5286 = vadd.f32 0.0, %v5285
      %v5287 = vpop.f32.mrb[0].mxu0
      %v5288 = vpop.f32.mrb[0].mxu0
      %v5289 = vadd.f32 0.0, %v5288
      %v5290 = vpop.f32.mrb[0].mxu0
      %5291 = vmatprep.mubr.bf16.mxu0 %v5052
      %5292 = vmatmul.mubr.bf16.gmra.mrb[0].mxu0 %v5051
      %v5293 = vpop.f32.mrb[0].mxu0
      %v5294 = vadd.f32 0.0, %v5293
      %v5295 = vpop.f32.mrb[0].mxu0
      %v5296 = vpop.f32.mrb[0].mxu0
      %v5297 = vadd.f32 0.0, %v5296
      %v5298 = vpop.f32.mrb[0].mxu0
      %5299 = vmatprep.mubr.bf16.mxu0 %v5055
      %5300 = vmatmul.mubr.bf16.gmra.mrb[0].mxu0 %v5054
      %v5301 = vpop.f32.mrb[0].mxu0
      %v5302 = vadd.f32 0.0, %v5301
      %v5303 = vpop.f32.mrb[0].mxu0
      %v5304 = vpop.f32.mrb[0].mxu0
      %v5305 = vadd.f32 0.0, %v5304
      %v5306 = vpop.f32.mrb[0].mxu0
      %5307 = vmatprep.mubr.bf16.mxu0 %v5058
      %5308 = vmatmul.mubr.bf16.gmra.mrb[0].mxu0 %v5057
      %v5309 = vpop.f32.mrb[0].mxu0
      %v5310 = vadd.f32 0.0, %v5309
      %v5311 = vpop.f32.mrb[0].mxu0
      %v5312 = vpop.f32.mrb[0].mxu0
      %v5313 = vadd.f32 0.0, %v5312
      %v5314 = vpop.f32.mrb[0].mxu0
      %5315 = vmatprep.mubr.bf16.mxu0 %v5061
      %5316 = vmatmul.mubr.bf16.gmra.mrb[0].mxu0 %v5060
      %v5317 = vpop.f32.mrb[0].mxu0
      %v5318 = vadd.f32 0.0, %v5317
      %v5319 = vpop.f32.mrb[0].mxu0
      %v5320 = vpop.f32.mrb[0].mxu0
      %v5321 = vadd.f32 0.0, %v5320
      %v5322 = vpop.f32.mrb[0].mxu0
      %5323 = vmatprep.mubr.bf16.mxu0 %v5064
      %5324 = vmatmul.mubr.bf16.gmra.mrb[0].mxu0 %v5063
      %v5325 = vpop.f32.mrb[0].mxu0
      %v5326 = vadd.f32 0.0, %v5325
      %v5327 = vpop.f32.mrb[0].mxu0
      %v5328 = vpop.f32.mrb[0].mxu0
      %v5329 = vadd.f32 0.0, %v5328
      %v5330 = vpop.f32.mrb[0].mxu0
      %5331 = vmatprep.mubr.bf16.mxu0 %v5067
      %5332 = vmatmul.mubr.bf16.gmra.mrb[0].mxu0 %v5066
      %v5333 = vpop.f32.mrb[0].mxu0
      %v5334 = vadd.f32 0.0, %v5333
      %v5335 = vpop.f32.mrb[0].mxu0
      %v5336 = vpop.f32.mrb[0].mxu0
      %v5337 = vpop.f32.mrb[0].mxu0
      %5338 = vmatprep.mubr.bf16.mxu0 %v5070
      %5339 = vmatmul.mubr.bf16.gmra.mrb[0].mxu0 %v5069
      %v5340 = vpop.f32.mrb[0].mxu0
      %v5341 = vpop.f32.mrb[0].mxu0
      %v5342 = vpop.f32.mrb[0].mxu0
      %v5343 = vpop.f32.mrb[0].mxu0
      %5344 = vdwg.mxu0
      %5345 = vmatprep.subr.bf16.mxu0 0
      %5346 = vmatpush1.bf16.msra.mxu0 %v5196
      %5347 = vmatprep.subr.bf16.mxu0 0
      %5348 = vmatpush1.bf16.msra.mxu0 %v5197
      %5349 = vmatprep.subr.bf16.mxu0 0
      %5350 = vmatpush1.bf16.msra.mxu0 0
      %5351 = vmatprep.subr.bf16.mxu0 0
      %5352 = vmatpush1.bf16.msra.mxu0 0
      %5353 = vmatprep.subr.bf16.mxu0 0
      %5354 = vmatpush1.bf16.msra.mxu0 0
      %5355 = vmatprep.subr.bf16.mxu0 0
      %5356 = vmatpush1.bf16.msra.mxu0 0
      %5357 = vmatprep.subr.bf16.mxu0 0
      %5358 = vmatpush1.bf16.msra.mxu0 0
      %5359 = vmatprep.subr.bf16.mxu0 0
      %5360 = vmatpush1.bf16.msra.mxu0 0
      %5361 = vmatprep.subr.bf16.mxu0 0
      %5362 = vmatpush1.bf16.msra.mxu0 0
      %5363 = vmatprep.subr.bf16.mxu0 0
      %5364 = vmatpush1.bf16.msra.mxu0 0
      %5365 = vmatprep.subr.bf16.mxu0 0
      %5366 = vmatpush1.bf16.msra.mxu0 0
      %5367 = vmatprep.subr.bf16.mxu0 0
      %5368 = vmatpush1.bf16.msra.mxu0 0
      %5369 = vmatprep.subr.bf16.mxu0 0
      %5370 = vmatpush1.bf16.msra.mxu0 0
      %5371 = vmatprep.subr.bf16.mxu0 0
      %5372 = vmatpush1.bf16.msra.mxu0 0
      %5373 = vmatprep.subr.bf16.mxu0 0
      %5374 = vmatpush1.bf16.msra.mxu0 0
      %5375 = vmatprep.subr.bf16.mxu0 0
      %5376 = vmatpush1.bf16.msra.mxu0 0
      %5377 = vmatprep.mubr.bf16.mxu0 0
      %5378 = vmatmul.mubr.bf16.gmra.mrb[0].mxu0 %v5217
      %v5379 = vpop.f32.mrb[0].mxu0
      %v5380 = vadd.f32 %v5278, %v5379
      %v5381 = vpop.f32.mrb[0].mxu0
      %v5382 = vpop.f32.mrb[0].mxu0
      %v5383 = vadd.f32 %v5281, %v5382
      %v5384 = vpop.f32.mrb[0].mxu0
      %5385 = vmatprep.mubr.bf16.mxu0 0
      %5386 = vmatmul.mubr.bf16.gmra.mrb[0].mxu0 %v5220
      %v5387 = vpop.f32.mrb[0].mxu0
      %v5388 = vadd.f32 %v5286, %v5387
      %v5389 = vpop.f32.mrb[0].mxu0
      %v5390 = vpop.f32.mrb[0].mxu0
      %v5391 = vadd.f32 %v5289, %v5390
      %v5392 = vpop.f32.mrb[0].mxu0
      %5393 = vmatprep.mubr.bf16.mxu0 0
      %5394 = vmatmul.mubr.bf16.gmra.mrb[0].mxu0 %v5223
      %v5395 = vpop.f32.mrb[0].mxu0
      %v5396 = vadd.f32 %v5294, %v5395
      %v5397 = vpop.f32.mrb[0].mxu0
      %v5398 = vpop.f32.mrb[0].mxu0
      %v5399 = vadd.f32 %v5297, %v5398
      %v5400 = vpop.f32.mrb[0].mxu0
      %5401 = vmatprep.mubr.bf16.mxu0 0
      %5402 = vmatmul.mubr.bf16.gmra.mrb[0].mxu0 %v5226
      %v5403 = vpop.f32.mrb[0].mxu0
      %v5404 = vadd.f32 %v5302, %v5403
      %v5405 = vpop.f32.mrb[0].mxu0
      %v5406 = vpop.f32.mrb[0].mxu0
      %v5407 = vadd.f32 %v5305, %v5406
      %v5408 = vpop.f32.mrb[0].mxu0
      %5409 = vmatprep.mubr.bf16.mxu0 0
      %5410 = vmatmul.mubr.bf16.gmra.mrb[0].mxu0 %v5229
      %v5411 = vpop.f32.mrb[0].mxu0
      %v5412 = vadd.f32 %v5310, %v5411
      %v5413 = vpop.f32.mrb[0].mxu0
      %v5414 = vpop.f32.mrb[0].mxu0
      %v5415 = vadd.f32 %v5313, %v5414
      %v5416 = vpop.f32.mrb[0].mxu0
      %5417 = vmatprep.mubr.bf16.mxu0 0
      %5418 = vmatmul.mubr.bf16.gmra.mrb[0].mxu0 %v5232
      %v5419 = vpop.f32.mrb[0].mxu0
      %v5420 = vadd.f32 %v5318, %v5419
      %v5421 = vpop.f32.mrb[0].mxu0
      %v5422 = vpop.f32.mrb[0].mxu0
      %v5423 = vadd.f32 %v5321, %v5422
      %v5424 = vpop.f32.mrb[0].mxu0
      %5425 = vmatprep.mubr.bf16.mxu0 0
      %5426 = vmatmul.mubr.bf16.gmra.mrb[0].mxu0 %v5235
      %v5427 = vpop.f32.mrb[0].mxu0
      %v5428 = vadd.f32 %v5326, %v5427
      %v5429 = vpop.f32.mrb[0].mxu0
      %v5430 = vpop.f32.mrb[0].mxu0
      %v5431 = vadd.f32 %v5329, %v5430
      %v5432 = vpop.f32.mrb[0].mxu0
      %5433 = vmatprep.mubr.bf16.mxu0 0
      %5434 = vmatmul.mubr.bf16.gmra.mrb[0].mxu0 %v5238
      %v5435 = vpop.f32.mrb[0].mxu0
      %v5436 = vadd.f32 %v5334, %v5435
      %v5437 = vpop.f32.mrb[0].mxu0
      %v5438 = vpop.f32.mrb[0].mxu0
      %v5439 = vpop.f32.mrb[0].mxu0
      %5440 = vmatprep.mubr.bf16.mxu0 0
      %5441 = vmatmul.mubr.bf16.gmra.mrb[0].mxu0 %v5241
      %v5442 = vpop.f32.mrb[0].mxu0
      %v5443 = vpop.f32.mrb[0].mxu0
      %v5444 = vpop.f32.mrb[0].mxu0
      %v5445 = vpop.f32.mrb[0].mxu0
      %5446 = vdwg.mxu0
      %vm5449 = vcmask 1043456
      %v5450 = vrot.slane %v5383, 4
      %v5451 = vrot.slane %v5388, 4
      %v5452 = vsel %vm5449, %v5450, %v5451
      %v5455 = vmax.f32 %v5380, %v5452
      %v5456 = vmax.f32 %v5383, %v5451
      %v5458 = vrot.slane %v5455, 1
      %v5460 = vmax.f32 %v5455, %v5458
      %v5462 = vrot.slane %v5456, 1
      %v5464 = vmax.f32 %v5456, %v5462
      %v5467 = vrot.slane %v5396, 4
      %v5468 = vrot.slane %v5399, 4
      %v5469 = vsel %vm5449, %v5467, %v5468
      %v5472 = vmax.f32 %v5391, %v5469
      %v5473 = vmax.f32 %v5396, %v5468
      %v5475 = vrot.slane %v5472, 1
      %v5477 = vmax.f32 %v5472, %v5475
      %v5479 = vrot.slane %v5473, 1
      %v5481 = vmax.f32 %v5473, %v5479
      %v5484 = vrot.slane %v5407, 4
      %v5485 = vrot.slane %v5412, 4
      %v5486 = vsel %vm5449, %v5484, %v5485
      %v5489 = vmax.f32 %v5404, %v5486
      %v5490 = vmax.f32 %v5407, %v5485
      %v5492 = vrot.slane %v5489, 1
      %v5494 = vmax.f32 %v5489, %v5492
      %v5496 = vrot.slane %v5490, 1
      %v5498 = vmax.f32 %v5490, %v5496
      %v5501 = vrot.slane %v5420, 4
      %v5502 = vrot.slane %v5423, 4
      %v5503 = vsel %vm5449, %v5501, %v5502
      %v5506 = vmax.f32 %v5415, %v5503
      %v5507 = vmax.f32 %v5420, %v5502
      %v5509 = vrot.slane %v5506, 1
      %v5511 = vmax.f32 %v5506, %v5509
      %v5513 = vrot.slane %v5507, 1
      %v5515 = vmax.f32 %v5507, %v5513
      %v5518 = vrot.slane %v5431, 4
      %v5519 = vrot.slane %v5436, 4
      %v5520 = vsel %vm5449, %v5518, %v5519
      %v5523 = vmax.f32 %v5428, %v5520
      %v5524 = vmax.f32 %v5431, %v5519
      %v5526 = vrot.slane %v5523, 1
      %v5528 = vmax.f32 %v5523, %v5526
      %v5530 = vrot.slane %v5524, 1
      %v5532 = vmax.f32 %v5524, %v5530
      %v5534 = vrot.slane %v5460, 2
      %5535 = vrot.lane.b32.xlu0 %v5534, 32
      %v5536 = vpop.permute.xlu0 %5535
      %v5538 = vrot.slane %v5460, 4
      %5539 = vrot.lane.b32.xlu0 %v5538, 64
      %v5540 = vpop.permute.xlu0 %5539
      %v5542 = vrot.slane %v5460, 6
      %5543 = vrot.lane.b32.xlu0 %v5542, 96
      %v5544 = vpop.permute.xlu0 %5543
      %5547 = vrot.lane.b32.xlu0 %v5477, 32
      %v5548 = vpop.permute.xlu0 %5547
      %v5550 = vrot.slane %v5477, 2
      %5551 = vrot.lane.b32.xlu0 %v5550, 64
      %v5552 = vpop.permute.xlu0 %5551
      %v5554 = vrot.slane %v5477, 4
      %5555 = vrot.lane.b32.xlu0 %v5554, 96
      %v5556 = vpop.permute.xlu0 %5555
      %v5558 = vrot.slane %v5477, 6
      %5561 = vrot.lane.b32.xlu0 %v5481, 32
      %v5562 = vpop.permute.xlu0 %5561
      %5565 = vrot.lane.b32.xlu0 %v5494, 64
      %v5566 = vpop.permute.xlu0 %5565
      %v5568 = vrot.slane %v5494, 2
      %5569 = vrot.lane.b32.xlu0 %v5568, 96
      %v5570 = vpop.permute.xlu0 %5569
      %v5572 = vrot.slane %v5494, 4
      %v5574 = vrot.slane %v5494, 6
      %5575 = vrot.lane.b32.xlu0 %v5574, 32
      %v5576 = vpop.permute.xlu0 %5575
      %5579 = vrot.lane.b32.xlu0 %v5498, 64
      %v5580 = vpop.permute.xlu0 %5579
      %5583 = vrot.lane.b32.xlu0 %v5511, 96
      %v5584 = vpop.permute.xlu0 %5583
      %v5586 = vsel %vm2962, %v5460, %v5536
      %v5587 = vsel %vm3672, %v5586, %v5540
      %v5588 = vsel %vm3710, %v5587, %v5544
      %v5589 = vsel %vm2962, %v5464, %v5548
      %v5590 = vsel %vm3672, %v5589, %v5552
      %v5591 = vsel %vm3710, %v5590, %v5556
      %v5592 = vsel %vm2962, %v5558, %v5562
      %v5593 = vsel %vm3672, %v5592, %v5566
      %v5594 = vsel %vm3710, %v5593, %v5570
      %v5595 = vsel %vm2962, %v5572, %v5576
      %v5596 = vsel %vm3672, %v5595, %v5580
      %v5597 = vsel %vm3710, %v5596, %v5584
      %v5598 = vrot.slane %v5511, 2
      %5599 = vrot.lane.b32.xlu0 %v5598, 32
      %v5600 = vpop.permute.xlu0 %5599
      %v5602 = vrot.slane %v5511, 4
      %5603 = vrot.lane.b32.xlu0 %v5602, 64
      %v5604 = vpop.permute.xlu0 %5603
      %v5607 = vrot.slane %v5515, 6
      %5608 = vrot.lane.b32.xlu0 %v5607, 96
      %v5609 = vpop.permute.xlu0 %5608
      %v5612 = vrot.slane %v5528, 6
      %5614 = vrot.lane.b32.xlu0 %v5528, 32
      %v5615 = vpop.permute.xlu0 %5614
      %v5617 = vrot.slane %v5528, 2
      %5618 = vrot.lane.b32.xlu0 %v5617, 64
      %v5619 = vpop.permute.xlu0 %5618
      %v5621 = vrot.slane %v5528, 4
      %5622 = vrot.lane.b32.xlu0 %v5621, 96
      %v5623 = vpop.permute.xlu0 %5622
      %v5626 = vrot.slane %v5532, 6
      %v5627 = vsel %vm2962, %v5511, %v5600
      %v5628 = vsel %vm3672, %v5627, %v5604
      %v5629 = vsel %vm3710, %v5628, %v5609
      %v5630 = vsel %vm2962, %v5612, %v5615
      %v5631 = vsel %vm3672, %v5630, %v5619
      %v5632 = vsel %vm3710, %v5631, %v5623
      %v5635 = vrot.slane %v5629, 2
      %v5636 = vrot.slane %v5632, 2
      %v5637 = vrot.slane %v5626, 2
      %v5641 = vmax.f32 %v5588, 0.0
      %v5642 = vmax.f32 %v5591, 0.0
      %v5643 = vmax.f32 %v5594, 0.0
      %v5644 = vmax.f32 %v5597, 0.0
      %v5645 = vmax.f32 %v5635, 0.0
      %v5646 = vmax.f32 %v5636, 0.0
      %v5647 = vmax.f32 %v5637, 0.0
      %v5648 = vpack.c.bf16 %v5641, %v5641
      %v5649 = vpack.c.bf16 %v5642, %v5642
      %v5650 = vpack.c.bf16 %v5643, %v5643
      %v5651 = vpack.c.bf16 %v5644, %v5644
      %v5652 = vpack.c.bf16 %v5645, %v5645
      %v5653 = vpack.c.bf16 %v5646, %v5646
      %v5654 = vpack.c.bf16 %v5647, %v5647
      %v5655 = vld [vmem:[%s4] sm:$0xf]
      %v5656 = vld [vmem:[%s4 + $0x4] sm:$0xf]
      %v5657 = vld [vmem:[%s4 + $0x8] sm:$0xf]
      %v5658 = vld [vmem:[%s4 + $0xc] sm:$0xf]
      %v5659 = vld [vmem:[%s4 + $0x10] sm:$0xf]
      %v5660 = vld [vmem:[%s4 + $0x14] sm:$0xf]
      %v5661 = vld [vmem:[%s4 + $0x18] sm:$0xf]
      %v5662 = vld [vmem:[%s4 + $0x1c] sm:$0xf]
      %v5663 = vld [vmem:[%s4 + $0x20] sm:$0xf]
      %v5664 = vld [vmem:[%s4 + $0x24] sm:$0xf]
      %v5665 = vld [vmem:[%s4 + $0x28] sm:$0xf]
      %v5666 = vld [vmem:[%s4 + $0x2c] sm:$0xf]
      %v5667 = vld [vmem:[%s4 + $0x30] sm:$0xf]
      %v5668 = vld [vmem:[%s4 + $0x34] sm:$0xf]
      %v5669 = vld [vmem:[%s4 + $0x38] sm:$0xf]
      %v5670 = vld [vmem:[%s4 + $0x3c] sm:$0xf]
      %v5671 = vld [vmem:[%s4 + $0x40] sm:$0xf]
      %v5672 = vld [vmem:[%s4 + $0x44] sm:$0xf]
      %v5673 = vld [vmem:[%s4 + $0x48] sm:$0xf]
      %v5674 = vld [vmem:[%s4 + $0x4c] sm:$0xf]
      %v5675 = vld [vmem:[%s4 + $0x50] sm:$0xf]
      %v5676 = vld [vmem:[%s4 + $0x54] sm:$0xf]
      %v5677 = vld [vmem:[%s4 + $0x58] sm:$0xf]
      %v5678 = vld [vmem:[%s4 + $0x5c] sm:$0xf]
      %v5679 = vld [vmem:[%s4 + $0x60] sm:$0xf]
      %v5680 = vld [vmem:[%s4 + $0x64] sm:$0xf]
      %v5681 = vld [vmem:[%s4 + $0x68] sm:$0xf]
      %v5682 = vld [vmem:[%s4 + $0x6c] sm:$0xf]
      %v5683 = vld [vmem:[%s4 + $0x70] sm:$0xf]
      %v5684 = vld [vmem:[%s4 + $0x74] sm:$0xf]
      %v5685 = vld [vmem:[%s4 + $0x78] sm:$0xf]
      %v5686 = vld [vmem:[%s4 + $0x7c] sm:$0xf]
      %v5687 = vld [vmem:[%s4 + $0x80] sm:$0xf]
      %v5688 = vld [vmem:[%s4 + $0x84] sm:$0xf]
      %v5689 = vld [vmem:[%s4 + $0x88] sm:$0xf]
      %v5690 = vld [vmem:[%s4 + $0x8c] sm:$0xf]
      %v5691 = vld [vmem:[%s4 + $0x90] sm:$0xf]
      %v5692 = vld [vmem:[%s4 + $0x94] sm:$0xf]
      %v5693 = vld [vmem:[%s4 + $0x98] sm:$0xf]
      %v5694 = vld [vmem:[%s4 + $0x9c] sm:$0xf]
      %v5695 = vld [vmem:[%s4 + $0xa0] sm:$0xf]
      %v5696 = vld [vmem:[%s4 + $0xa4] sm:$0xf]
      %v5697 = vld [vmem:[%s4 + $0xa8] sm:$0xf]
      %v5698 = vld [vmem:[%s4 + $0xac] sm:$0xf]
      %v5699 = vld [vmem:[%s4 + $0xb0] sm:$0xf]
      %v5700 = vld [vmem:[%s4 + $0xb4] sm:$0xf]
      %v5701 = vld [vmem:[%s4 + $0xb8] sm:$0xf]
      %v5702 = vld [vmem:[%s4 + $0xbc] sm:$0xf]
      %v5703 = vld [vmem:[%s4 + $0xc0] sm:$0xf]
      %v5704 = vld [vmem:[%s4 + $0xc4] sm:$0xf]
      %v5705 = vld [vmem:[%s4 + $0xc8] sm:$0xf]
      %v5706 = vld [vmem:[%s4 + $0xcc] sm:$0xf]
      %v5707 = vld [vmem:[%s4 + $0xd0] sm:$0xf]
      %v5708 = vld [vmem:[%s4 + $0xd4] sm:$0xf]
      %v5709 = vld [vmem:[%s4 + $0xd8] sm:$0xf]
      %v5710 = vld [vmem:[%s4 + $0xdc] sm:$0xf]
      %v5711 = vld [vmem:[%s4 + $0xe0] sm:$0xf]
      %v5712 = vld [vmem:[%s4 + $0xe4] sm:$0xf]
      %v5713 = vld [vmem:[%s4 + $0xe8] sm:$0xf]
      %v5714 = vld [vmem:[%s4 + $0xec] sm:$0xf]
      %v5715 = vld [vmem:[%s4 + $0xf0] sm:$0xf]
      %v5716 = vld [vmem:[%s4 + $0xf4] sm:$0xf]
      %v5717 = vld [vmem:[%s4 + $0xf8] sm:$0xf]
      %v5718 = vld [vmem:[%s4 + $0xfc] sm:$0xf]
      %v5719 = vld [vmem:[%s4 + $0x100] sm:$0xf]
      %v5720 = vld [vmem:[%s4 + $0x104] sm:$0xf]
      %v5721 = vld [vmem:[%s4 + $0x108] sm:$0xf]
      %v5722 = vld [vmem:[%s4 + $0x10c] sm:$0xf]
      %v5723 = vld [vmem:[%s4 + $0x110] sm:$0xf]
      %v5724 = vld [vmem:[%s4 + $0x114] sm:$0xf]
      %v5725 = vld [vmem:[%s4 + $0x118] sm:$0xf]
      %v5726 = vld [vmem:[%s4 + $0x11c] sm:$0xf]
      %v5727 = vld [vmem:[%s4 + $0x120] sm:$0xf]
      %v5728 = vld [vmem:[%s4 + $0x124] sm:$0xf]
      %v5729 = vld [vmem:[%s4 + $0x128] sm:$0xf]
      %v5730 = vld [vmem:[%s4 + $0x12c] sm:$0xf]
      %v5731 = vld [vmem:[%s4 + $0x130] sm:$0xf]
      %v5732 = vld [vmem:[%s4 + $0x134] sm:$0xf]
      %v5733 = vld [vmem:[%s4 + $0x138] sm:$0xf]
      %v5734 = vld [vmem:[%s4 + $0x13c] sm:$0xf]
      %v5735 = vld [vmem:[%s4 + $0x140] sm:$0xf]
      %v5736 = vld [vmem:[%s4 + $0x144] sm:$0xf]
      %v5737 = vld [vmem:[%s4 + $0x148] sm:$0xf]
      %v5738 = vld [vmem:[%s4 + $0x14c] sm:$0xf]
      %v5739 = vld [vmem:[%s4 + $0x150] sm:$0xf]
      %v5740 = vld [vmem:[%s4 + $0x154] sm:$0xf]
      %v5741 = vld [vmem:[%s4 + $0x158] sm:$0xf]
      %v5742 = vld [vmem:[%s4 + $0x15c] sm:$0xf]
      %v5743 = vld [vmem:[%s4 + $0x160] sm:$0xf]
      %v5744 = vld [vmem:[%s4 + $0x164] sm:$0xf]
      %v5745 = vld [vmem:[%s4 + $0x168] sm:$0xf]
      %v5746 = vld [vmem:[%s4 + $0x16c] sm:$0xf]
      %v5747 = vld [vmem:[%s4 + $0x170] sm:$0xf]
      %v5748 = vld [vmem:[%s4 + $0x174] sm:$0xf]
      %v5749 = vld [vmem:[%s4 + $0x178] sm:$0xf]
      %v5750 = vld [vmem:[%s4 + $0x17c] sm:$0xf]
      %v5751 = vld [vmem:[%s4 + $0x180] sm:$0xf]
      %v5752 = vld [vmem:[%s4 + $0x184] sm:$0xf]
      %v5753 = vld [vmem:[%s4 + $0x188] sm:$0xf]
      %v5754 = vld [vmem:[%s4 + $0x18c] sm:$0xf]
      %v5755 = vld [vmem:[%s5] sm:$0x1]
      %v5856 = vunpack.c.l.b16 %v5655
      %v5857 = vunpack.c.l.b16 %v5656
      %v5858 = vunpack.c.l.b16 %v5657
      %v5859 = vunpack.c.l.b16 %v5658
      %v5860 = vunpack.c.l.b16 %v5659
      %v5861 = vunpack.c.l.b16 %v5660
      %v5862 = vunpack.c.l.b16 %v5661
      %v5863 = vunpack.c.l.b16 %v5662
      %v5864 = vunpack.c.l.b16 %v5663
      %v5865 = vunpack.c.l.b16 %v5664
      %v5866 = vunpack.c.l.b16 %v5665
      %v5867 = vunpack.c.l.b16 %v5666
      %v5868 = vunpack.c.l.b16 %v5667
      %v5869 = vunpack.c.l.b16 %v5668
      %v5870 = vunpack.c.l.b16 %v5669
      %v5871 = vunpack.c.l.b16 %v5670
      %v5872 = vunpack.c.l.b16 %v5671
      %v5873 = vunpack.c.l.b16 %v5672
      %v5874 = vunpack.c.l.b16 %v5673
      %v5875 = vunpack.c.l.b16 %v5674
      %v5876 = vunpack.c.l.b16 %v5675
      %v5877 = vunpack.c.l.b16 %v5676
      %v5878 = vunpack.c.l.b16 %v5677
      %v5879 = vunpack.c.l.b16 %v5678
      %v5880 = vunpack.c.l.b16 %v5679
      %v5881 = vunpack.c.l.b16 %v5680
      %v5882 = vunpack.c.l.b16 %v5681
      %v5883 = vunpack.c.l.b16 %v5682
      %v5884 = vunpack.c.l.b16 %v5683
      %v5885 = vunpack.c.l.b16 %v5684
      %v5886 = vunpack.c.l.b16 %v5685
      %v5887 = vunpack.c.l.b16 %v5686
      %v5888 = vunpack.c.l.b16 %v5687
      %v5889 = vunpack.c.l.b16 %v5688
      %v5890 = vunpack.c.l.b16 %v5689
      %v5891 = vunpack.c.l.b16 %v5690
      %v5892 = vunpack.c.l.b16 %v5691
      %v5893 = vunpack.c.l.b16 %v5692
      %v5894 = vunpack.c.l.b16 %v5693
      %v5895 = vunpack.c.l.b16 %v5694
      %v5896 = vunpack.c.l.b16 %v5695
      %v5897 = vunpack.c.l.b16 %v5696
      %v5898 = vunpack.c.l.b16 %v5697
      %v5899 = vunpack.c.l.b16 %v5698
      %v5900 = vunpack.c.l.b16 %v5699
      %v5901 = vunpack.c.l.b16 %v5700
      %v5902 = vunpack.c.l.b16 %v5701
      %v5903 = vunpack.c.l.b16 %v5702
      %v5904 = vunpack.c.l.b16 %v5703
      %v5905 = vunpack.c.l.b16 %v5704
      %v5906 = vunpack.c.l.b16 %v5705
      %v5907 = vunpack.c.l.b16 %v5706
      %v5908 = vunpack.c.l.b16 %v5707
      %v5909 = vunpack.c.l.b16 %v5708
      %v5910 = vunpack.c.l.b16 %v5709
      %v5911 = vunpack.c.l.b16 %v5710
      %v5912 = vunpack.c.l.b16 %v5711
      %v5913 = vunpack.c.l.b16 %v5712
      %v5914 = vunpack.c.l.b16 %v5713
      %v5915 = vunpack.c.l.b16 %v5714
      %v5916 = vunpack.c.l.b16 %v5715
      %v5917 = vunpack.c.l.b16 %v5716
      %v5918 = vunpack.c.l.b16 %v5717
      %v5919 = vunpack.c.l.b16 %v5718
      %v5920 = vunpack.c.l.b16 %v5719
      %v5921 = vunpack.c.l.b16 %v5720
      %v5922 = vunpack.c.l.b16 %v5721
      %v5923 = vunpack.c.l.b16 %v5722
      %v5924 = vunpack.c.l.b16 %v5723
      %v5925 = vunpack.c.l.b16 %v5724
      %v5926 = vunpack.c.l.b16 %v5725
      %v5927 = vunpack.c.l.b16 %v5726
      %v5928 = vunpack.c.l.b16 %v5727
      %v5929 = vunpack.c.l.b16 %v5728
      %v5930 = vunpack.c.l.b16 %v5729
      %v5931 = vunpack.c.l.b16 %v5730
      %v5932 = vunpack.c.l.b16 %v5731
      %v5933 = vunpack.c.l.b16 %v5732
      %v5934 = vunpack.c.l.b16 %v5733
      %v5935 = vunpack.c.l.b16 %v5734
      %v5936 = vunpack.c.l.b16 %v5735
      %v5937 = vunpack.c.l.b16 %v5736
      %v5938 = vunpack.c.l.b16 %v5737
      %v5939 = vunpack.c.l.b16 %v5738
      %v5940 = vunpack.c.l.b16 %v5739
      %v5941 = vunpack.c.l.b16 %v5740
      %v5942 = vunpack.c.l.b16 %v5741
      %v5943 = vunpack.c.l.b16 %v5742
      %v5944 = vunpack.c.l.b16 %v5743
      %v5945 = vunpack.c.l.b16 %v5744
      %v5946 = vunpack.c.l.b16 %v5745
      %v5947 = vunpack.c.l.b16 %v5746
      %v5948 = vunpack.c.l.b16 %v5747
      %v5949 = vunpack.c.l.b16 %v5748
      %v5950 = vunpack.c.l.b16 %v5749
      %v5951 = vunpack.c.l.b16 %v5750
      %v5952 = vunpack.c.l.b16 %v5751
      %v5953 = vunpack.c.l.b16 %v5752
      %v5954 = vunpack.c.l.b16 %v5753
      %v5955 = vunpack.c.l.b16 %v5754
      %v5956 = vpack.c.b16 %v5857, %v5856
      %v5957 = vpack.c.b16 %v5859, %v5858
      %v5958 = vpack.c.b16 %v5861, %v5860
      %v5959 = vpack.c.b16 %v5863, %v5862
      %v5960 = vpack.c.b16 %v5865, %v5864
      %v5961 = vpack.c.b16 %v5867, %v5866
      %v5962 = vpack.c.b16 %v5869, %v5868
      %v5963 = vpack.c.b16 %v5871, %v5870
      %v5964 = vpack.c.b16 %v5873, %v5872
      %v5965 = vpack.c.b16 %v5875, %v5874
      %v5966 = vpack.c.b16 %v5877, %v5876
      %v5967 = vpack.c.b16 %v5879, %v5878
      %v5968 = vpack.c.b16 %v5881, %v5880
      %v5969 = vpack.c.b16 %v5883, %v5882
      %v5970 = vpack.c.b16 %v5885, %v5884
      %v5971 = vpack.c.b16 %v5887, %v5886
      %v5972 = vpack.c.b16 %v5889, %v5888
      %v5973 = vpack.c.b16 %v5891, %v5890
      %v5974 = vpack.c.b16 %v5893, %v5892
      %v5975 = vpack.c.b16 %v5895, %v5894
      %v5976 = vpack.c.b16 %v5897, %v5896
      %v5977 = vpack.c.b16 %v5899, %v5898
      %v5978 = vpack.c.b16 %v5901, %v5900
      %v5979 = vpack.c.b16 %v5903, %v5902
      %v5980 = vpack.c.b16 %v5905, %v5904
      %v5981 = vpack.c.b16 %v5907, %v5906
      %v5982 = vpack.c.b16 %v5909, %v5908
      %v5983 = vpack.c.b16 %v5911, %v5910
      %v5984 = vpack.c.b16 %v5913, %v5912
      %v5985 = vpack.c.b16 %v5915, %v5914
      %v5986 = vpack.c.b16 %v5917, %v5916
      %v5987 = vpack.c.b16 %v5919, %v5918
      %v5988 = vpack.c.b16 %v5921, %v5920
      %v5989 = vpack.c.b16 %v5923, %v5922
      %v5990 = vpack.c.b16 %v5925, %v5924
      %v5991 = vpack.c.b16 %v5927, %v5926
      %v5992 = vpack.c.b16 %v5929, %v5928
      %v5993 = vpack.c.b16 %v5931, %v5930
      %v5994 = vpack.c.b16 %v5933, %v5932
      %v5995 = vpack.c.b16 %v5935, %v5934
      %v5996 = vpack.c.b16 %v5937, %v5936
      %v5997 = vpack.c.b16 %v5939, %v5938
      %v5998 = vpack.c.b16 %v5941, %v5940
      %v5999 = vpack.c.b16 %v5943, %v5942
      %v6000 = vpack.c.b16 %v5945, %v5944
      %v6001 = vpack.c.b16 %v5947, %v5946
      %v6002 = vpack.c.b16 %v5949, %v5948
      %v6003 = vpack.c.b16 %v5951, %v5950
      %v6004 = vpack.c.b16 %v5953, %v5952
      %v6005 = vpack.c.b16 %v5955, %v5954
      %v6057 = vsel %vm2962, %v5654, 0
      %6059 = vmatprep.subr.bf16.mxu0 0
      %6060 = vmatpush1.bf16.msra.mxu0 %v5956
      %6061 = vmatprep.subr.bf16.mxu0 0
      %6062 = vmatpush1.bf16.msra.mxu0 %v5957
      %6063 = vmatprep.subr.bf16.mxu0 0
      %6064 = vmatpush1.bf16.msra.mxu0 %v5958
      %6065 = vmatprep.subr.bf16.mxu0 0
      %6066 = vmatpush1.bf16.msra.mxu0 %v5959
      %6067 = vmatprep.subr.bf16.mxu0 0
      %6068 = vmatpush1.bf16.msra.mxu0 %v5960
      %6069 = vmatprep.subr.bf16.mxu0 0
      %6070 = vmatpush1.bf16.msra.mxu0 %v5961
      %6071 = vmatprep.subr.bf16.mxu0 0
      %6072 = vmatpush1.bf16.msra.mxu0 %v5962
      %6073 = vmatprep.subr.bf16.mxu0 0
      %6074 = vmatpush1.bf16.msra.mxu0 %v5963
      %6075 = vmatprep.subr.bf16.mxu0 0
      %6076 = vmatpush1.bf16.msra.mxu0 %v5964
      %6077 = vmatprep.subr.bf16.mxu0 0
      %6078 = vmatpush1.bf16.msra.mxu0 %v5965
      %6079 = vmatprep.subr.bf16.mxu0 0
      %6080 = vmatpush1.bf16.msra.mxu0 %v5966
      %6081 = vmatprep.subr.bf16.mxu0 0
      %6082 = vmatpush1.bf16.msra.mxu0 %v5967
      %6083 = vmatprep.subr.bf16.mxu0 0
      %6084 = vmatpush1.bf16.msra.mxu0 %v5968
      %6085 = vmatprep.subr.bf16.mxu0 0
      %6086 = vmatpush1.bf16.msra.mxu0 %v5969
      %6087 = vmatprep.subr.bf16.mxu0 0
      %6088 = vmatpush1.bf16.msra.mxu0 %v5970
      %6089 = vmatprep.subr.bf16.mxu0 0
      %6090 = vmatpush1.bf16.msra.mxu0 %v5971
      %6091 = vmatprep.mubr.bf16.mxu0 %v5649
      %6092 = vmatmul.mubr.bf16.gmra.mrb[0].mxu0 %v5648
      %v6093 = vpop.f32.mrb[0].mxu0
      %v6094 = vadd.f32 %v5755, %v6093
      %v6095 = vpop.f32.mrb[0].mxu0
      %v6096 = vpop.f32.mrb[0].mxu0
      %v6097 = vpop.f32.mrb[0].mxu0
      %6098 = vdwg.mxu0
      %6099 = vmatprep.subr.bf16.mxu0 0
      %6100 = vmatpush1.bf16.msra.mxu0 %v5972
      %6101 = vmatprep.subr.bf16.mxu0 0
      %6102 = vmatpush1.bf16.msra.mxu0 %v5973
      %6103 = vmatprep.subr.bf16.mxu0 0
      %6104 = vmatpush1.bf16.msra.mxu0 %v5974
      %6105 = vmatprep.subr.bf16.mxu0 0
      %6106 = vmatpush1.bf16.msra.mxu0 %v5975
      %6107 = vmatprep.subr.bf16.mxu0 0
      %6108 = vmatpush1.bf16.msra.mxu0 %v5976
      %6109 = vmatprep.subr.bf16.mxu0 0
      %6110 = vmatpush1.bf16.msra.mxu0 %v5977
      %6111 = vmatprep.subr.bf16.mxu0 0
      %6112 = vmatpush1.bf16.msra.mxu0 %v5978
      %6113 = vmatprep.subr.bf16.mxu0 0
      %6114 = vmatpush1.bf16.msra.mxu0 %v5979
      %6115 = vmatprep.subr.bf16.mxu0 0
      %6116 = vmatpush1.bf16.msra.mxu0 %v5980
      %6117 = vmatprep.subr.bf16.mxu0 0
      %6118 = vmatpush1.bf16.msra.mxu0 %v5981
      %6119 = vmatprep.subr.bf16.mxu0 0
      %6120 = vmatpush1.bf16.msra.mxu0 %v5982
      %6121 = vmatprep.subr.bf16.mxu0 0
      %6122 = vmatpush1.bf16.msra.mxu0 %v5983
      %6123 = vmatprep.subr.bf16.mxu0 0
      %6124 = vmatpush1.bf16.msra.mxu0 %v5984
      %6125 = vmatprep.subr.bf16.mxu0 0
      %6126 = vmatpush1.bf16.msra.mxu0 %v5985
      %6127 = vmatprep.subr.bf16.mxu0 0
      %6128 = vmatpush1.bf16.msra.mxu0 %v5986
      %6129 = vmatprep.subr.bf16.mxu0 0
      %6130 = vmatpush1.bf16.msra.mxu0 %v5987
      %6131 = vmatprep.mubr.bf16.mxu0 %v5651
      %6132 = vmatmul.mubr.bf16.gmra.mrb[0].mxu0 %v5650
      %v6133 = vpop.f32.mrb[0].mxu0
      %v6134 = vadd.f32 %v6094, %v6133
      %v6135 = vpop.f32.mrb[0].mxu0
      %v6136 = vpop.f32.mrb[0].mxu0
      %v6137 = vpop.f32.mrb[0].mxu0
      %6138 = vdwg.mxu0
      %6139 = vmatprep.subr.bf16.mxu0 0
      %6140 = vmatpush1.bf16.msra.mxu0 %v5988
      %6141 = vmatprep.subr.bf16.mxu0 0
      %6142 = vmatpush1.bf16.msra.mxu0 %v5989
      %6143 = vmatprep.subr.bf16.mxu0 0
      %6144 = vmatpush1.bf16.msra.mxu0 %v5990
      %6145 = vmatprep.subr.bf16.mxu0 0
      %6146 = vmatpush1.bf16.msra.mxu0 %v5991
      %6147 = vmatprep.subr.bf16.mxu0 0
      %6148 = vmatpush1.bf16.msra.mxu0 %v5992
      %6149 = vmatprep.subr.bf16.mxu0 0
      %6150 = vmatpush1.bf16.msra.mxu0 %v5993
      %6151 = vmatprep.subr.bf16.mxu0 0
      %6152 = vmatpush1.bf16.msra.mxu0 %v5994
      %6153 = vmatprep.subr.bf16.mxu0 0
      %6154 = vmatpush1.bf16.msra.mxu0 %v5995
      %6155 = vmatprep.subr.bf16.mxu0 0
      %6156 = vmatpush1.bf16.msra.mxu0 %v5996
      %6157 = vmatprep.subr.bf16.mxu0 0
      %6158 = vmatpush1.bf16.msra.mxu0 %v5997
      %6159 = vmatprep.subr.bf16.mxu0 0
      %6160 = vmatpush1.bf16.msra.mxu0 %v5998
      %6161 = vmatprep.subr.bf16.mxu0 0
      %6162 = vmatpush1.bf16.msra.mxu0 %v5999
      %6163 = vmatprep.subr.bf16.mxu0 0
      %6164 = vmatpush1.bf16.msra.mxu0 %v6000
      %6165 = vmatprep.subr.bf16.mxu0 0
      %6166 = vmatpush1.bf16.msra.mxu0 %v6001
      %6167 = vmatprep.subr.bf16.mxu0 0
      %6168 = vmatpush1.bf16.msra.mxu0 %v6002
      %6169 = vmatprep.subr.bf16.mxu0 0
      %6170 = vmatpush1.bf16.msra.mxu0 %v6003
      %6171 = vmatprep.mubr.bf16.mxu0 %v5653
      %6172 = vmatmul.mubr.bf16.gmra.mrb[0].mxu0 %v5652
      %v6173 = vpop.f32.mrb[0].mxu0
      %v6174 = vadd.f32 %v6134, %v6173
      %v6175 = vpop.f32.mrb[0].mxu0
      %v6176 = vpop.f32.mrb[0].mxu0
      %v6177 = vpop.f32.mrb[0].mxu0
      %6178 = vdwg.mxu0
      %6179 = vmatprep.subr.bf16.mxu0 0
      %6180 = vmatpush1.bf16.msra.mxu0 %v6004
      %6181 = vmatprep.subr.bf16.mxu0 0
      %6182 = vmatpush1.bf16.msra.mxu0 %v6005
      %6183 = vmatprep.subr.bf16.mxu0 0
      %6184 = vmatpush1.bf16.msra.mxu0 0
      %6185 = vmatprep.subr.bf16.mxu0 0
      %6186 = vmatpush1.bf16.msra.mxu0 0
      %6187 = vmatprep.subr.bf16.mxu0 0
      %6188 = vmatpush1.bf16.msra.mxu0 0
      %6189 = vmatprep.subr.bf16.mxu0 0
      %6190 = vmatpush1.bf16.msra.mxu0 0
      %6191 = vmatprep.subr.bf16.mxu0 0
      %6192 = vmatpush1.bf16.msra.mxu0 0
      %6193 = vmatprep.subr.bf16.mxu0 0
      %6194 = vmatpush1.bf16.msra.mxu0 0
      %6195 = vmatprep.subr.bf16.mxu0 0
      %6196 = vmatpush1.bf16.msra.mxu0 0
      %6197 = vmatprep.subr.bf16.mxu0 0
      %6198 = vmatpush1.bf16.msra.mxu0 0
      %6199 = vmatprep.subr.bf16.mxu0 0
      %6200 = vmatpush1.bf16.msra.mxu0 0
      %6201 = vmatprep.subr.bf16.mxu0 0
      %6202 = vmatpush1.bf16.msra.mxu0 0
      %6203 = vmatprep.subr.bf16.mxu0 0
      %6204 = vmatpush1.bf16.msra.mxu0 0
      %6205 = vmatprep.subr.bf16.mxu0 0
      %6206 = vmatpush1.bf16.msra.mxu0 0
      %6207 = vmatprep.subr.bf16.mxu0 0
      %6208 = vmatpush1.bf16.msra.mxu0 0
      %6209 = vmatprep.subr.bf16.mxu0 0
      %6210 = vmatpush1.bf16.msra.mxu0 0
      %6211 = vmatprep.mubr.bf16.mxu0 0
      %6212 = vmatmul.mubr.bf16.gmra.mrb[0].mxu0 %v6057
      %v6213 = vpop.f32.mrb[0].mxu0
      %v6214 = vadd.f32 %v6174, %v6213
      %v6215 = vpop.f32.mrb[0].mxu0
      %v6216 = vpop.f32.mrb[0].mxu0
      %v6217 = vpop.f32.mrb[0].mxu0
      %6218 = vdwg.mxu0
      %v6219 = vmax.f32 %v6214, 0.0
      %v6220 = vld [vmem:[%s6] sm:$0x1]
      %v6221 = vmul.f32 %v6219, %v6220
      %vm6222 = vcmask 679936
      %v6223 = vsel %vm6222, %v6221, 0.0
      %6224 = vadd.xlane.f32.xlu0 %v6223
      %v6225 = vpop.xlane.xlu0 %6224
      %v6226 = vld [vmem:[#allocation4] sm:$0x1]
      %v6227 = vadd.f32 %v6225, %v6226
      %vm6228 = vcmask 0
      %6229 = vst.msk [vmem:[%s303] sm:$0x1] %vm6228, %v6227
      %p6230 = scmp.lt.s32.totalorder %s21, 1
      %s6231 = scalar_select %p6230, %s21, 1
      %s6232 = scalar_lea.vmem %s8, %s6231
      // Predicated region
      $region53: #{basicnet_forward.1} parent=51 // pred_check
        %p6233 = pneg %p212
      $region54: #{basicnet_forward.1} parent=51 // pred_check_branch
        %6235 = sbr.rel (%p6233) target = $region56
      $region55: #{basicnet_forward.1} parent=51 // pred_region
        _
      $region56: #{basicnet_forward.1} parent=51 // pred_fallthru
        _
    $region52: #{basicnet_forward.1} parent=5 // pred_fallthru
      _
    %p6236 = scmp.le.s32.totalorder 2, %s16
    // Predicated region
    $region57: #{basicnet_forward.1} parent=5 // pred_check
      %p6237 = pneg %p6236
    $region58: #{basicnet_forward.1} parent=5 // pred_check_branch
      %6239 = sbr.rel (%p6237) target = $region60
    $region59: #{basicnet_forward.1} parent=5 // pred_region
      %s6240 = ssub.s32 %s16, 2
      // Predicated region
      $region61: #{basicnet_forward.1} parent=59 // pred_check
        %p6241 = pneg %p218
      $region62: #{basicnet_forward.1} parent=59 // pred_check_branch
        %6243 = sbr.rel (%p6241) target = $region64
      $region63: #{basicnet_forward.1} parent=59 // pred_region
        %p6244 = scmp.lt.s32.totalorder %s22, 1
        %s6245 = scalar_select %p6244, %s22, 1
        %s6246 = scalar_lea.vmem %s8, %s6245
      $region64: #{basicnet_forward.1} parent=59 // pred_fallthru
        _
    $region60: #{basicnet_forward.1} parent=5 // pred_fallthru
      _
  $region6: #{basicnet_forward.1} parent=0 // loop_footer
    %s20 = sadd.s32 1, %s16
  $region7: #{basicnet_forward.1} parent=0 // loop_footer_branch
    %15 = sbr.rel target = $region3
  $region8: #{basicnet_forward.1} parent=0 // loop_exit
    _

</llo_original>
